<compile_context>
chip_gen: v7x
topology: tpu7x:2x2x1
jax: 0.10.0
libtpu: 0.0.40
codegen_flags: <defaults>
</compile_context>

<pallas_src>
import jax
import jax.numpy as jnp
import numpy as np
from jax.experimental import pallas as pl
from jax.experimental.pallas import tpu as pltpu

NUM_CLASS = 7
GROUPS = 64
C = 2048                      # nn.Linear(num_class, 2048) pins c == 2048
CPG = C // GROUPS             # channels per group (32)
B = 2
H = W = 16
HW = H * W
EPS = 1e-5


def _num_group_tiles():
    """Group-tile count per batch: 4 on v7x (2 TC/chip), 2 elsewhere."""
    try:
        kind = jax.devices()[0].device_kind.lower()
    except Exception:
        kind = ""
    return 4 if "v7" in kind else 2


# --------------------------------------------------------------------------
# Fused SEM kernel: one grid step == (one batch, one tile of groups).
# --------------------------------------------------------------------------
def _sem_kernel(lab_ref, x_ref, wg_ref, bg_ref, o_ref):
    x = x_ref[0]                                             # (Gt, CPG, HW)
    lab = lab_ref[0]                                         # (Gt, CPG, 1)

    # avg_pool(x + label_w) over spatial == mean_spatial(x) + label_w (const)
    pool = jnp.mean(x, axis=2, keepdims=True) + lab          # (Gt, CPG, 1)

    # xn = sum over the group's channels of (x * pool)
    t = jnp.sum(x * pool, axis=1, keepdims=True)             # (Gt, 1, HW)

    # per-group normalization over spatial; torch.std is unbiased (N-1)
    mu = jnp.mean(t, axis=2, keepdims=True)                  # (Gt, 1, 1)
    tc = t - mu
    var = jnp.sum(tc * tc, axis=2, keepdims=True) * (1.0 / (HW - 1))

    # exact reciprocal on the tiny (Gt,1,1) tensor, affine weight folded in
    inv = 1.0 / (jnp.sqrt(var) + EPS)                        # (Gt, 1, 1)
    scale = inv * wg_ref[...]                                # (Gt, 1, 1)
    tn = tc * scale + bg_ref[...]                            # (Gt, 1, HW)

    # sigmoid(t) == 0.5*tanh(0.5*t)+0.5  (single EUP op, no f32 divide)
    gate = 0.5 * jnp.tanh(0.5 * tn) + 0.5
    o_ref[0] = x * gate


# --------------------------------------------------------------------------
# Wrapper
# --------------------------------------------------------------------------
def semantic_enhancement(x, label, lin_w, lin_b, weight, bias):
    b, c, h, w = x.shape
    hw = h * w
    assert c == C and hw == HW

    n_tiles = _num_group_tiles()
    assert GROUPS % n_tiles == 0
    g_tile = GROUPS // n_tiles

    # ---- label branch (tiny (B,7)x(7,2048) matmul + softmax) stays in XLA;
    # its softmax couples all 2048 channels, so hoisting it unlocks group
    # tiling inside the kernel.  Result is fed channel-on-sublane: (B,G,CPG,1).
    logits = label.astype(jnp.float32) @ lin_w.T.astype(jnp.float32) + lin_b.astype(jnp.float32)
    lab4 = jax.nn.softmax(logits, axis=1).reshape(b, GROUPS, CPG, 1)

    # glue reshapes (metadata only)
    x4 = x.reshape(b, GROUPS, CPG, hw)
    wg = weight.reshape(GROUPS, 1, 1).astype(jnp.float32)
    bg = bias.reshape(GROUPS, 1, 1).astype(jnp.float32)

    out = pl.pallas_call(
        _sem_kernel,
        out_shape=jax.ShapeDtypeStruct((b, GROUPS, CPG, hw), jnp.float32),
        grid=(b, n_tiles),
        in_specs=[
            pl.BlockSpec((1, g_tile, CPG, 1), lambda i, j: (i, j, 0, 0)),   # label softmax
            pl.BlockSpec((1, g_tile, CPG, hw), lambda i, j: (i, j, 0, 0)),  # x
            pl.BlockSpec((g_tile, 1, 1), lambda i, j: (j, 0, 0)),           # weight
            pl.BlockSpec((g_tile, 1, 1), lambda i, j: (j, 0, 0)),           # bias
        ],
        out_specs=pl.BlockSpec((1, g_tile, CPG, hw), lambda i, j: (i, j, 0, 0)),
        compiler_params=pltpu.CompilerParams(
            dimension_semantics=("parallel", "arbitrary"),
            vmem_limit_bytes=32 * 1024 * 1024,
        ),
    )(lab4, x4, wg, bg)

    return out.reshape(b, c, h, w)


# --------------------------------------------------------------------------
# Pure-JAX reference (mirrors the PyTorch forward exactly)
# --------------------------------------------------------------------------
def reference(x, label, lin_w, lin_b, weight, bias):
    b, c, h, w = x.shape
    logits = label @ lin_w.T + lin_b
    lw = jax.nn.softmax(logits, axis=1)
    xg = x.reshape(b * GROUPS, CPG, h, w)
    lwg = lw.reshape(b * GROUPS, CPG, 1, 1)          # repeat over spatial == bcast
    pool = jnp.mean(xg + lwg, axis=(2, 3), keepdims=True)
    xn = jnp.sum(xg * pool, axis=1, keepdims=True)
    t = xn.reshape(b * GROUPS, h * w)
    t = t - jnp.mean(t, axis=1, keepdims=True)
    std = jnp.std(t, axis=1, keepdims=True, ddof=1) + EPS
    t = t / std
    t = t.reshape(b, GROUPS, h, w) * weight + bias
    t = t.reshape(b * GROUPS, 1, h, w)
    out = xg * jax.nn.sigmoid(t)
    return out.reshape(b, c, h, w)


if __name__ == "__main__":
    key = jax.random.PRNGKey(0)
    k1, k2, k3, k4, k5, k6 = jax.random.split(key, 6)

    x = jax.random.normal(k1, (B, C, H, W), jnp.float32)
    label = jax.random.normal(k2, (B, NUM_CLASS), jnp.float32)

    # module shapes: Linear(7, 2048), weight (1, groups, 1, 1), bias (1, groups, 1, 1).
    # The module inits weight=0 / bias=1; perturb deterministically so the whole
    # normalization path is actually exercised.
    lin_w = jax.random.normal(k3, (C, NUM_CLASS), jnp.float32) * 0.1
    lin_b = jax.random.normal(k4, (C,), jnp.float32) * 0.1
    weight = jax.random.normal(k5, (1, GROUPS, 1, 1), jnp.float32) * 0.1
    bias = 1.0 + jax.random.normal(k6, (1, GROUPS, 1, 1), jnp.float32) * 0.1

    out = semantic_enhancement(x, label, lin_w, lin_b, weight, bias)
    out = jax.block_until_ready(out)

    ref = reference(x, label, lin_w, lin_b, weight, bias)
    np.testing.assert_allclose(np.asarray(out), np.asarray(ref),
                               rtol=2e-4, atol=1e-5)
    print("KERNEL_OK")
</pallas_src>

<mosaic_0001>
module attributes {stable_mosaic.version = 11 : i64} {
  func.func @_sem_kernel(%arg0: i32, %arg1: i32, %arg2: memref<1x32x32x1xf32, #tpu.memory_space<vmem>>, %arg3: memref<1x32x32x256xf32, #tpu.memory_space<vmem>>, %arg4: memref<32x1x1xf32, #tpu.memory_space<vmem>>, %arg5: memref<32x1x1xf32, #tpu.memory_space<vmem>>, %arg6: memref<1x32x32x256xf32, #tpu.memory_space<vmem>>) attributes {dimension_semantics = [#tpu.dimension_semantics<parallel>, #tpu.dimension_semantics<arbitrary>], iteration_bounds = array<i64: 2, 2>, scalar_prefetch = 0 : i64, scratch_operands = 0 : i64, tpu.core_type = #tpu.core_type<tc>, window_params = [{transform_indices = @transform_0, window_bounds = array<i64: 1, 32, 32, 1>}, {transform_indices = @transform_1, window_bounds = array<i64: 1, 32, 32, 256>}, {transform_indices = @transform_2, window_bounds = array<i64: 32, 1, 1>}, {transform_indices = @transform_3, window_bounds = array<i64: 32, 1, 1>}, {transform_indices = @transform_4, window_bounds = array<i64: 1, 32, 32, 256>}]} {
    %c0 = arith.constant 0 : index
    %c0_0 = arith.constant 0 : index
    %c0_1 = arith.constant 0 : index
    %c0_2 = arith.constant 0 : index
    %0 = vector.load %arg3[%c0, %c0_0, %c0_1, %c0_2] : memref<1x32x32x256xf32, #tpu.memory_space<vmem>>, vector<1x32x32x256xf32>
    %1 = vector.shape_cast %0 : vector<1x32x32x256xf32> to vector<32x32x256xf32>
    %c0_3 = arith.constant 0 : index
    %c0_4 = arith.constant 0 : index
    %c0_5 = arith.constant 0 : index
    %c0_6 = arith.constant 0 : index
    %2 = vector.load %arg2[%c0_3, %c0_4, %c0_5, %c0_6] : memref<1x32x32x1xf32, #tpu.memory_space<vmem>>, vector<1x32x32x1xf32>
    %3 = vector.shape_cast %2 : vector<1x32x32x1xf32> to vector<32x32x1xf32>
    %cst = arith.constant dense<0.000000e+00> : vector<32x32xf32>
    %4 = vector.multi_reduction <add>, %1, %cst [2] : vector<32x32x256xf32> to vector<32x32xf32>
    %5 = vector.shape_cast %4 : vector<32x32xf32> to vector<32x32x1xf32>
    %cst_7 = arith.constant 2.560000e+02 : f32
    %6 = vector.broadcast %cst_7 : f32 to vector<32x32x1xf32>
    %7 = arith.divf %5, %6 : vector<32x32x1xf32>
    %8 = arith.addf %7, %3 : vector<32x32x1xf32>
    %9 = vector.broadcast %8 : vector<32x32x1xf32> to vector<32x32x256xf32>
    %10 = arith.mulf %1, %9 : vector<32x32x256xf32>
    %cst_8 = arith.constant dense<0.000000e+00> : vector<32x256xf32>
    %11 = vector.multi_reduction <add>, %10, %cst_8 [1] : vector<32x32x256xf32> to vector<32x256xf32>
    %12 = vector.shape_cast %11 : vector<32x256xf32> to vector<32x1x256xf32>
    %cst_9 = arith.constant dense<0.000000e+00> : vector<32x1xf32>
    %13 = vector.multi_reduction <add>, %12, %cst_9 [2] : vector<32x1x256xf32> to vector<32x1xf32>
    %14 = vector.shape_cast %13 : vector<32x1xf32> to vector<32x1x1xf32>
    %cst_10 = arith.constant 2.560000e+02 : f32
    %15 = vector.broadcast %cst_10 : f32 to vector<32x1x1xf32>
    %16 = arith.divf %14, %15 : vector<32x1x1xf32>
    %17 = vector.broadcast %16 : vector<32x1x1xf32> to vector<32x1x256xf32>
    %18 = arith.subf %12, %17 : vector<32x1x256xf32>
    %19 = arith.mulf %18, %18 : vector<32x1x256xf32>
    %cst_11 = arith.constant dense<0.000000e+00> : vector<32x1xf32>
    %20 = vector.multi_reduction <add>, %19, %cst_11 [2] : vector<32x1x256xf32> to vector<32x1xf32>
    %21 = vector.shape_cast %20 : vector<32x1xf32> to vector<32x1x1xf32>
    %cst_12 = arith.constant 0.00392156886 : f32
    %22 = vector.broadcast %cst_12 : f32 to vector<32x1x1xf32>
    %23 = arith.mulf %21, %22 : vector<32x1x1xf32>
    %24 = math.sqrt %23 : vector<32x1x1xf32>
    %cst_13 = arith.constant 9.99999974E-6 : f32
    %25 = vector.broadcast %cst_13 : f32 to vector<32x1x1xf32>
    %26 = arith.addf %24, %25 : vector<32x1x1xf32>
    %cst_14 = arith.constant 1.000000e+00 : f32
    %27 = vector.broadcast %cst_14 : f32 to vector<32x1x1xf32>
    %28 = arith.divf %27, %26 : vector<32x1x1xf32>
    %c0_15 = arith.constant 0 : index
    %c0_16 = arith.constant 0 : index
    %c0_17 = arith.constant 0 : index
    %29 = vector.load %arg4[%c0_15, %c0_16, %c0_17] : memref<32x1x1xf32, #tpu.memory_space<vmem>>, vector<32x1x1xf32>
    %30 = arith.mulf %28, %29 : vector<32x1x1xf32>
    %31 = vector.broadcast %30 : vector<32x1x1xf32> to vector<32x1x256xf32>
    %32 = arith.mulf %18, %31 : vector<32x1x256xf32>
    %c0_18 = arith.constant 0 : index
    %c0_19 = arith.constant 0 : index
    %c0_20 = arith.constant 0 : index
    %33 = vector.load %arg5[%c0_18, %c0_19, %c0_20] : memref<32x1x1xf32, #tpu.memory_space<vmem>>, vector<32x1x1xf32>
    %34 = vector.broadcast %33 : vector<32x1x1xf32> to vector<32x1x256xf32>
    %35 = arith.addf %32, %34 : vector<32x1x256xf32>
    %cst_21 = arith.constant 5.000000e-01 : f32
    %36 = vector.broadcast %cst_21 : f32 to vector<32x1x256xf32>
    %37 = arith.mulf %36, %35 : vector<32x1x256xf32>
    %38 = math.tanh %37 : vector<32x1x256xf32>
    %cst_22 = arith.constant 5.000000e-01 : f32
    %39 = vector.broadcast %cst_22 : f32 to vector<32x1x256xf32>
    %40 = arith.mulf %39, %38 : vector<32x1x256xf32>
    %cst_23 = arith.constant 5.000000e-01 : f32
    %41 = vector.broadcast %cst_23 : f32 to vector<32x1x256xf32>
    %42 = arith.addf %40, %41 : vector<32x1x256xf32>
    %43 = vector.broadcast %42 : vector<32x1x256xf32> to vector<32x32x256xf32>
    %44 = arith.mulf %1, %43 : vector<32x32x256xf32>
    %c0_24 = arith.constant 0 : index
    %c0_25 = arith.constant 0 : index
    %c0_26 = arith.constant 0 : index
    %c0_27 = arith.constant 0 : index
    %45 = vector.load %arg6[%c0_24, %c0_25, %c0_26, %c0_27] : memref<1x32x32x256xf32, #tpu.memory_space<vmem>>, vector<1x32x32x256xf32>
    %46 = vector.shape_cast %45 : vector<1x32x32x256xf32> to vector<32x32x256xf32>
    %47 = vector.shape_cast %44 : vector<32x32x256xf32> to vector<1x32x32x256xf32>
    tpu.vector_store %arg6[%c0_24, %c0_25, %c0_26, %c0_27], %47 {strides = array<i32>} : memref<1x32x32x256xf32, #tpu.memory_space<vmem>>, vector<1x32x32x256xf32>,
    return
  }
  func.func @transform_0(%arg0: i32, %arg1: i32) -> (i32, i32, i32, i32) {
    %c0_i32 = arith.constant 0 : i32
    %c0_i32_0 = arith.constant 0 : i32
    %c0_i32_1 = arith.constant 0 : i32
    return %arg0, %arg1, %c0_i32, %c0_i32_0 : i32, i32, i32, i32
  }
  func.func @transform_1(%arg0: i32, %arg1: i32) -> (i32, i32, i32, i32) {
    %c0_i32 = arith.constant 0 : i32
    %c0_i32_0 = arith.constant 0 : i32
    %c0_i32_1 = arith.constant 0 : i32
    return %arg0, %arg1, %c0_i32, %c0_i32_0 : i32, i32, i32, i32
  }
  func.func @transform_2(%arg0: i32, %arg1: i32) -> (i32, i32, i32) {
    %c0_i32 = arith.constant 0 : i32
    %c0_i32_0 = arith.constant 0 : i32
    %c0_i32_1 = arith.constant 0 : i32
    return %arg1, %c0_i32, %c0_i32_0 : i32, i32, i32
  }
  func.func @transform_3(%arg0: i32, %arg1: i32) -> (i32, i32, i32) {
    %c0_i32 = arith.constant 0 : i32
    %c0_i32_0 = arith.constant 0 : i32
    %c0_i32_1 = arith.constant 0 : i32
    return %arg1, %c0_i32, %c0_i32_0 : i32, i32, i32
  }
  func.func @transform_4(%arg0: i32, %arg1: i32) -> (i32, i32, i32, i32) {
    %c0_i32 = arith.constant 0 : i32
    %c0_i32_0 = arith.constant 0 : i32
    %c0_i32_1 = arith.constant 0 : i32
    return %arg0, %arg1, %c0_i32, %c0_i32_0 : i32, i32, i32, i32
  }
}

</mosaic_0001>

<llo_original>
// kernel: tpu_custom_call.1
$region0: #{tpu_custom_call.1}
  #allocation0 [shape = 'u32[]', space=smem, size = 0x4, offset = 0x4, fixed_abs, tag = 'smem constant byte address 0x4 - core index']
  #allocation1 [shape = 'u32[144,128]{1,0:T(1,128)}', space=vmem, size = 0x12000, scoped, tag = 'internal scratch']
  %s0 = inlined_call_operand.vmem [shape: f32[2,64,32,1], index: 0, kind: input, shape index: {}]
  %s1 = inlined_call_operand.hbm [shape: f32[2,64,32,256], index: 1, kind: input, shape index: {}]
  %s2 = inlined_call_operand.vmem [shape: f32[64,1,1], index: 2, kind: input, shape index: {}]
  %s3 = inlined_call_operand.vmem [shape: f32[64,1,1], index: 3, kind: input, shape index: {}]
  %s4 = inlined_call_operand.hbm [shape: f32[2,64,32,256], index: 4, kind: output, shape index: {}]
  %s5 = sld [smem:[#allocation0]]
  $region53: #{tpu_custom_call.1} parent=0
    _
  %s7 = ssub.s32 1, %s5
  %s8 = scalar_select 0, %s7, %s5
  $region1: #{tpu_custom_call.1} parent=0
    #allocation2 [shape = 'u8[2097152]{0}', space=vmem, size = 0x200000, scoped, tag = 'input window, operand 1']
    #allocation3 [shape = 's32[2]{0}', space=sflag, size = 0x8, scoped, tag = 'scoped memory for tpu_custom_call.1']
    #allocation4 [shape = 's32[2]{0}', space=sflag, size = 0x8, scoped, tag = 'scoped memory for tpu_custom_call.1']
    #allocation5 [shape = 'u8[2097152]{0}', space=vmem, size = 0x200000, scoped, tag = 'output window, operand 0']
    %9 = vsyncpa [#allocation3], 0
    %s10 = scalar_lea.sflag [#allocation3], 1
    %11 = vsyncpa %s10, 0
    %12 = vsyncpa [#allocation4], 0
    %s13 = scalar_lea.sflag [#allocation4], 1
    %14 = vsyncpa %s13, 0
    loop: start=0, step=1, limit=6
    $region2: #{tpu_custom_call.1} parent=1 // loop_pre_header
      _
    $region3: #{tpu_custom_call.1} parent=1 // loop_header
      %s16 = sphi 0, %s20
      %p17 = scmp.ge.s32.totalorder %s16, 6
      %s23 = sphi 0, %s35
      %s24 = sphi 0, %s31
      %s25 = sphi 0, %s23
      %s26 = sphi 0, %s24
      %s27 = sphi 0, %s25
      %s28 = sphi 0, %s26
      %s40 = sphi 0, %s42
      %s43 = sphi 0, %s40
      %s44 = sphi 0, %s43
      %s60 = sphi 0, %s44
      %s68 = sphi 0, %s70
      %s71 = sphi 0, %s68
      %s72 = sphi 0, %s71
      %s88 = sphi 0, %s72
      %s94 = sphi 0, %s96
      %s97 = sphi 0, %s94
      %s98 = sphi 0, %s97
      %s114 = sphi 0, %s98
      %s120 = sphi 0, %s122
      %s123 = sphi 0, %s120
      %s124 = sphi 0, %s123
      %s140 = sphi 0, %s124
      %s148 = sphi 0, %s150
      %s151 = sphi 0, %s148
      %s152 = sphi 0, %s151
      %s168 = sphi 0, %s152
    $region4: #{tpu_custom_call.1} parent=1 // loop_header_branch
      %19 = sbr.rel (%p17) target = $region8
    $region5: #{tpu_custom_call.1} parent=1 // loop_body
      %s21 = ssub.s32 %s16, 1
      %s22 = ssub.s32 %s16, 2
      %s29 = sadd.s32 1, %s24
      %p30 = scmp.ge.s32.totalorder %s29, 2
      %s31 = scalar_select %p30, 0, %s29
      %s32 = sadd.s32 1, %s23
      %s33 = scalar_select %p30, %s32, %s23
      %p34 = scmp.ge.s32.totalorder %s33, 2
      %s35 = scalar_select %p34, 0, %s33
      %s36 = ssub.s32 %s23, %s35
      %s37 = ssub.s32 %s24, %s31
      %s38 = sor.u32 %s36, %s37
      %p39 = scmp.eq.s32.totalorder %s38, 0
      %s41 = sadd.s32 %s40, 1
      %s42 = scalar_select %p39, %s40, %s41
      %p45 = pneg %p39
      %p46 = scmp.eq.s32.totalorder %s16, 3
      %p47 = por %p45, %p46
      %p48 = scmp.ne.s32.totalorder %s40, %s43
      %p49 = scmp.eq.s32.totalorder %s16, 0
      %p50 = por %p48, %p49
      %p51 = scmp.ne.s32.totalorder %s40, %s43
      %p52 = scmp.eq.s32.totalorder %s21, 3
      %p53 = por %p51, %p52
      %p54 = scmp.ne.s32.totalorder %s43, %s44
      %p55 = scmp.eq.s32.totalorder %s21, 0
      %p56 = por %p54, %p55
      %p57 = scmp.ne.s32.totalorder %s43, %s44
      %p58 = scmp.eq.s32.totalorder %s22, 3
      %p59 = por %p57, %p58
      %p61 = scmp.ne.s32.totalorder %s44, %s60
      %p62 = scmp.eq.s32.totalorder %s22, 0
      %p63 = por %p61, %p62
      %s64 = ssub.s32 %s23, %s35
      %s65 = ssub.s32 %s24, %s31
      %s66 = sor.u32 %s64, %s65
      %p67 = scmp.eq.s32.totalorder %s66, 0
      %s69 = sadd.s32 %s68, 1
      %s70 = scalar_select %p67, %s68, %s69
      %p73 = pneg %p67
      %p74 = scmp.eq.s32.totalorder %s16, 3
      %p75 = por %p73, %p74
      %p76 = scmp.ne.s32.totalorder %s68, %s71
      %p77 = scmp.eq.s32.totalorder %s16, 0
      %p78 = por %p76, %p77
      %p79 = scmp.ne.s32.totalorder %s68, %s71
      %p80 = scmp.eq.s32.totalorder %s21, 3
      %p81 = por %p79, %p80
      %p82 = scmp.ne.s32.totalorder %s71, %s72
      %p83 = scmp.eq.s32.totalorder %s21, 0
      %p84 = por %p82, %p83
      %p85 = scmp.ne.s32.totalorder %s71, %s72
      %p86 = scmp.eq.s32.totalorder %s22, 3
      %p87 = por %p85, %p86
      %p89 = scmp.ne.s32.totalorder %s72, %s88
      %p90 = scmp.eq.s32.totalorder %s22, 0
      %p91 = por %p89, %p90
      %s92 = ssub.s32 %s24, %s31
      %p93 = scmp.eq.s32.totalorder %s92, 0
      %s95 = sadd.s32 %s94, 1
      %s96 = scalar_select %p93, %s94, %s95
      %p99 = pneg %p93
      %p100 = scmp.eq.s32.totalorder %s16, 3
      %p101 = por %p99, %p100
      %p102 = scmp.ne.s32.totalorder %s94, %s97
      %p103 = scmp.eq.s32.totalorder %s16, 0
      %p104 = por %p102, %p103
      %p105 = scmp.ne.s32.totalorder %s94, %s97
      %p106 = scmp.eq.s32.totalorder %s21, 3
      %p107 = por %p105, %p106
      %p108 = scmp.ne.s32.totalorder %s97, %s98
      %p109 = scmp.eq.s32.totalorder %s21, 0
      %p110 = por %p108, %p109
      %p111 = scmp.ne.s32.totalorder %s97, %s98
      %p112 = scmp.eq.s32.totalorder %s22, 3
      %p113 = por %p111, %p112
      %p115 = scmp.ne.s32.totalorder %s98, %s114
      %p116 = scmp.eq.s32.totalorder %s22, 0
      %p117 = por %p115, %p116
      %s118 = ssub.s32 %s24, %s31
      %p119 = scmp.eq.s32.totalorder %s118, 0
      %s121 = sadd.s32 %s120, 1
      %s122 = scalar_select %p119, %s120, %s121
      %p125 = pneg %p119
      %p126 = scmp.eq.s32.totalorder %s16, 3
      %p127 = por %p125, %p126
      %p128 = scmp.ne.s32.totalorder %s120, %s123
      %p129 = scmp.eq.s32.totalorder %s16, 0
      %p130 = por %p128, %p129
      %p131 = scmp.ne.s32.totalorder %s120, %s123
      %p132 = scmp.eq.s32.totalorder %s21, 3
      %p133 = por %p131, %p132
      %p134 = scmp.ne.s32.totalorder %s123, %s124
      %p135 = scmp.eq.s32.totalorder %s21, 0
      %p136 = por %p134, %p135
      %p137 = scmp.ne.s32.totalorder %s123, %s124
      %p138 = scmp.eq.s32.totalorder %s22, 3
      %p139 = por %p137, %p138
      %p141 = scmp.ne.s32.totalorder %s124, %s140
      %p142 = scmp.eq.s32.totalorder %s22, 0
      %p143 = por %p141, %p142
      %s144 = ssub.s32 %s23, %s35
      %s145 = ssub.s32 %s24, %s31
      %s146 = sor.u32 %s144, %s145
      %p147 = scmp.eq.s32.totalorder %s146, 0
      %s149 = sadd.s32 %s148, 1
      %s150 = scalar_select %p147, %s148, %s149
      %p153 = pneg %p147
      %p154 = scmp.eq.s32.totalorder %s16, 3
      %p155 = por %p153, %p154
      %p156 = scmp.ne.s32.totalorder %s148, %s151
      %p157 = scmp.eq.s32.totalorder %s16, 0
      %p158 = por %p156, %p157
      %p159 = scmp.ne.s32.totalorder %s148, %s151
      %p160 = scmp.eq.s32.totalorder %s21, 3
      %p161 = por %p159, %p160
      %p162 = scmp.ne.s32.totalorder %s151, %s152
      %p163 = scmp.eq.s32.totalorder %s21, 0
      %p164 = por %p162, %p163
      %p165 = scmp.ne.s32.totalorder %s151, %s152
      %p166 = scmp.eq.s32.totalorder %s22, 3
      %p167 = por %p165, %p166
      %p169 = scmp.ne.s32.totalorder %s152, %s168
      %p170 = scmp.eq.s32.totalorder %s22, 0
      %p171 = por %p169, %p170
      %p172 = scmp.le.s32.totalorder 1, %s16
      %p173 = scmp.lt.s32.totalorder %s16, 5
      %p174 = pnand %p172, %p173
      %p175 = pneg %p174
      // Predicated region
      $region9: #{tpu_custom_call.1} parent=5 // pred_check
        _
      $region10: #{tpu_custom_call.1} parent=5 // pred_check_branch
        %177 = sbr.rel (%p174) target = $region12
      $region11: #{tpu_custom_call.1} parent=5 // pred_region
        %s178 = ssub.s32 %s16, 1
      $region12: #{tpu_custom_call.1} parent=5 // pred_fallthru
        _
      %p179 = scmp.lt.s32.totalorder %s16, 4
      // Predicated region
      $region13: #{tpu_custom_call.1} parent=5 // pred_check
        %p180 = pneg %p179
      $region14: #{tpu_custom_call.1} parent=5 // pred_check_branch
        %182 = sbr.rel (%p180) target = $region16
      $region15: #{tpu_custom_call.1} parent=5 // pred_region
        // Predicated region
        $region17: #{tpu_custom_call.1} parent=15 // pred_check
          %p183 = pneg %p50
        $region18: #{tpu_custom_call.1} parent=15 // pred_check_branch
          %185 = sbr.rel (%p183) target = $region20
        $region19: #{tpu_custom_call.1} parent=15 // pred_region
          %s186 = smul.u32 32, %s24
          %p187 = scmp.lt.s32.totalorder %s23, 1
          %s188 = scalar_select %p187, %s23, 1
          %p189 = scmp.lt.s32.totalorder %s186, 63
          %s190 = scalar_select %p189, %s186, 63
          %s191 = smul.addr %s190, 4
          %s192 = smul.addr %s188, 256
          %s193 = sadd.s32 %s191, %s192
          %s194 = smul.addr %s193, 8
          %s195 = scalar_lea.vmem %s0, %s194
          %s196 = smul.u32 32, %s24
        $region20: #{tpu_custom_call.1} parent=15 // pred_fallthru
          _
        // Predicated region
        $region21: #{tpu_custom_call.1} parent=15 // pred_check
          %p197 = pneg %p78
        $region22: #{tpu_custom_call.1} parent=15 // pred_check_branch
          %199 = sbr.rel (%p197) target = $region24
        $region23: #{tpu_custom_call.1} parent=15 // pred_region
          %s200 = sand.u32 %s68, 1
          %s201 = scalar_lea.sflag [#allocation3], %s200
          %s202 = sand.u32 %s68, 1
          %s203 = smul.addr %s202, 2048
          %s204 = scalar_lea.vmem [#allocation2], %s203
          %s205 = smul.u32 32, %s24
          %s207 = ssub.s32 32768, 32768
          %208 = vsyncadd %s201, %s207
          %s209 = smul.addr %s205, 8
          %s210 = smul.addr %s23, 512
          %s211 = sadd.s32 %s209, %s210
          %s212 = smul.addr %s211, 128
          %s213 = scalar_lea.hbm %s1, %s212
          %s214 = sshll.u32 %s204, 4
          %s215 = int_to_ptr.vmem [resolvable:$true] %s214
          %220 = dma.hbm_to_vmem [thread:$0]  %s213, 32768, %s215, %s201, 256, 256, 16
        $region24: #{tpu_custom_call.1} parent=15 // pred_fallthru
          _
        // Predicated region
        $region25: #{tpu_custom_call.1} parent=15 // pred_check
          %p221 = pneg %p104
        $region26: #{tpu_custom_call.1} parent=15 // pred_check_branch
          %223 = sbr.rel (%p221) target = $region28
        $region27: #{tpu_custom_call.1} parent=15 // pred_region
          %s224 = smul.u32 32, %s24
          %p225 = scmp.lt.s32.totalorder %s224, 63
          %s226 = scalar_select %p225, %s224, 63
          %s227 = scalar_lea.vmem %s2, %s226
          %s228 = smul.u32 32, %s24
        $region28: #{tpu_custom_call.1} parent=15 // pred_fallthru
          _
        // Predicated region
        $region29: #{tpu_custom_call.1} parent=15 // pred_check
          %p229 = pneg %p130
        $region30: #{tpu_custom_call.1} parent=15 // pred_check_branch
          %231 = sbr.rel (%p229) target = $region32
        $region31: #{tpu_custom_call.1} parent=15 // pred_region
          %s232 = smul.u32 32, %s24
          %p233 = scmp.lt.s32.totalorder %s232, 63
          %s234 = scalar_select %p233, %s232, 63
          %s235 = scalar_lea.vmem %s3, %s234
          %s236 = smul.u32 32, %s24
        $region32: #{tpu_custom_call.1} parent=15 // pred_fallthru
          _
      $region16: #{tpu_custom_call.1} parent=5 // pred_fallthru
        _
      %p237 = scmp.le.s32.totalorder 1, %s16
      %p238 = scmp.lt.s32.totalorder %s16, 5
      %p239 = pnand %p237, %p238
      %p240 = pneg %p239
      // Predicated region
      $region33: #{tpu_custom_call.1} parent=5 // pred_check
        _
      $region34: #{tpu_custom_call.1} parent=5 // pred_check_branch
        %242 = sbr.rel (%p239) target = $region36
      $region35: #{tpu_custom_call.1} parent=5 // pred_region
        %s243 = ssub.s32 %s16, 1
        %s244 = sand.u32 %s71, 1
        %s245 = scalar_lea.sflag [#allocation3], %s244
        %s246 = sand.u32 %s71, 1
        %s247 = smul.addr %s246, 2048
        %s248 = scalar_lea.vmem [#allocation2], %s247
        // Predicated region
        $region37: #{tpu_custom_call.1} parent=35 // pred_check
          %p249 = pneg %p84
        $region38: #{tpu_custom_call.1} parent=35 // pred_check_branch
          %251 = sbr.rel (%p249) target = $region40
        $region39: #{tpu_custom_call.1} parent=35 // pred_region
          %252 = dma.done %s245, 32768
        $region40: #{tpu_custom_call.1} parent=35 // pred_fallthru
          _
        %s253 = smul.u32 32, %s26
        %p254 = scmp.lt.s32.totalorder %s25, 1
        %s255 = scalar_select %p254, %s25, 1
        %p256 = scmp.lt.s32.totalorder %s253, 63
        %s257 = scalar_select %p256, %s253, 63
        %s258 = smul.addr %s257, 4
        %s259 = smul.addr %s255, 256
        %s260 = sadd.s32 %s258, %s259
        %s261 = smul.addr %s260, 8
        %s262 = scalar_lea.vmem %s0, %s261
        %p263 = pneg %p56
        %p264 = pneg %p53
        %s265 = sand.u32 %s71, 1
        %s266 = scalar_lea.sflag [#allocation3], %s265
        %s267 = sand.u32 %s71, 1
        %s268 = smul.addr %s267, 2048
        %s269 = scalar_lea.vmem [#allocation2], %s268
        %p270 = pneg %p84
        %p271 = pneg %p81
        %s272 = smul.u32 32, %s26
        %p273 = scmp.lt.s32.totalorder %s272, 63
        %s274 = scalar_select %p273, %s272, 63
        %s275 = scalar_lea.vmem %s2, %s274
        %p276 = pneg %p110
        %p277 = pneg %p107
        %s278 = smul.u32 32, %s26
        %p279 = scmp.lt.s32.totalorder %s278, 63
        %s280 = scalar_select %p279, %s278, 63
        %s281 = scalar_lea.vmem %s3, %s280
        %p282 = pneg %p136
        %p283 = pneg %p133
        %p284 = pneg %p164
        %p285 = pneg %p161
        %s286 = sand.u32 %s151, 1
        %s287 = scalar_lea.sflag [#allocation4], %s286
        %s288 = sand.u32 %s151, 1
        %s289 = smul.addr %s288, 2048
        %s290 = scalar_lea.vmem [#allocation5], %s289
        %s291 = smul.u32 32, %s26
        %p292 = scmp.lt.s32.totalorder %s25, 1
        %s293 = scalar_select %p292, %s25, 1
        %p294 = scmp.lt.s32.totalorder %s291, 63
        %s295 = scalar_select %p294, %s291, 63
        %s296 = smul.addr %s295, 4
        %s297 = smul.addr %s293, 256
        %s298 = sadd.s32 %s296, %s297
        %s299 = smul.addr %s298, 8
        %s300 = scalar_lea.vmem %s0, %s299
        %s301 = smul.u32 32, %s26
        %s302 = smul.u32 32, %s26
        %s303 = smul.u32 32, %s26
        %p304 = scmp.lt.s32.totalorder %s303, 63
        %s305 = scalar_select %p304, %s303, 63
        %s306 = scalar_lea.vmem %s2, %s305
        %s307 = smul.u32 32, %s26
        %s308 = smul.u32 32, %s26
        %p309 = scmp.lt.s32.totalorder %s308, 63
        %s310 = scalar_select %p309, %s308, 63
        %s311 = scalar_lea.vmem %s3, %s310
        %s312 = smul.u32 32, %s26
        %s313 = smul.u32 32, %s26
        %v314 = vld [vmem:[%s248] sm:$0xff]
        %v315 = vld [vmem:[%s248 + $0x8] sm:$0xff]
        %v316 = vld [vmem:[%s248 + $0x10] sm:$0xff]
        %v317 = vld [vmem:[%s248 + $0x18] sm:$0xff]
        %v318 = vld [vmem:[%s248 + $0x20] sm:$0xff]
        %v319 = vld [vmem:[%s248 + $0x28] sm:$0xff]
        %v320 = vld [vmem:[%s248 + $0x30] sm:$0xff]
        %v321 = vld [vmem:[%s248 + $0x38] sm:$0xff]
        %v322 = vld [vmem:[%s248 + $0x40] sm:$0xff]
        %v323 = vld [vmem:[%s248 + $0x48] sm:$0xff]
        %v324 = vld [vmem:[%s248 + $0x50] sm:$0xff]
        %v325 = vld [vmem:[%s248 + $0x58] sm:$0xff]
        %v326 = vld [vmem:[%s248 + $0x60] sm:$0xff]
        %v327 = vld [vmem:[%s248 + $0x68] sm:$0xff]
        %v328 = vld [vmem:[%s248 + $0x70] sm:$0xff]
        %v329 = vld [vmem:[%s248 + $0x78] sm:$0xff]
        %v330 = vld [vmem:[%s248 + $0x80] sm:$0xff]
        %v331 = vld [vmem:[%s248 + $0x88] sm:$0xff]
        %v332 = vld [vmem:[%s248 + $0x90] sm:$0xff]
        %v333 = vld [vmem:[%s248 + $0x98] sm:$0xff]
        %v334 = vld [vmem:[%s248 + $0xa0] sm:$0xff]
        %v335 = vld [vmem:[%s248 + $0xa8] sm:$0xff]
        %v336 = vld [vmem:[%s248 + $0xb0] sm:$0xff]
        %v337 = vld [vmem:[%s248 + $0xb8] sm:$0xff]
        %v338 = vld [vmem:[%s248 + $0xc0] sm:$0xff]
        %v339 = vld [vmem:[%s248 + $0xc8] sm:$0xff]
        %v340 = vld [vmem:[%s248 + $0xd0] sm:$0xff]
        %v341 = vld [vmem:[%s248 + $0xd8] sm:$0xff]
        %v342 = vld [vmem:[%s248 + $0xe0] sm:$0xff]
        %v343 = vld [vmem:[%s248 + $0xe8] sm:$0xff]
        %v344 = vld [vmem:[%s248 + $0xf0] sm:$0xff]
        %v345 = vld [vmem:[%s248 + $0xf8] sm:$0xff]
        %v346 = vld [vmem:[%s248 + $0x100] sm:$0xff]
        %v347 = vld [vmem:[%s248 + $0x108] sm:$0xff]
        %v348 = vld [vmem:[%s248 + $0x110] sm:$0xff]
        %v349 = vld [vmem:[%s248 + $0x118] sm:$0xff]
        %v350 = vld [vmem:[%s248 + $0x120] sm:$0xff]
        %v351 = vld [vmem:[%s248 + $0x128] sm:$0xff]
        %v352 = vld [vmem:[%s248 + $0x130] sm:$0xff]
        %v353 = vld [vmem:[%s248 + $0x138] sm:$0xff]
        %v354 = vld [vmem:[%s248 + $0x140] sm:$0xff]
        %v355 = vld [vmem:[%s248 + $0x148] sm:$0xff]
        %v356 = vld [vmem:[%s248 + $0x150] sm:$0xff]
        %v357 = vld [vmem:[%s248 + $0x158] sm:$0xff]
        %v358 = vld [vmem:[%s248 + $0x160] sm:$0xff]
        %v359 = vld [vmem:[%s248 + $0x168] sm:$0xff]
        %v360 = vld [vmem:[%s248 + $0x170] sm:$0xff]
        %v361 = vld [vmem:[%s248 + $0x178] sm:$0xff]
        %v362 = vld [vmem:[%s248 + $0x180] sm:$0xff]
        %v363 = vld [vmem:[%s248 + $0x188] sm:$0xff]
        %v364 = vld [vmem:[%s248 + $0x190] sm:$0xff]
        %v365 = vld [vmem:[%s248 + $0x198] sm:$0xff]
        %v366 = vld [vmem:[%s248 + $0x1a0] sm:$0xff]
        %v367 = vld [vmem:[%s248 + $0x1a8] sm:$0xff]
        %v368 = vld [vmem:[%s248 + $0x1b0] sm:$0xff]
        %v369 = vld [vmem:[%s248 + $0x1b8] sm:$0xff]
        %v370 = vld [vmem:[%s248 + $0x1c0] sm:$0xff]
        %v371 = vld [vmem:[%s248 + $0x1c8] sm:$0xff]
        %v372 = vld [vmem:[%s248 + $0x1d0] sm:$0xff]
        %v373 = vld [vmem:[%s248 + $0x1d8] sm:$0xff]
        %v374 = vld [vmem:[%s248 + $0x1e0] sm:$0xff]
        %v375 = vld [vmem:[%s248 + $0x1e8] sm:$0xff]
        %v376 = vld [vmem:[%s248 + $0x1f0] sm:$0xff]
        %v377 = vld [vmem:[%s248 + $0x1f8] sm:$0xff]
        %v378 = vld [vmem:[%s248 + $0x200] sm:$0xff]
        %v379 = vld [vmem:[%s248 + $0x208] sm:$0xff]
        %v380 = vld [vmem:[%s248 + $0x210] sm:$0xff]
        %v381 = vld [vmem:[%s248 + $0x218] sm:$0xff]
        %v382 = vld [vmem:[%s248 + $0x220] sm:$0xff]
        %v383 = vld [vmem:[%s248 + $0x228] sm:$0xff]
        %v384 = vld [vmem:[%s248 + $0x230] sm:$0xff]
        %v385 = vld [vmem:[%s248 + $0x238] sm:$0xff]
        %v386 = vld [vmem:[%s248 + $0x240] sm:$0xff]
        %v387 = vld [vmem:[%s248 + $0x248] sm:$0xff]
        %v388 = vld [vmem:[%s248 + $0x250] sm:$0xff]
        %v389 = vld [vmem:[%s248 + $0x258] sm:$0xff]
        %v390 = vld [vmem:[%s248 + $0x260] sm:$0xff]
        %v391 = vld [vmem:[%s248 + $0x268] sm:$0xff]
        %v392 = vld [vmem:[%s248 + $0x270] sm:$0xff]
        %v393 = vld [vmem:[%s248 + $0x278] sm:$0xff]
        %v394 = vld [vmem:[%s248 + $0x280] sm:$0xff]
        %v395 = vld [vmem:[%s248 + $0x288] sm:$0xff]
        %v396 = vld [vmem:[%s248 + $0x290] sm:$0xff]
        %v397 = vld [vmem:[%s248 + $0x298] sm:$0xff]
        %v398 = vld [vmem:[%s248 + $0x2a0] sm:$0xff]
        %v399 = vld [vmem:[%s248 + $0x2a8] sm:$0xff]
        %v400 = vld [vmem:[%s248 + $0x2b0] sm:$0xff]
        %v401 = vld [vmem:[%s248 + $0x2b8] sm:$0xff]
        %v402 = vld [vmem:[%s248 + $0x2c0] sm:$0xff]
        %v403 = vld [vmem:[%s248 + $0x2c8] sm:$0xff]
        %v404 = vld [vmem:[%s248 + $0x2d0] sm:$0xff]
        %v405 = vld [vmem:[%s248 + $0x2d8] sm:$0xff]
        %v406 = vld [vmem:[%s248 + $0x2e0] sm:$0xff]
        %v407 = vld [vmem:[%s248 + $0x2e8] sm:$0xff]
        %v408 = vld [vmem:[%s248 + $0x2f0] sm:$0xff]
        %v409 = vld [vmem:[%s248 + $0x2f8] sm:$0xff]
        %v410 = vld [vmem:[%s248 + $0x300] sm:$0xff]
        %v411 = vld [vmem:[%s248 + $0x308] sm:$0xff]
        %v412 = vld [vmem:[%s248 + $0x310] sm:$0xff]
        %v413 = vld [vmem:[%s248 + $0x318] sm:$0xff]
        %v414 = vld [vmem:[%s248 + $0x320] sm:$0xff]
        %v415 = vld [vmem:[%s248 + $0x328] sm:$0xff]
        %v416 = vld [vmem:[%s248 + $0x330] sm:$0xff]
        %v417 = vld [vmem:[%s248 + $0x338] sm:$0xff]
        %v418 = vld [vmem:[%s248 + $0x340] sm:$0xff]
        %v419 = vld [vmem:[%s248 + $0x348] sm:$0xff]
        %v420 = vld [vmem:[%s248 + $0x350] sm:$0xff]
        %v421 = vld [vmem:[%s248 + $0x358] sm:$0xff]
        %v422 = vld [vmem:[%s248 + $0x360] sm:$0xff]
        %v423 = vld [vmem:[%s248 + $0x368] sm:$0xff]
        %v424 = vld [vmem:[%s248 + $0x370] sm:$0xff]
        %v425 = vld [vmem:[%s248 + $0x378] sm:$0xff]
        %v426 = vld [vmem:[%s248 + $0x380] sm:$0xff]
        %v427 = vld [vmem:[%s248 + $0x388] sm:$0xff]
        %v428 = vld [vmem:[%s248 + $0x390] sm:$0xff]
        %v429 = vld [vmem:[%s248 + $0x398] sm:$0xff]
        %v430 = vld [vmem:[%s248 + $0x3a0] sm:$0xff]
        %v431 = vld [vmem:[%s248 + $0x3a8] sm:$0xff]
        %v432 = vld [vmem:[%s248 + $0x3b0] sm:$0xff]
        %v433 = vld [vmem:[%s248 + $0x3b8] sm:$0xff]
        %v434 = vld [vmem:[%s248 + $0x3c0] sm:$0xff]
        %v435 = vld [vmem:[%s248 + $0x3c8] sm:$0xff]
        %v436 = vld [vmem:[%s248 + $0x3d0] sm:$0xff]
        %v437 = vld [vmem:[%s248 + $0x3d8] sm:$0xff]
        %v438 = vld [vmem:[%s248 + $0x3e0] sm:$0xff]
        %v439 = vld [vmem:[%s248 + $0x3e8] sm:$0xff]
        %v440 = vld [vmem:[%s248 + $0x3f0] sm:$0xff]
        %v441 = vld [vmem:[%s248 + $0x3f8] sm:$0xff]
        %v442 = vld [vmem:[%s248 + $0x400] sm:$0xff]
        %v443 = vld [vmem:[%s248 + $0x408] sm:$0xff]
        %v444 = vld [vmem:[%s248 + $0x410] sm:$0xff]
        %v445 = vld [vmem:[%s248 + $0x418] sm:$0xff]
        %v446 = vld [vmem:[%s248 + $0x420] sm:$0xff]
        %v447 = vld [vmem:[%s248 + $0x428] sm:$0xff]
        %v448 = vld [vmem:[%s248 + $0x430] sm:$0xff]
        %v449 = vld [vmem:[%s248 + $0x438] sm:$0xff]
        %v450 = vld [vmem:[%s248 + $0x440] sm:$0xff]
        %v451 = vld [vmem:[%s248 + $0x448] sm:$0xff]
        %v452 = vld [vmem:[%s248 + $0x450] sm:$0xff]
        %v453 = vld [vmem:[%s248 + $0x458] sm:$0xff]
        %v454 = vld [vmem:[%s248 + $0x460] sm:$0xff]
        %v455 = vld [vmem:[%s248 + $0x468] sm:$0xff]
        %v456 = vld [vmem:[%s248 + $0x470] sm:$0xff]
        %v457 = vld [vmem:[%s248 + $0x478] sm:$0xff]
        %v458 = vld [vmem:[%s248 + $0x480] sm:$0xff]
        %v459 = vld [vmem:[%s248 + $0x488] sm:$0xff]
        %v460 = vld [vmem:[%s248 + $0x490] sm:$0xff]
        %v461 = vld [vmem:[%s248 + $0x498] sm:$0xff]
        %v462 = vld [vmem:[%s248 + $0x4a0] sm:$0xff]
        %v463 = vld [vmem:[%s248 + $0x4a8] sm:$0xff]
        %v464 = vld [vmem:[%s248 + $0x4b0] sm:$0xff]
        %v465 = vld [vmem:[%s248 + $0x4b8] sm:$0xff]
        %v466 = vld [vmem:[%s248 + $0x4c0] sm:$0xff]
        %v467 = vld [vmem:[%s248 + $0x4c8] sm:$0xff]
        %v468 = vld [vmem:[%s248 + $0x4d0] sm:$0xff]
        %v469 = vld [vmem:[%s248 + $0x4d8] sm:$0xff]
        %v470 = vld [vmem:[%s248 + $0x4e0] sm:$0xff]
        %v471 = vld [vmem:[%s248 + $0x4e8] sm:$0xff]
        %v472 = vld [vmem:[%s248 + $0x4f0] sm:$0xff]
        %v473 = vld [vmem:[%s248 + $0x4f8] sm:$0xff]
        %v474 = vld [vmem:[%s248 + $0x500] sm:$0xff]
        %v475 = vld [vmem:[%s248 + $0x508] sm:$0xff]
        %v476 = vld [vmem:[%s248 + $0x510] sm:$0xff]
        %v477 = vld [vmem:[%s248 + $0x518] sm:$0xff]
        %v478 = vld [vmem:[%s248 + $0x520] sm:$0xff]
        %v479 = vld [vmem:[%s248 + $0x528] sm:$0xff]
        %v480 = vld [vmem:[%s248 + $0x530] sm:$0xff]
        %v481 = vld [vmem:[%s248 + $0x538] sm:$0xff]
        %v482 = vld [vmem:[%s248 + $0x540] sm:$0xff]
        %v483 = vld [vmem:[%s248 + $0x548] sm:$0xff]
        %v484 = vld [vmem:[%s248 + $0x550] sm:$0xff]
        %v485 = vld [vmem:[%s248 + $0x558] sm:$0xff]
        %v486 = vld [vmem:[%s248 + $0x560] sm:$0xff]
        %v487 = vld [vmem:[%s248 + $0x568] sm:$0xff]
        %v488 = vld [vmem:[%s248 + $0x570] sm:$0xff]
        %v489 = vld [vmem:[%s248 + $0x578] sm:$0xff]
        %v490 = vld [vmem:[%s248 + $0x580] sm:$0xff]
        %v491 = vld [vmem:[%s248 + $0x588] sm:$0xff]
        %v492 = vld [vmem:[%s248 + $0x590] sm:$0xff]
        %v493 = vld [vmem:[%s248 + $0x598] sm:$0xff]
        %v494 = vld [vmem:[%s248 + $0x5a0] sm:$0xff]
        %v495 = vld [vmem:[%s248 + $0x5a8] sm:$0xff]
        %v496 = vld [vmem:[%s248 + $0x5b0] sm:$0xff]
        %v497 = vld [vmem:[%s248 + $0x5b8] sm:$0xff]
        %v498 = vld [vmem:[%s248 + $0x5c0] sm:$0xff]
        %v499 = vld [vmem:[%s248 + $0x5c8] sm:$0xff]
        %v500 = vld [vmem:[%s248 + $0x5d0] sm:$0xff]
        %v501 = vld [vmem:[%s248 + $0x5d8] sm:$0xff]
        %v502 = vld [vmem:[%s248 + $0x5e0] sm:$0xff]
        %v503 = vld [vmem:[%s248 + $0x5e8] sm:$0xff]
        %v504 = vld [vmem:[%s248 + $0x5f0] sm:$0xff]
        %v505 = vld [vmem:[%s248 + $0x5f8] sm:$0xff]
        %v506 = vld [vmem:[%s248 + $0x600] sm:$0xff]
        %v507 = vld [vmem:[%s248 + $0x608] sm:$0xff]
        %v508 = vld [vmem:[%s248 + $0x610] sm:$0xff]
        %v509 = vld [vmem:[%s248 + $0x618] sm:$0xff]
        %v510 = vld [vmem:[%s248 + $0x620] sm:$0xff]
        %v511 = vld [vmem:[%s248 + $0x628] sm:$0xff]
        %v512 = vld [vmem:[%s248 + $0x630] sm:$0xff]
        %v513 = vld [vmem:[%s248 + $0x638] sm:$0xff]
        %v514 = vld [vmem:[%s248 + $0x640] sm:$0xff]
        %v515 = vld [vmem:[%s248 + $0x648] sm:$0xff]
        %v516 = vld [vmem:[%s248 + $0x650] sm:$0xff]
        %v517 = vld [vmem:[%s248 + $0x658] sm:$0xff]
        %v518 = vld [vmem:[%s248 + $0x660] sm:$0xff]
        %v519 = vld [vmem:[%s248 + $0x668] sm:$0xff]
        %v520 = vld [vmem:[%s248 + $0x670] sm:$0xff]
        %v521 = vld [vmem:[%s248 + $0x678] sm:$0xff]
        %v522 = vld [vmem:[%s248 + $0x680] sm:$0xff]
        %v523 = vld [vmem:[%s248 + $0x688] sm:$0xff]
        %v524 = vld [vmem:[%s248 + $0x690] sm:$0xff]
        %v525 = vld [vmem:[%s248 + $0x698] sm:$0xff]
        %v526 = vld [vmem:[%s248 + $0x6a0] sm:$0xff]
        %v527 = vld [vmem:[%s248 + $0x6a8] sm:$0xff]
        %v528 = vld [vmem:[%s248 + $0x6b0] sm:$0xff]
        %v529 = vld [vmem:[%s248 + $0x6b8] sm:$0xff]
        %v530 = vld [vmem:[%s248 + $0x6c0] sm:$0xff]
        %v531 = vld [vmem:[%s248 + $0x6c8] sm:$0xff]
        %v532 = vld [vmem:[%s248 + $0x6d0] sm:$0xff]
        %v533 = vld [vmem:[%s248 + $0x6d8] sm:$0xff]
        %v534 = vld [vmem:[%s248 + $0x6e0] sm:$0xff]
        %v535 = vld [vmem:[%s248 + $0x6e8] sm:$0xff]
        %v536 = vld [vmem:[%s248 + $0x6f0] sm:$0xff]
        %v537 = vld [vmem:[%s248 + $0x6f8] sm:$0xff]
        %v538 = vld [vmem:[%s248 + $0x700] sm:$0xff]
        %v539 = vld [vmem:[%s248 + $0x708] sm:$0xff]
        %v540 = vld [vmem:[%s248 + $0x710] sm:$0xff]
        %v541 = vld [vmem:[%s248 + $0x718] sm:$0xff]
        %v542 = vld [vmem:[%s248 + $0x720] sm:$0xff]
        %v543 = vld [vmem:[%s248 + $0x728] sm:$0xff]
        %v544 = vld [vmem:[%s248 + $0x730] sm:$0xff]
        %v545 = vld [vmem:[%s248 + $0x738] sm:$0xff]
        %v546 = vld [vmem:[%s248 + $0x740] sm:$0xff]
        %v547 = vld [vmem:[%s248 + $0x748] sm:$0xff]
        %v548 = vld [vmem:[%s248 + $0x750] sm:$0xff]
        %v549 = vld [vmem:[%s248 + $0x758] sm:$0xff]
        %v550 = vld [vmem:[%s248 + $0x760] sm:$0xff]
        %v551 = vld [vmem:[%s248 + $0x768] sm:$0xff]
        %v552 = vld [vmem:[%s248 + $0x770] sm:$0xff]
        %v553 = vld [vmem:[%s248 + $0x778] sm:$0xff]
        %v554 = vld [vmem:[%s248 + $0x780] sm:$0xff]
        %v555 = vld [vmem:[%s248 + $0x788] sm:$0xff]
        %v556 = vld [vmem:[%s248 + $0x790] sm:$0xff]
        %v557 = vld [vmem:[%s248 + $0x798] sm:$0xff]
        %v558 = vld [vmem:[%s248 + $0x7a0] sm:$0xff]
        %v559 = vld [vmem:[%s248 + $0x7a8] sm:$0xff]
        %v560 = vld [vmem:[%s248 + $0x7b0] sm:$0xff]
        %v561 = vld [vmem:[%s248 + $0x7b8] sm:$0xff]
        %v562 = vld [vmem:[%s248 + $0x7c0] sm:$0xff]
        %v563 = vld [vmem:[%s248 + $0x7c8] sm:$0xff]
        %v564 = vld [vmem:[%s248 + $0x7d0] sm:$0xff]
        %v565 = vld [vmem:[%s248 + $0x7d8] sm:$0xff]
        %v566 = vld [vmem:[%s248 + $0x7e0] sm:$0xff]
        %v567 = vld [vmem:[%s248 + $0x7e8] sm:$0xff]
        %v568 = vld [vmem:[%s248 + $0x7f0] sm:$0xff]
        %v569 = vld [vmem:[%s248 + $0x7f8] sm:$0xff]
        %v570 = vld [vmem:[%s300] sm:$0xff]
        %v571 = vld [vmem:[%s300 + $0x8] sm:$0xff]
        %v572 = vld [vmem:[%s300 + $0x10] sm:$0xff]
        %v573 = vld [vmem:[%s300 + $0x18] sm:$0xff]
        %v574 = vld [vmem:[%s300 + $0x20] sm:$0xff]
        %v575 = vld [vmem:[%s300 + $0x28] sm:$0xff]
        %v576 = vld [vmem:[%s300 + $0x30] sm:$0xff]
        %v577 = vld [vmem:[%s300 + $0x38] sm:$0xff]
        %v578 = vld [vmem:[%s300 + $0x40] sm:$0xff]
        %v579 = vld [vmem:[%s300 + $0x48] sm:$0xff]
        %v580 = vld [vmem:[%s300 + $0x50] sm:$0xff]
        %v581 = vld [vmem:[%s300 + $0x58] sm:$0xff]
        %v582 = vld [vmem:[%s300 + $0x60] sm:$0xff]
        %v583 = vld [vmem:[%s300 + $0x68] sm:$0xff]
        %v584 = vld [vmem:[%s300 + $0x70] sm:$0xff]
        %v585 = vld [vmem:[%s300 + $0x78] sm:$0xff]
        %v586 = vld [vmem:[%s300 + $0x80] sm:$0xff]
        %v587 = vld [vmem:[%s300 + $0x88] sm:$0xff]
        %v588 = vld [vmem:[%s300 + $0x90] sm:$0xff]
        %v589 = vld [vmem:[%s300 + $0x98] sm:$0xff]
        %v590 = vld [vmem:[%s300 + $0xa0] sm:$0xff]
        %v591 = vld [vmem:[%s300 + $0xa8] sm:$0xff]
        %v592 = vld [vmem:[%s300 + $0xb0] sm:$0xff]
        %v593 = vld [vmem:[%s300 + $0xb8] sm:$0xff]
        %v594 = vld [vmem:[%s300 + $0xc0] sm:$0xff]
        %v595 = vld [vmem:[%s300 + $0xc8] sm:$0xff]
        %v596 = vld [vmem:[%s300 + $0xd0] sm:$0xff]
        %v597 = vld [vmem:[%s300 + $0xd8] sm:$0xff]
        %v598 = vld [vmem:[%s300 + $0xe0] sm:$0xff]
        %v599 = vld [vmem:[%s300 + $0xe8] sm:$0xff]
        %v600 = vld [vmem:[%s300 + $0xf0] sm:$0xff]
        %v601 = vld [vmem:[%s300 + $0xf8] sm:$0xff]
        %v602 = vld [vmem:[%s300 + $0x100] sm:$0xff]
        %v603 = vld [vmem:[%s300 + $0x108] sm:$0xff]
        %v604 = vld [vmem:[%s300 + $0x110] sm:$0xff]
        %v605 = vld [vmem:[%s300 + $0x118] sm:$0xff]
        %v606 = vld [vmem:[%s300 + $0x120] sm:$0xff]
        %v607 = vld [vmem:[%s300 + $0x128] sm:$0xff]
        %v608 = vld [vmem:[%s300 + $0x130] sm:$0xff]
        %v609 = vld [vmem:[%s300 + $0x138] sm:$0xff]
        %v610 = vld [vmem:[%s300 + $0x140] sm:$0xff]
        %v611 = vld [vmem:[%s300 + $0x148] sm:$0xff]
        %v612 = vld [vmem:[%s300 + $0x150] sm:$0xff]
        %v613 = vld [vmem:[%s300 + $0x158] sm:$0xff]
        %v614 = vld [vmem:[%s300 + $0x160] sm:$0xff]
        %v615 = vld [vmem:[%s300 + $0x168] sm:$0xff]
        %v616 = vld [vmem:[%s300 + $0x170] sm:$0xff]
        %v617 = vld [vmem:[%s300 + $0x178] sm:$0xff]
        %v618 = vld [vmem:[%s300 + $0x180] sm:$0xff]
        %v619 = vld [vmem:[%s300 + $0x188] sm:$0xff]
        %v620 = vld [vmem:[%s300 + $0x190] sm:$0xff]
        %v621 = vld [vmem:[%s300 + $0x198] sm:$0xff]
        %v622 = vld [vmem:[%s300 + $0x1a0] sm:$0xff]
        %v623 = vld [vmem:[%s300 + $0x1a8] sm:$0xff]
        %v624 = vld [vmem:[%s300 + $0x1b0] sm:$0xff]
        %v625 = vld [vmem:[%s300 + $0x1b8] sm:$0xff]
        %v626 = vld [vmem:[%s300 + $0x1c0] sm:$0xff]
        %v627 = vld [vmem:[%s300 + $0x1c8] sm:$0xff]
        %v628 = vld [vmem:[%s300 + $0x1d0] sm:$0xff]
        %v629 = vld [vmem:[%s300 + $0x1d8] sm:$0xff]
        %v630 = vld [vmem:[%s300 + $0x1e0] sm:$0xff]
        %v631 = vld [vmem:[%s300 + $0x1e8] sm:$0xff]
        %v632 = vld [vmem:[%s300 + $0x1f0] sm:$0xff]
        %v633 = vld [vmem:[%s300 + $0x1f8] sm:$0xff]
        %v634 = vld [vmem:[%s300 + $0x200] sm:$0xff]
        %v635 = vld [vmem:[%s300 + $0x208] sm:$0xff]
        %v636 = vld [vmem:[%s300 + $0x210] sm:$0xff]
        %v637 = vld [vmem:[%s300 + $0x218] sm:$0xff]
        %v638 = vld [vmem:[%s300 + $0x220] sm:$0xff]
        %v639 = vld [vmem:[%s300 + $0x228] sm:$0xff]
        %v640 = vld [vmem:[%s300 + $0x230] sm:$0xff]
        %v641 = vld [vmem:[%s300 + $0x238] sm:$0xff]
        %v642 = vld [vmem:[%s300 + $0x240] sm:$0xff]
        %v643 = vld [vmem:[%s300 + $0x248] sm:$0xff]
        %v644 = vld [vmem:[%s300 + $0x250] sm:$0xff]
        %v645 = vld [vmem:[%s300 + $0x258] sm:$0xff]
        %v646 = vld [vmem:[%s300 + $0x260] sm:$0xff]
        %v647 = vld [vmem:[%s300 + $0x268] sm:$0xff]
        %v648 = vld [vmem:[%s300 + $0x270] sm:$0xff]
        %v649 = vld [vmem:[%s300 + $0x278] sm:$0xff]
        %v650 = vld [vmem:[%s300 + $0x280] sm:$0xff]
        %v651 = vld [vmem:[%s300 + $0x288] sm:$0xff]
        %v652 = vld [vmem:[%s300 + $0x290] sm:$0xff]
        %v653 = vld [vmem:[%s300 + $0x298] sm:$0xff]
        %v654 = vld [vmem:[%s300 + $0x2a0] sm:$0xff]
        %v655 = vld [vmem:[%s300 + $0x2a8] sm:$0xff]
        %v656 = vld [vmem:[%s300 + $0x2b0] sm:$0xff]
        %v657 = vld [vmem:[%s300 + $0x2b8] sm:$0xff]
        %v658 = vld [vmem:[%s300 + $0x2c0] sm:$0xff]
        %v659 = vld [vmem:[%s300 + $0x2c8] sm:$0xff]
        %v660 = vld [vmem:[%s300 + $0x2d0] sm:$0xff]
        %v661 = vld [vmem:[%s300 + $0x2d8] sm:$0xff]
        %v662 = vld [vmem:[%s300 + $0x2e0] sm:$0xff]
        %v663 = vld [vmem:[%s300 + $0x2e8] sm:$0xff]
        %v664 = vld [vmem:[%s300 + $0x2f0] sm:$0xff]
        %v665 = vld [vmem:[%s300 + $0x2f8] sm:$0xff]
        %v666 = vld [vmem:[%s300 + $0x300] sm:$0xff]
        %v667 = vld [vmem:[%s300 + $0x308] sm:$0xff]
        %v668 = vld [vmem:[%s300 + $0x310] sm:$0xff]
        %v669 = vld [vmem:[%s300 + $0x318] sm:$0xff]
        %v670 = vld [vmem:[%s300 + $0x320] sm:$0xff]
        %v671 = vld [vmem:[%s300 + $0x328] sm:$0xff]
        %v672 = vld [vmem:[%s300 + $0x330] sm:$0xff]
        %v673 = vld [vmem:[%s300 + $0x338] sm:$0xff]
        %v674 = vld [vmem:[%s300 + $0x340] sm:$0xff]
        %v675 = vld [vmem:[%s300 + $0x348] sm:$0xff]
        %v676 = vld [vmem:[%s300 + $0x350] sm:$0xff]
        %v677 = vld [vmem:[%s300 + $0x358] sm:$0xff]
        %v678 = vld [vmem:[%s300 + $0x360] sm:$0xff]
        %v679 = vld [vmem:[%s300 + $0x368] sm:$0xff]
        %v680 = vld [vmem:[%s300 + $0x370] sm:$0xff]
        %v681 = vld [vmem:[%s300 + $0x378] sm:$0xff]
        %v682 = vld [vmem:[%s300 + $0x380] sm:$0xff]
        %v683 = vld [vmem:[%s300 + $0x388] sm:$0xff]
        %v684 = vld [vmem:[%s300 + $0x390] sm:$0xff]
        %v685 = vld [vmem:[%s300 + $0x398] sm:$0xff]
        %v686 = vld [vmem:[%s300 + $0x3a0] sm:$0xff]
        %v687 = vld [vmem:[%s300 + $0x3a8] sm:$0xff]
        %v688 = vld [vmem:[%s300 + $0x3b0] sm:$0xff]
        %v689 = vld [vmem:[%s300 + $0x3b8] sm:$0xff]
        %v690 = vld [vmem:[%s300 + $0x3c0] sm:$0xff]
        %v691 = vld [vmem:[%s300 + $0x3c8] sm:$0xff]
        %v692 = vld [vmem:[%s300 + $0x3d0] sm:$0xff]
        %v693 = vld [vmem:[%s300 + $0x3d8] sm:$0xff]
        %v694 = vld [vmem:[%s300 + $0x3e0] sm:$0xff]
        %v695 = vld [vmem:[%s300 + $0x3e8] sm:$0xff]
        %v696 = vld [vmem:[%s300 + $0x3f0] sm:$0xff]
        %v697 = vld [vmem:[%s300 + $0x3f8] sm:$0xff]
        %v698 = vadd.f32 %v314, %v315
        %699 = vadd.xlane.f32.xlu0 %v698
        %v700 = vpop.xlane.xlu0 %699
        %v701 = vadd.f32 %v316, %v317
        %702 = vadd.xlane.f32.xlu0 %v701
        %v703 = vpop.xlane.xlu0 %702
        %v704 = vadd.f32 %v318, %v319
        %705 = vadd.xlane.f32.xlu0 %v704
        %v706 = vpop.xlane.xlu0 %705
        %v707 = vadd.f32 %v320, %v321
        %708 = vadd.xlane.f32.xlu0 %v707
        %v709 = vpop.xlane.xlu0 %708
        %v710 = vadd.f32 %v322, %v323
        %711 = vadd.xlane.f32.xlu0 %v710
        %v712 = vpop.xlane.xlu0 %711
        %v713 = vadd.f32 %v324, %v325
        %714 = vadd.xlane.f32.xlu0 %v713
        %v715 = vpop.xlane.xlu0 %714
        %v716 = vadd.f32 %v326, %v327
        %717 = vadd.xlane.f32.xlu0 %v716
        %v718 = vpop.xlane.xlu0 %717
        %v719 = vadd.f32 %v328, %v329
        %720 = vadd.xlane.f32.xlu0 %v719
        %v721 = vpop.xlane.xlu0 %720
        %v722 = vadd.f32 %v330, %v331
        %723 = vadd.xlane.f32.xlu0 %v722
        %v724 = vpop.xlane.xlu0 %723
        %v725 = vadd.f32 %v332, %v333
        %726 = vadd.xlane.f32.xlu0 %v725
        %v727 = vpop.xlane.xlu0 %726
        %v728 = vadd.f32 %v334, %v335
        %729 = vadd.xlane.f32.xlu0 %v728
        %v730 = vpop.xlane.xlu0 %729
        %v731 = vadd.f32 %v336, %v337
        %732 = vadd.xlane.f32.xlu0 %v731
        %v733 = vpop.xlane.xlu0 %732
        %v734 = vadd.f32 %v338, %v339
        %735 = vadd.xlane.f32.xlu0 %v734
        %v736 = vpop.xlane.xlu0 %735
        %v737 = vadd.f32 %v340, %v341
        %738 = vadd.xlane.f32.xlu0 %v737
        %v739 = vpop.xlane.xlu0 %738
        %v740 = vadd.f32 %v342, %v343
        %741 = vadd.xlane.f32.xlu0 %v740
        %v742 = vpop.xlane.xlu0 %741
        %v743 = vadd.f32 %v344, %v345
        %744 = vadd.xlane.f32.xlu0 %v743
        %v745 = vpop.xlane.xlu0 %744
        %v746 = vadd.f32 %v346, %v347
        %747 = vadd.xlane.f32.xlu0 %v746
        %v748 = vpop.xlane.xlu0 %747
        %v749 = vadd.f32 %v348, %v349
        %750 = vadd.xlane.f32.xlu0 %v749
        %v751 = vpop.xlane.xlu0 %750
        %v752 = vadd.f32 %v350, %v351
        %753 = vadd.xlane.f32.xlu0 %v752
        %v754 = vpop.xlane.xlu0 %753
        %v755 = vadd.f32 %v352, %v353
        %756 = vadd.xlane.f32.xlu0 %v755
        %v757 = vpop.xlane.xlu0 %756
        %v758 = vadd.f32 %v354, %v355
        %759 = vadd.xlane.f32.xlu0 %v758
        %v760 = vpop.xlane.xlu0 %759
        %v761 = vadd.f32 %v356, %v357
        %762 = vadd.xlane.f32.xlu0 %v761
        %v763 = vpop.xlane.xlu0 %762
        %v764 = vadd.f32 %v358, %v359
        %765 = vadd.xlane.f32.xlu0 %v764
        %v766 = vpop.xlane.xlu0 %765
        %v767 = vadd.f32 %v360, %v361
        %768 = vadd.xlane.f32.xlu0 %v767
        %v769 = vpop.xlane.xlu0 %768
        %v770 = vadd.f32 %v362, %v363
        %771 = vadd.xlane.f32.xlu0 %v770
        %v772 = vpop.xlane.xlu0 %771
        %v773 = vadd.f32 %v364, %v365
        %774 = vadd.xlane.f32.xlu0 %v773
        %v775 = vpop.xlane.xlu0 %774
        %v776 = vadd.f32 %v366, %v367
        %777 = vadd.xlane.f32.xlu0 %v776
        %v778 = vpop.xlane.xlu0 %777
        %v779 = vadd.f32 %v368, %v369
        %780 = vadd.xlane.f32.xlu0 %v779
        %v781 = vpop.xlane.xlu0 %780
        %v782 = vadd.f32 %v370, %v371
        %783 = vadd.xlane.f32.xlu0 %v782
        %v784 = vpop.xlane.xlu0 %783
        %v785 = vadd.f32 %v372, %v373
        %786 = vadd.xlane.f32.xlu0 %v785
        %v787 = vpop.xlane.xlu0 %786
        %v788 = vadd.f32 %v374, %v375
        %789 = vadd.xlane.f32.xlu0 %v788
        %v790 = vpop.xlane.xlu0 %789
        %v791 = vadd.f32 %v376, %v377
        %792 = vadd.xlane.f32.xlu0 %v791
        %v793 = vpop.xlane.xlu0 %792
        %v794 = vadd.f32 %v378, %v379
        %795 = vadd.xlane.f32.xlu0 %v794
        %v796 = vpop.xlane.xlu0 %795
        %v797 = vadd.f32 %v380, %v381
        %798 = vadd.xlane.f32.xlu0 %v797
        %v799 = vpop.xlane.xlu0 %798
        %v800 = vadd.f32 %v382, %v383
        %801 = vadd.xlane.f32.xlu0 %v800
        %v802 = vpop.xlane.xlu0 %801
        %v803 = vadd.f32 %v384, %v385
        %804 = vadd.xlane.f32.xlu0 %v803
        %v805 = vpop.xlane.xlu0 %804
        %v806 = vadd.f32 %v386, %v387
        %807 = vadd.xlane.f32.xlu0 %v806
        %v808 = vpop.xlane.xlu0 %807
        %v809 = vadd.f32 %v388, %v389
        %810 = vadd.xlane.f32.xlu0 %v809
        %v811 = vpop.xlane.xlu0 %810
        %v812 = vadd.f32 %v390, %v391
        %813 = vadd.xlane.f32.xlu0 %v812
        %v814 = vpop.xlane.xlu0 %813
        %v815 = vadd.f32 %v392, %v393
        %816 = vadd.xlane.f32.xlu0 %v815
        %v817 = vpop.xlane.xlu0 %816
        %v818 = vadd.f32 %v394, %v395
        %819 = vadd.xlane.f32.xlu0 %v818
        %v820 = vpop.xlane.xlu0 %819
        %v821 = vadd.f32 %v396, %v397
        %822 = vadd.xlane.f32.xlu0 %v821
        %v823 = vpop.xlane.xlu0 %822
        %v824 = vadd.f32 %v398, %v399
        %825 = vadd.xlane.f32.xlu0 %v824
        %v826 = vpop.xlane.xlu0 %825
        %v827 = vadd.f32 %v400, %v401
        %828 = vadd.xlane.f32.xlu0 %v827
        %v829 = vpop.xlane.xlu0 %828
        %v830 = vadd.f32 %v402, %v403
        %831 = vadd.xlane.f32.xlu0 %v830
        %v832 = vpop.xlane.xlu0 %831
        %v833 = vadd.f32 %v404, %v405
        %834 = vadd.xlane.f32.xlu0 %v833
        %v835 = vpop.xlane.xlu0 %834
        %v836 = vadd.f32 %v406, %v407
        %837 = vadd.xlane.f32.xlu0 %v836
        %v838 = vpop.xlane.xlu0 %837
        %v839 = vadd.f32 %v408, %v409
        %840 = vadd.xlane.f32.xlu0 %v839
        %v841 = vpop.xlane.xlu0 %840
        %v842 = vadd.f32 %v410, %v411
        %843 = vadd.xlane.f32.xlu0 %v842
        %v844 = vpop.xlane.xlu0 %843
        %v845 = vadd.f32 %v412, %v413
        %846 = vadd.xlane.f32.xlu0 %v845
        %v847 = vpop.xlane.xlu0 %846
        %v848 = vadd.f32 %v414, %v415
        %849 = vadd.xlane.f32.xlu0 %v848
        %v850 = vpop.xlane.xlu0 %849
        %v851 = vadd.f32 %v416, %v417
        %852 = vadd.xlane.f32.xlu0 %v851
        %v853 = vpop.xlane.xlu0 %852
        %v854 = vadd.f32 %v418, %v419
        %855 = vadd.xlane.f32.xlu0 %v854
        %v856 = vpop.xlane.xlu0 %855
        %v857 = vadd.f32 %v420, %v421
        %858 = vadd.xlane.f32.xlu0 %v857
        %v859 = vpop.xlane.xlu0 %858
        %v860 = vadd.f32 %v422, %v423
        %861 = vadd.xlane.f32.xlu0 %v860
        %v862 = vpop.xlane.xlu0 %861
        %v863 = vadd.f32 %v424, %v425
        %864 = vadd.xlane.f32.xlu0 %v863
        %v865 = vpop.xlane.xlu0 %864
        %v866 = vadd.f32 %v426, %v427
        %867 = vadd.xlane.f32.xlu0 %v866
        %v868 = vpop.xlane.xlu0 %867
        %v869 = vadd.f32 %v428, %v429
        %870 = vadd.xlane.f32.xlu0 %v869
        %v871 = vpop.xlane.xlu0 %870
        %v872 = vadd.f32 %v430, %v431
        %873 = vadd.xlane.f32.xlu0 %v872
        %v874 = vpop.xlane.xlu0 %873
        %v875 = vadd.f32 %v432, %v433
        %876 = vadd.xlane.f32.xlu0 %v875
        %v877 = vpop.xlane.xlu0 %876
        %v878 = vadd.f32 %v434, %v435
        %879 = vadd.xlane.f32.xlu0 %v878
        %v880 = vpop.xlane.xlu0 %879
        %v881 = vadd.f32 %v436, %v437
        %882 = vadd.xlane.f32.xlu0 %v881
        %v883 = vpop.xlane.xlu0 %882
        %v884 = vadd.f32 %v438, %v439
        %885 = vadd.xlane.f32.xlu0 %v884
        %v886 = vpop.xlane.xlu0 %885
        %v887 = vadd.f32 %v440, %v441
        %888 = vadd.xlane.f32.xlu0 %v887
        %v889 = vpop.xlane.xlu0 %888
        %v890 = vadd.f32 %v442, %v443
        %891 = vadd.xlane.f32.xlu0 %v890
        %v892 = vpop.xlane.xlu0 %891
        %v893 = vadd.f32 %v444, %v445
        %894 = vadd.xlane.f32.xlu0 %v893
        %v895 = vpop.xlane.xlu0 %894
        %v896 = vadd.f32 %v446, %v447
        %897 = vadd.xlane.f32.xlu0 %v896
        %v898 = vpop.xlane.xlu0 %897
        %v899 = vadd.f32 %v448, %v449
        %900 = vadd.xlane.f32.xlu0 %v899
        %v901 = vpop.xlane.xlu0 %900
        %v902 = vadd.f32 %v450, %v451
        %903 = vadd.xlane.f32.xlu0 %v902
        %v904 = vpop.xlane.xlu0 %903
        %v905 = vadd.f32 %v452, %v453
        %906 = vadd.xlane.f32.xlu0 %v905
        %v907 = vpop.xlane.xlu0 %906
        %v908 = vadd.f32 %v454, %v455
        %909 = vadd.xlane.f32.xlu0 %v908
        %v910 = vpop.xlane.xlu0 %909
        %v911 = vadd.f32 %v456, %v457
        %912 = vadd.xlane.f32.xlu0 %v911
        %v913 = vpop.xlane.xlu0 %912
        %v914 = vadd.f32 %v458, %v459
        %915 = vadd.xlane.f32.xlu0 %v914
        %v916 = vpop.xlane.xlu0 %915
        %v917 = vadd.f32 %v460, %v461
        %918 = vadd.xlane.f32.xlu0 %v917
        %v919 = vpop.xlane.xlu0 %918
        %v920 = vadd.f32 %v462, %v463
        %921 = vadd.xlane.f32.xlu0 %v920
        %v922 = vpop.xlane.xlu0 %921
        %v923 = vadd.f32 %v464, %v465
        %924 = vadd.xlane.f32.xlu0 %v923
        %v925 = vpop.xlane.xlu0 %924
        %v926 = vadd.f32 %v466, %v467
        %927 = vadd.xlane.f32.xlu0 %v926
        %v928 = vpop.xlane.xlu0 %927
        %v929 = vadd.f32 %v468, %v469
        %930 = vadd.xlane.f32.xlu0 %v929
        %v931 = vpop.xlane.xlu0 %930
        %v932 = vadd.f32 %v470, %v471
        %933 = vadd.xlane.f32.xlu0 %v932
        %v934 = vpop.xlane.xlu0 %933
        %v935 = vadd.f32 %v472, %v473
        %936 = vadd.xlane.f32.xlu0 %v935
        %v937 = vpop.xlane.xlu0 %936
        %v938 = vadd.f32 %v474, %v475
        %939 = vadd.xlane.f32.xlu0 %v938
        %v940 = vpop.xlane.xlu0 %939
        %v941 = vadd.f32 %v476, %v477
        %942 = vadd.xlane.f32.xlu0 %v941
        %v943 = vpop.xlane.xlu0 %942
        %v944 = vadd.f32 %v478, %v479
        %945 = vadd.xlane.f32.xlu0 %v944
        %v946 = vpop.xlane.xlu0 %945
        %v947 = vadd.f32 %v480, %v481
        %948 = vadd.xlane.f32.xlu0 %v947
        %v949 = vpop.xlane.xlu0 %948
        %v950 = vadd.f32 %v482, %v483
        %951 = vadd.xlane.f32.xlu0 %v950
        %v952 = vpop.xlane.xlu0 %951
        %v953 = vadd.f32 %v484, %v485
        %954 = vadd.xlane.f32.xlu0 %v953
        %v955 = vpop.xlane.xlu0 %954
        %v956 = vadd.f32 %v486, %v487
        %957 = vadd.xlane.f32.xlu0 %v956
        %v958 = vpop.xlane.xlu0 %957
        %v959 = vadd.f32 %v488, %v489
        %960 = vadd.xlane.f32.xlu0 %v959
        %v961 = vpop.xlane.xlu0 %960
        %v962 = vadd.f32 %v490, %v491
        %963 = vadd.xlane.f32.xlu0 %v962
        %v964 = vpop.xlane.xlu0 %963
        %v965 = vadd.f32 %v492, %v493
        %966 = vadd.xlane.f32.xlu0 %v965
        %v967 = vpop.xlane.xlu0 %966
        %v968 = vadd.f32 %v494, %v495
        %969 = vadd.xlane.f32.xlu0 %v968
        %v970 = vpop.xlane.xlu0 %969
        %v971 = vadd.f32 %v496, %v497
        %972 = vadd.xlane.f32.xlu0 %v971
        %v973 = vpop.xlane.xlu0 %972
        %v974 = vadd.f32 %v498, %v499
        %975 = vadd.xlane.f32.xlu0 %v974
        %v976 = vpop.xlane.xlu0 %975
        %v977 = vadd.f32 %v500, %v501
        %978 = vadd.xlane.f32.xlu0 %v977
        %v979 = vpop.xlane.xlu0 %978
        %v980 = vadd.f32 %v502, %v503
        %981 = vadd.xlane.f32.xlu0 %v980
        %v982 = vpop.xlane.xlu0 %981
        %v983 = vadd.f32 %v504, %v505
        %984 = vadd.xlane.f32.xlu0 %v983
        %v985 = vpop.xlane.xlu0 %984
        %v986 = vadd.f32 %v506, %v507
        %987 = vadd.xlane.f32.xlu0 %v986
        %v988 = vpop.xlane.xlu0 %987
        %v989 = vadd.f32 %v508, %v509
        %990 = vadd.xlane.f32.xlu0 %v989
        %v991 = vpop.xlane.xlu0 %990
        %v992 = vadd.f32 %v510, %v511
        %993 = vadd.xlane.f32.xlu0 %v992
        %v994 = vpop.xlane.xlu0 %993
        %v995 = vadd.f32 %v512, %v513
        %996 = vadd.xlane.f32.xlu0 %v995
        %v997 = vpop.xlane.xlu0 %996
        %v998 = vadd.f32 %v514, %v515
        %999 = vadd.xlane.f32.xlu0 %v998
        %v1000 = vpop.xlane.xlu0 %999
        %v1001 = vadd.f32 %v516, %v517
        %1002 = vadd.xlane.f32.xlu0 %v1001
        %v1003 = vpop.xlane.xlu0 %1002
        %v1004 = vadd.f32 %v518, %v519
        %1005 = vadd.xlane.f32.xlu0 %v1004
        %v1006 = vpop.xlane.xlu0 %1005
        %v1007 = vadd.f32 %v520, %v521
        %1008 = vadd.xlane.f32.xlu0 %v1007
        %v1009 = vpop.xlane.xlu0 %1008
        %v1010 = vadd.f32 %v522, %v523
        %1011 = vadd.xlane.f32.xlu0 %v1010
        %v1012 = vpop.xlane.xlu0 %1011
        %v1013 = vadd.f32 %v524, %v525
        %1014 = vadd.xlane.f32.xlu0 %v1013
        %v1015 = vpop.xlane.xlu0 %1014
        %v1016 = vadd.f32 %v526, %v527
        %1017 = vadd.xlane.f32.xlu0 %v1016
        %v1018 = vpop.xlane.xlu0 %1017
        %v1019 = vadd.f32 %v528, %v529
        %1020 = vadd.xlane.f32.xlu0 %v1019
        %v1021 = vpop.xlane.xlu0 %1020
        %v1022 = vadd.f32 %v530, %v531
        %1023 = vadd.xlane.f32.xlu0 %v1022
        %v1024 = vpop.xlane.xlu0 %1023
        %v1025 = vadd.f32 %v532, %v533
        %1026 = vadd.xlane.f32.xlu0 %v1025
        %v1027 = vpop.xlane.xlu0 %1026
        %v1028 = vadd.f32 %v534, %v535
        %1029 = vadd.xlane.f32.xlu0 %v1028
        %v1030 = vpop.xlane.xlu0 %1029
        %v1031 = vadd.f32 %v536, %v537
        %1032 = vadd.xlane.f32.xlu0 %v1031
        %v1033 = vpop.xlane.xlu0 %1032
        %v1034 = vadd.f32 %v538, %v539
        %1035 = vadd.xlane.f32.xlu0 %v1034
        %v1036 = vpop.xlane.xlu0 %1035
        %v1037 = vadd.f32 %v540, %v541
        %1038 = vadd.xlane.f32.xlu0 %v1037
        %v1039 = vpop.xlane.xlu0 %1038
        %v1040 = vadd.f32 %v542, %v543
        %1041 = vadd.xlane.f32.xlu0 %v1040
        %v1042 = vpop.xlane.xlu0 %1041
        %v1043 = vadd.f32 %v544, %v545
        %1044 = vadd.xlane.f32.xlu0 %v1043
        %v1045 = vpop.xlane.xlu0 %1044
        %v1046 = vadd.f32 %v546, %v547
        %1047 = vadd.xlane.f32.xlu0 %v1046
        %v1048 = vpop.xlane.xlu0 %1047
        %v1049 = vadd.f32 %v548, %v549
        %1050 = vadd.xlane.f32.xlu0 %v1049
        %v1051 = vpop.xlane.xlu0 %1050
        %v1052 = vadd.f32 %v550, %v551
        %1053 = vadd.xlane.f32.xlu0 %v1052
        %v1054 = vpop.xlane.xlu0 %1053
        %v1055 = vadd.f32 %v552, %v553
        %1056 = vadd.xlane.f32.xlu0 %v1055
        %v1057 = vpop.xlane.xlu0 %1056
        %v1058 = vadd.f32 %v554, %v555
        %1059 = vadd.xlane.f32.xlu0 %v1058
        %v1060 = vpop.xlane.xlu0 %1059
        %v1061 = vadd.f32 %v556, %v557
        %1062 = vadd.xlane.f32.xlu0 %v1061
        %v1063 = vpop.xlane.xlu0 %1062
        %v1064 = vadd.f32 %v558, %v559
        %1065 = vadd.xlane.f32.xlu0 %v1064
        %v1066 = vpop.xlane.xlu0 %1065
        %v1067 = vadd.f32 %v560, %v561
        %1068 = vadd.xlane.f32.xlu0 %v1067
        %v1069 = vpop.xlane.xlu0 %1068
        %v1070 = vadd.f32 %v562, %v563
        %1071 = vadd.xlane.f32.xlu0 %v1070
        %v1072 = vpop.xlane.xlu0 %1071
        %v1073 = vadd.f32 %v564, %v565
        %1074 = vadd.xlane.f32.xlu0 %v1073
        %v1075 = vpop.xlane.xlu0 %1074
        %v1076 = vadd.f32 %v566, %v567
        %1077 = vadd.xlane.f32.xlu0 %v1076
        %v1078 = vpop.xlane.xlu0 %1077
        %v1079 = vadd.f32 %v568, %v569
        %1080 = vadd.xlane.f32.xlu0 %v1079
        %v1081 = vpop.xlane.xlu0 %1080
        %v1082 = vrcp.pop 256.0
        %v1083 = vmul.f32 %v700, %v1082
        %v1084 = vmul.f32 %v703, %v1082
        %v1085 = vmul.f32 %v706, %v1082
        %v1086 = vmul.f32 %v709, %v1082
        %v1087 = vmul.f32 %v712, %v1082
        %v1088 = vmul.f32 %v715, %v1082
        %v1089 = vmul.f32 %v718, %v1082
        %v1090 = vmul.f32 %v721, %v1082
        %v1091 = vmul.f32 %v724, %v1082
        %v1092 = vmul.f32 %v727, %v1082
        %v1093 = vmul.f32 %v730, %v1082
        %v1094 = vmul.f32 %v733, %v1082
        %v1095 = vmul.f32 %v736, %v1082
        %v1096 = vmul.f32 %v739, %v1082
        %v1097 = vmul.f32 %v742, %v1082
        %v1098 = vmul.f32 %v745, %v1082
        %v1099 = vmul.f32 %v748, %v1082
        %v1100 = vmul.f32 %v751, %v1082
        %v1101 = vmul.f32 %v754, %v1082
        %v1102 = vmul.f32 %v757, %v1082
        %v1103 = vmul.f32 %v760, %v1082
        %v1104 = vmul.f32 %v763, %v1082
        %v1105 = vmul.f32 %v766, %v1082
        %v1106 = vmul.f32 %v769, %v1082
        %v1107 = vmul.f32 %v772, %v1082
        %v1108 = vmul.f32 %v775, %v1082
        %v1109 = vmul.f32 %v778, %v1082
        %v1110 = vmul.f32 %v781, %v1082
        %v1111 = vmul.f32 %v784, %v1082
        %v1112 = vmul.f32 %v787, %v1082
        %v1113 = vmul.f32 %v790, %v1082
        %v1114 = vmul.f32 %v793, %v1082
        %v1115 = vmul.f32 %v796, %v1082
        %v1116 = vmul.f32 %v799, %v1082
        %v1117 = vmul.f32 %v802, %v1082
        %v1118 = vmul.f32 %v805, %v1082
        %v1119 = vmul.f32 %v808, %v1082
        %v1120 = vmul.f32 %v811, %v1082
        %v1121 = vmul.f32 %v814, %v1082
        %v1122 = vmul.f32 %v817, %v1082
        %v1123 = vmul.f32 %v820, %v1082
        %v1124 = vmul.f32 %v823, %v1082
        %v1125 = vmul.f32 %v826, %v1082
        %v1126 = vmul.f32 %v829, %v1082
        %v1127 = vmul.f32 %v832, %v1082
        %v1128 = vmul.f32 %v835, %v1082
        %v1129 = vmul.f32 %v838, %v1082
        %v1130 = vmul.f32 %v841, %v1082
        %v1131 = vmul.f32 %v844, %v1082
        %v1132 = vmul.f32 %v847, %v1082
        %v1133 = vmul.f32 %v850, %v1082
        %v1134 = vmul.f32 %v853, %v1082
        %v1135 = vmul.f32 %v856, %v1082
        %v1136 = vmul.f32 %v859, %v1082
        %v1137 = vmul.f32 %v862, %v1082
        %v1138 = vmul.f32 %v865, %v1082
        %v1139 = vmul.f32 %v868, %v1082
        %v1140 = vmul.f32 %v871, %v1082
        %v1141 = vmul.f32 %v874, %v1082
        %v1142 = vmul.f32 %v877, %v1082
        %v1143 = vmul.f32 %v880, %v1082
        %v1144 = vmul.f32 %v883, %v1082
        %v1145 = vmul.f32 %v886, %v1082
        %v1146 = vmul.f32 %v889, %v1082
        %v1147 = vmul.f32 %v892, %v1082
        %v1148 = vmul.f32 %v895, %v1082
        %v1149 = vmul.f32 %v898, %v1082
        %v1150 = vmul.f32 %v901, %v1082
        %v1151 = vmul.f32 %v904, %v1082
        %v1152 = vmul.f32 %v907, %v1082
        %v1153 = vmul.f32 %v910, %v1082
        %v1154 = vmul.f32 %v913, %v1082
        %v1155 = vmul.f32 %v916, %v1082
        %v1156 = vmul.f32 %v919, %v1082
        %v1157 = vmul.f32 %v922, %v1082
        %v1158 = vmul.f32 %v925, %v1082
        %v1159 = vmul.f32 %v928, %v1082
        %v1160 = vmul.f32 %v931, %v1082
        %v1161 = vmul.f32 %v934, %v1082
        %v1162 = vmul.f32 %v937, %v1082
        %v1163 = vmul.f32 %v940, %v1082
        %v1164 = vmul.f32 %v943, %v1082
        %v1165 = vmul.f32 %v946, %v1082
        %v1166 = vmul.f32 %v949, %v1082
        %v1167 = vmul.f32 %v952, %v1082
        %v1168 = vmul.f32 %v955, %v1082
        %v1169 = vmul.f32 %v958, %v1082
        %v1170 = vmul.f32 %v961, %v1082
        %v1171 = vmul.f32 %v964, %v1082
        %v1172 = vmul.f32 %v967, %v1082
        %v1173 = vmul.f32 %v970, %v1082
        %v1174 = vmul.f32 %v973, %v1082
        %v1175 = vmul.f32 %v976, %v1082
        %v1176 = vmul.f32 %v979, %v1082
        %v1177 = vmul.f32 %v982, %v1082
        %v1178 = vmul.f32 %v985, %v1082
        %v1179 = vmul.f32 %v988, %v1082
        %v1180 = vmul.f32 %v991, %v1082
        %v1181 = vmul.f32 %v994, %v1082
        %v1182 = vmul.f32 %v997, %v1082
        %v1183 = vmul.f32 %v1000, %v1082
        %v1184 = vmul.f32 %v1003, %v1082
        %v1185 = vmul.f32 %v1006, %v1082
        %v1186 = vmul.f32 %v1009, %v1082
        %v1187 = vmul.f32 %v1012, %v1082
        %v1188 = vmul.f32 %v1015, %v1082
        %v1189 = vmul.f32 %v1018, %v1082
        %v1190 = vmul.f32 %v1021, %v1082
        %v1191 = vmul.f32 %v1024, %v1082
        %v1192 = vmul.f32 %v1027, %v1082
        %v1193 = vmul.f32 %v1030, %v1082
        %v1194 = vmul.f32 %v1033, %v1082
        %v1195 = vmul.f32 %v1036, %v1082
        %v1196 = vmul.f32 %v1039, %v1082
        %v1197 = vmul.f32 %v1042, %v1082
        %v1198 = vmul.f32 %v1045, %v1082
        %v1199 = vmul.f32 %v1048, %v1082
        %v1200 = vmul.f32 %v1051, %v1082
        %v1201 = vmul.f32 %v1054, %v1082
        %v1202 = vmul.f32 %v1057, %v1082
        %v1203 = vmul.f32 %v1060, %v1082
        %v1204 = vmul.f32 %v1063, %v1082
        %v1205 = vmul.f32 %v1066, %v1082
        %v1206 = vmul.f32 %v1069, %v1082
        %v1207 = vmul.f32 %v1072, %v1082
        %v1208 = vmul.f32 %v1075, %v1082
        %v1209 = vmul.f32 %v1078, %v1082
        %v1210 = vmul.f32 %v1081, %v1082
        %v1211 = vadd.f32 %v1083, %v570
        %v1212 = vadd.f32 %v1084, %v571
        %v1213 = vadd.f32 %v1085, %v572
        %v1214 = vadd.f32 %v1086, %v573
        %v1215 = vadd.f32 %v1087, %v574
        %v1216 = vadd.f32 %v1088, %v575
        %v1217 = vadd.f32 %v1089, %v576
        %v1218 = vadd.f32 %v1090, %v577
        %v1219 = vadd.f32 %v1091, %v578
        %v1220 = vadd.f32 %v1092, %v579
        %v1221 = vadd.f32 %v1093, %v580
        %v1222 = vadd.f32 %v1094, %v581
        %v1223 = vadd.f32 %v1095, %v582
        %v1224 = vadd.f32 %v1096, %v583
        %v1225 = vadd.f32 %v1097, %v584
        %v1226 = vadd.f32 %v1098, %v585
        %v1227 = vadd.f32 %v1099, %v586
        %v1228 = vadd.f32 %v1100, %v587
        %v1229 = vadd.f32 %v1101, %v588
        %v1230 = vadd.f32 %v1102, %v589
        %v1231 = vadd.f32 %v1103, %v590
        %v1232 = vadd.f32 %v1104, %v591
        %v1233 = vadd.f32 %v1105, %v592
        %v1234 = vadd.f32 %v1106, %v593
        %v1235 = vadd.f32 %v1107, %v594
        %v1236 = vadd.f32 %v1108, %v595
        %v1237 = vadd.f32 %v1109, %v596
        %v1238 = vadd.f32 %v1110, %v597
        %v1239 = vadd.f32 %v1111, %v598
        %v1240 = vadd.f32 %v1112, %v599
        %v1241 = vadd.f32 %v1113, %v600
        %v1242 = vadd.f32 %v1114, %v601
        %v1243 = vadd.f32 %v1115, %v602
        %v1244 = vadd.f32 %v1116, %v603
        %v1245 = vadd.f32 %v1117, %v604
        %v1246 = vadd.f32 %v1118, %v605
        %v1247 = vadd.f32 %v1119, %v606
        %v1248 = vadd.f32 %v1120, %v607
        %v1249 = vadd.f32 %v1121, %v608
        %v1250 = vadd.f32 %v1122, %v609
        %v1251 = vadd.f32 %v1123, %v610
        %v1252 = vadd.f32 %v1124, %v611
        %v1253 = vadd.f32 %v1125, %v612
        %v1254 = vadd.f32 %v1126, %v613
        %v1255 = vadd.f32 %v1127, %v614
        %v1256 = vadd.f32 %v1128, %v615
        %v1257 = vadd.f32 %v1129, %v616
        %v1258 = vadd.f32 %v1130, %v617
        %v1259 = vadd.f32 %v1131, %v618
        %v1260 = vadd.f32 %v1132, %v619
        %v1261 = vadd.f32 %v1133, %v620
        %v1262 = vadd.f32 %v1134, %v621
        %v1263 = vadd.f32 %v1135, %v622
        %v1264 = vadd.f32 %v1136, %v623
        %v1265 = vadd.f32 %v1137, %v624
        %v1266 = vadd.f32 %v1138, %v625
        %v1267 = vadd.f32 %v1139, %v626
        %v1268 = vadd.f32 %v1140, %v627
        %v1269 = vadd.f32 %v1141, %v628
        %v1270 = vadd.f32 %v1142, %v629
        %v1271 = vadd.f32 %v1143, %v630
        %v1272 = vadd.f32 %v1144, %v631
        %v1273 = vadd.f32 %v1145, %v632
        %v1274 = vadd.f32 %v1146, %v633
        %v1275 = vadd.f32 %v1147, %v634
        %v1276 = vadd.f32 %v1148, %v635
        %v1277 = vadd.f32 %v1149, %v636
        %v1278 = vadd.f32 %v1150, %v637
        %v1279 = vadd.f32 %v1151, %v638
        %v1280 = vadd.f32 %v1152, %v639
        %v1281 = vadd.f32 %v1153, %v640
        %v1282 = vadd.f32 %v1154, %v641
        %v1283 = vadd.f32 %v1155, %v642
        %v1284 = vadd.f32 %v1156, %v643
        %v1285 = vadd.f32 %v1157, %v644
        %v1286 = vadd.f32 %v1158, %v645
        %v1287 = vadd.f32 %v1159, %v646
        %v1288 = vadd.f32 %v1160, %v647
        %v1289 = vadd.f32 %v1161, %v648
        %v1290 = vadd.f32 %v1162, %v649
        %v1291 = vadd.f32 %v1163, %v650
        %v1292 = vadd.f32 %v1164, %v651
        %v1293 = vadd.f32 %v1165, %v652
        %v1294 = vadd.f32 %v1166, %v653
        %v1295 = vadd.f32 %v1167, %v654
        %v1296 = vadd.f32 %v1168, %v655
        %v1297 = vadd.f32 %v1169, %v656
        %v1298 = vadd.f32 %v1170, %v657
        %v1299 = vadd.f32 %v1171, %v658
        %v1300 = vadd.f32 %v1172, %v659
        %v1301 = vadd.f32 %v1173, %v660
        %v1302 = vadd.f32 %v1174, %v661
        %v1303 = vadd.f32 %v1175, %v662
        %v1304 = vadd.f32 %v1176, %v663
        %v1305 = vadd.f32 %v1177, %v664
        %v1306 = vadd.f32 %v1178, %v665
        %v1307 = vadd.f32 %v1179, %v666
        %v1308 = vadd.f32 %v1180, %v667
        %v1309 = vadd.f32 %v1181, %v668
        %v1310 = vadd.f32 %v1182, %v669
        %v1311 = vadd.f32 %v1183, %v670
        %v1312 = vadd.f32 %v1184, %v671
        %v1313 = vadd.f32 %v1185, %v672
        %v1314 = vadd.f32 %v1186, %v673
        %v1315 = vadd.f32 %v1187, %v674
        %v1316 = vadd.f32 %v1188, %v675
        %v1317 = vadd.f32 %v1189, %v676
        %v1318 = vadd.f32 %v1190, %v677
        %v1319 = vadd.f32 %v1191, %v678
        %v1320 = vadd.f32 %v1192, %v679
        %v1321 = vadd.f32 %v1193, %v680
        %v1322 = vadd.f32 %v1194, %v681
        %v1323 = vadd.f32 %v1195, %v682
        %v1324 = vadd.f32 %v1196, %v683
        %v1325 = vadd.f32 %v1197, %v684
        %v1326 = vadd.f32 %v1198, %v685
        %v1327 = vadd.f32 %v1199, %v686
        %v1328 = vadd.f32 %v1200, %v687
        %v1329 = vadd.f32 %v1201, %v688
        %v1330 = vadd.f32 %v1202, %v689
        %v1331 = vadd.f32 %v1203, %v690
        %v1332 = vadd.f32 %v1204, %v691
        %v1333 = vadd.f32 %v1205, %v692
        %v1334 = vadd.f32 %v1206, %v693
        %v1335 = vadd.f32 %v1207, %v694
        %v1336 = vadd.f32 %v1208, %v695
        %v1337 = vadd.f32 %v1209, %v696
        %v1338 = vadd.f32 %v1210, %v697
        %1340 = vset.pattern.permute.xlu0 0
        %1341 = vperm.xlu0 %1340, %v1211
        %v1342 = vpop.permute.xlu0 %1341
        %1345 = vset.pattern.permute.xlu0 0
        %1346 = vperm.xlu0 %1345, %v1212
        %v1347 = vpop.permute.xlu0 %1346
        %1350 = vset.pattern.permute.xlu0 0
        %1351 = vperm.xlu0 %1350, %v1213
        %v1352 = vpop.permute.xlu0 %1351
        %1355 = vset.pattern.permute.xlu0 0
        %1356 = vperm.xlu0 %1355, %v1214
        %v1357 = vpop.permute.xlu0 %1356
        %1360 = vset.pattern.permute.xlu0 0
        %1361 = vperm.xlu0 %1360, %v1215
        %v1362 = vpop.permute.xlu0 %1361
        %1365 = vset.pattern.permute.xlu0 0
        %1366 = vperm.xlu0 %1365, %v1216
        %v1367 = vpop.permute.xlu0 %1366
        %1370 = vset.pattern.permute.xlu0 0
        %1371 = vperm.xlu0 %1370, %v1217
        %v1372 = vpop.permute.xlu0 %1371
        %1375 = vset.pattern.permute.xlu0 0
        %1376 = vperm.xlu0 %1375, %v1218
        %v1377 = vpop.permute.xlu0 %1376
        %1380 = vset.pattern.permute.xlu0 0
        %1381 = vperm.xlu0 %1380, %v1219
        %v1382 = vpop.permute.xlu0 %1381
        %1385 = vset.pattern.permute.xlu0 0
        %1386 = vperm.xlu0 %1385, %v1220
        %v1387 = vpop.permute.xlu0 %1386
        %1390 = vset.pattern.permute.xlu0 0
        %1391 = vperm.xlu0 %1390, %v1221
        %v1392 = vpop.permute.xlu0 %1391
        %1395 = vset.pattern.permute.xlu0 0
        %1396 = vperm.xlu0 %1395, %v1222
        %v1397 = vpop.permute.xlu0 %1396
        %1400 = vset.pattern.permute.xlu0 0
        %1401 = vperm.xlu0 %1400, %v1223
        %v1402 = vpop.permute.xlu0 %1401
        %1405 = vset.pattern.permute.xlu0 0
        %1406 = vperm.xlu0 %1405, %v1224
        %v1407 = vpop.permute.xlu0 %1406
        %1410 = vset.pattern.permute.xlu0 0
        %1411 = vperm.xlu0 %1410, %v1225
        %v1412 = vpop.permute.xlu0 %1411
        %1415 = vset.pattern.permute.xlu0 0
        %1416 = vperm.xlu0 %1415, %v1226
        %v1417 = vpop.permute.xlu0 %1416
        %1420 = vset.pattern.permute.xlu0 0
        %1421 = vperm.xlu0 %1420, %v1227
        %v1422 = vpop.permute.xlu0 %1421
        %1425 = vset.pattern.permute.xlu0 0
        %1426 = vperm.xlu0 %1425, %v1228
        %v1427 = vpop.permute.xlu0 %1426
        %1430 = vset.pattern.permute.xlu0 0
        %1431 = vperm.xlu0 %1430, %v1229
        %v1432 = vpop.permute.xlu0 %1431
        %1435 = vset.pattern.permute.xlu0 0
        %1436 = vperm.xlu0 %1435, %v1230
        %v1437 = vpop.permute.xlu0 %1436
        %1440 = vset.pattern.permute.xlu0 0
        %1441 = vperm.xlu0 %1440, %v1231
        %v1442 = vpop.permute.xlu0 %1441
        %1445 = vset.pattern.permute.xlu0 0
        %1446 = vperm.xlu0 %1445, %v1232
        %v1447 = vpop.permute.xlu0 %1446
        %1450 = vset.pattern.permute.xlu0 0
        %1451 = vperm.xlu0 %1450, %v1233
        %v1452 = vpop.permute.xlu0 %1451
        %1455 = vset.pattern.permute.xlu0 0
        %1456 = vperm.xlu0 %1455, %v1234
        %v1457 = vpop.permute.xlu0 %1456
        %1460 = vset.pattern.permute.xlu0 0
        %1461 = vperm.xlu0 %1460, %v1235
        %v1462 = vpop.permute.xlu0 %1461
        %1465 = vset.pattern.permute.xlu0 0
        %1466 = vperm.xlu0 %1465, %v1236
        %v1467 = vpop.permute.xlu0 %1466
        %1470 = vset.pattern.permute.xlu0 0
        %1471 = vperm.xlu0 %1470, %v1237
        %v1472 = vpop.permute.xlu0 %1471
        %1475 = vset.pattern.permute.xlu0 0
        %1476 = vperm.xlu0 %1475, %v1238
        %v1477 = vpop.permute.xlu0 %1476
        %1480 = vset.pattern.permute.xlu0 0
        %1481 = vperm.xlu0 %1480, %v1239
        %v1482 = vpop.permute.xlu0 %1481
        %1485 = vset.pattern.permute.xlu0 0
        %1486 = vperm.xlu0 %1485, %v1240
        %v1487 = vpop.permute.xlu0 %1486
        %1490 = vset.pattern.permute.xlu0 0
        %1491 = vperm.xlu0 %1490, %v1241
        %v1492 = vpop.permute.xlu0 %1491
        %1495 = vset.pattern.permute.xlu0 0
        %1496 = vperm.xlu0 %1495, %v1242
        %v1497 = vpop.permute.xlu0 %1496
        %1500 = vset.pattern.permute.xlu0 0
        %1501 = vperm.xlu0 %1500, %v1243
        %v1502 = vpop.permute.xlu0 %1501
        %1505 = vset.pattern.permute.xlu0 0
        %1506 = vperm.xlu0 %1505, %v1244
        %v1507 = vpop.permute.xlu0 %1506
        %1510 = vset.pattern.permute.xlu0 0
        %1511 = vperm.xlu0 %1510, %v1245
        %v1512 = vpop.permute.xlu0 %1511
        %1515 = vset.pattern.permute.xlu0 0
        %1516 = vperm.xlu0 %1515, %v1246
        %v1517 = vpop.permute.xlu0 %1516
        %1520 = vset.pattern.permute.xlu0 0
        %1521 = vperm.xlu0 %1520, %v1247
        %v1522 = vpop.permute.xlu0 %1521
        %1525 = vset.pattern.permute.xlu0 0
        %1526 = vperm.xlu0 %1525, %v1248
        %v1527 = vpop.permute.xlu0 %1526
        %1530 = vset.pattern.permute.xlu0 0
        %1531 = vperm.xlu0 %1530, %v1249
        %v1532 = vpop.permute.xlu0 %1531
        %1535 = vset.pattern.permute.xlu0 0
        %1536 = vperm.xlu0 %1535, %v1250
        %v1537 = vpop.permute.xlu0 %1536
        %1540 = vset.pattern.permute.xlu0 0
        %1541 = vperm.xlu0 %1540, %v1251
        %v1542 = vpop.permute.xlu0 %1541
        %1545 = vset.pattern.permute.xlu0 0
        %1546 = vperm.xlu0 %1545, %v1252
        %v1547 = vpop.permute.xlu0 %1546
        %1550 = vset.pattern.permute.xlu0 0
        %1551 = vperm.xlu0 %1550, %v1253
        %v1552 = vpop.permute.xlu0 %1551
        %1555 = vset.pattern.permute.xlu0 0
        %1556 = vperm.xlu0 %1555, %v1254
        %v1557 = vpop.permute.xlu0 %1556
        %1560 = vset.pattern.permute.xlu0 0
        %1561 = vperm.xlu0 %1560, %v1255
        %v1562 = vpop.permute.xlu0 %1561
        %1565 = vset.pattern.permute.xlu0 0
        %1566 = vperm.xlu0 %1565, %v1256
        %v1567 = vpop.permute.xlu0 %1566
        %1570 = vset.pattern.permute.xlu0 0
        %1571 = vperm.xlu0 %1570, %v1257
        %v1572 = vpop.permute.xlu0 %1571
        %1575 = vset.pattern.permute.xlu0 0
        %1576 = vperm.xlu0 %1575, %v1258
        %v1577 = vpop.permute.xlu0 %1576
        %1580 = vset.pattern.permute.xlu0 0
        %1581 = vperm.xlu0 %1580, %v1259
        %v1582 = vpop.permute.xlu0 %1581
        %1585 = vset.pattern.permute.xlu0 0
        %1586 = vperm.xlu0 %1585, %v1260
        %v1587 = vpop.permute.xlu0 %1586
        %1590 = vset.pattern.permute.xlu0 0
        %1591 = vperm.xlu0 %1590, %v1261
        %v1592 = vpop.permute.xlu0 %1591
        %1595 = vset.pattern.permute.xlu0 0
        %1596 = vperm.xlu0 %1595, %v1262
        %v1597 = vpop.permute.xlu0 %1596
        %1600 = vset.pattern.permute.xlu0 0
        %1601 = vperm.xlu0 %1600, %v1263
        %v1602 = vpop.permute.xlu0 %1601
        %1605 = vset.pattern.permute.xlu0 0
        %1606 = vperm.xlu0 %1605, %v1264
        %v1607 = vpop.permute.xlu0 %1606
        %1610 = vset.pattern.permute.xlu0 0
        %1611 = vperm.xlu0 %1610, %v1265
        %v1612 = vpop.permute.xlu0 %1611
        %1615 = vset.pattern.permute.xlu0 0
        %1616 = vperm.xlu0 %1615, %v1266
        %v1617 = vpop.permute.xlu0 %1616
        %1620 = vset.pattern.permute.xlu0 0
        %1621 = vperm.xlu0 %1620, %v1267
        %v1622 = vpop.permute.xlu0 %1621
        %1625 = vset.pattern.permute.xlu0 0
        %1626 = vperm.xlu0 %1625, %v1268
        %v1627 = vpop.permute.xlu0 %1626
        %1630 = vset.pattern.permute.xlu0 0
        %1631 = vperm.xlu0 %1630, %v1269
        %v1632 = vpop.permute.xlu0 %1631
        %1635 = vset.pattern.permute.xlu0 0
        %1636 = vperm.xlu0 %1635, %v1270
        %v1637 = vpop.permute.xlu0 %1636
        %1640 = vset.pattern.permute.xlu0 0
        %1641 = vperm.xlu0 %1640, %v1271
        %v1642 = vpop.permute.xlu0 %1641
        %1645 = vset.pattern.permute.xlu0 0
        %1646 = vperm.xlu0 %1645, %v1272
        %v1647 = vpop.permute.xlu0 %1646
        %1650 = vset.pattern.permute.xlu0 0
        %1651 = vperm.xlu0 %1650, %v1273
        %v1652 = vpop.permute.xlu0 %1651
        %1655 = vset.pattern.permute.xlu0 0
        %1656 = vperm.xlu0 %1655, %v1274
        %v1657 = vpop.permute.xlu0 %1656
        %1660 = vset.pattern.permute.xlu0 0
        %1661 = vperm.xlu0 %1660, %v1275
        %v1662 = vpop.permute.xlu0 %1661
        %1665 = vset.pattern.permute.xlu0 0
        %1666 = vperm.xlu0 %1665, %v1276
        %v1667 = vpop.permute.xlu0 %1666
        %1670 = vset.pattern.permute.xlu0 0
        %1671 = vperm.xlu0 %1670, %v1277
        %v1672 = vpop.permute.xlu0 %1671
        %1675 = vset.pattern.permute.xlu0 0
        %1676 = vperm.xlu0 %1675, %v1278
        %v1677 = vpop.permute.xlu0 %1676
        %1680 = vset.pattern.permute.xlu0 0
        %1681 = vperm.xlu0 %1680, %v1279
        %v1682 = vpop.permute.xlu0 %1681
        %1685 = vset.pattern.permute.xlu0 0
        %1686 = vperm.xlu0 %1685, %v1280
        %v1687 = vpop.permute.xlu0 %1686
        %1690 = vset.pattern.permute.xlu0 0
        %1691 = vperm.xlu0 %1690, %v1281
        %v1692 = vpop.permute.xlu0 %1691
        %1695 = vset.pattern.permute.xlu0 0
        %1696 = vperm.xlu0 %1695, %v1282
        %v1697 = vpop.permute.xlu0 %1696
        %1700 = vset.pattern.permute.xlu0 0
        %1701 = vperm.xlu0 %1700, %v1283
        %v1702 = vpop.permute.xlu0 %1701
        %1705 = vset.pattern.permute.xlu0 0
        %1706 = vperm.xlu0 %1705, %v1284
        %v1707 = vpop.permute.xlu0 %1706
        %1710 = vset.pattern.permute.xlu0 0
        %1711 = vperm.xlu0 %1710, %v1285
        %v1712 = vpop.permute.xlu0 %1711
        %1715 = vset.pattern.permute.xlu0 0
        %1716 = vperm.xlu0 %1715, %v1286
        %v1717 = vpop.permute.xlu0 %1716
        %1720 = vset.pattern.permute.xlu0 0
        %1721 = vperm.xlu0 %1720, %v1287
        %v1722 = vpop.permute.xlu0 %1721
        %1725 = vset.pattern.permute.xlu0 0
        %1726 = vperm.xlu0 %1725, %v1288
        %v1727 = vpop.permute.xlu0 %1726
        %1730 = vset.pattern.permute.xlu0 0
        %1731 = vperm.xlu0 %1730, %v1289
        %v1732 = vpop.permute.xlu0 %1731
        %1735 = vset.pattern.permute.xlu0 0
        %1736 = vperm.xlu0 %1735, %v1290
        %v1737 = vpop.permute.xlu0 %1736
        %1740 = vset.pattern.permute.xlu0 0
        %1741 = vperm.xlu0 %1740, %v1291
        %v1742 = vpop.permute.xlu0 %1741
        %1745 = vset.pattern.permute.xlu0 0
        %1746 = vperm.xlu0 %1745, %v1292
        %v1747 = vpop.permute.xlu0 %1746
        %1750 = vset.pattern.permute.xlu0 0
        %1751 = vperm.xlu0 %1750, %v1293
        %v1752 = vpop.permute.xlu0 %1751
        %1755 = vset.pattern.permute.xlu0 0
        %1756 = vperm.xlu0 %1755, %v1294
        %v1757 = vpop.permute.xlu0 %1756
        %1760 = vset.pattern.permute.xlu0 0
        %1761 = vperm.xlu0 %1760, %v1295
        %v1762 = vpop.permute.xlu0 %1761
        %1765 = vset.pattern.permute.xlu0 0
        %1766 = vperm.xlu0 %1765, %v1296
        %v1767 = vpop.permute.xlu0 %1766
        %1770 = vset.pattern.permute.xlu0 0
        %1771 = vperm.xlu0 %1770, %v1297
        %v1772 = vpop.permute.xlu0 %1771
        %1775 = vset.pattern.permute.xlu0 0
        %1776 = vperm.xlu0 %1775, %v1298
        %v1777 = vpop.permute.xlu0 %1776
        %1780 = vset.pattern.permute.xlu0 0
        %1781 = vperm.xlu0 %1780, %v1299
        %v1782 = vpop.permute.xlu0 %1781
        %1785 = vset.pattern.permute.xlu0 0
        %1786 = vperm.xlu0 %1785, %v1300
        %v1787 = vpop.permute.xlu0 %1786
        %1790 = vset.pattern.permute.xlu0 0
        %1791 = vperm.xlu0 %1790, %v1301
        %v1792 = vpop.permute.xlu0 %1791
        %1795 = vset.pattern.permute.xlu0 0
        %1796 = vperm.xlu0 %1795, %v1302
        %v1797 = vpop.permute.xlu0 %1796
        %1800 = vset.pattern.permute.xlu0 0
        %1801 = vperm.xlu0 %1800, %v1303
        %v1802 = vpop.permute.xlu0 %1801
        %1805 = vset.pattern.permute.xlu0 0
        %1806 = vperm.xlu0 %1805, %v1304
        %v1807 = vpop.permute.xlu0 %1806
        %1810 = vset.pattern.permute.xlu0 0
        %1811 = vperm.xlu0 %1810, %v1305
        %v1812 = vpop.permute.xlu0 %1811
        %1815 = vset.pattern.permute.xlu0 0
        %1816 = vperm.xlu0 %1815, %v1306
        %v1817 = vpop.permute.xlu0 %1816
        %1820 = vset.pattern.permute.xlu0 0
        %1821 = vperm.xlu0 %1820, %v1307
        %v1822 = vpop.permute.xlu0 %1821
        %1825 = vset.pattern.permute.xlu0 0
        %1826 = vperm.xlu0 %1825, %v1308
        %v1827 = vpop.permute.xlu0 %1826
        %1830 = vset.pattern.permute.xlu0 0
        %1831 = vperm.xlu0 %1830, %v1309
        %v1832 = vpop.permute.xlu0 %1831
        %1835 = vset.pattern.permute.xlu0 0
        %1836 = vperm.xlu0 %1835, %v1310
        %v1837 = vpop.permute.xlu0 %1836
        %1840 = vset.pattern.permute.xlu0 0
        %1841 = vperm.xlu0 %1840, %v1311
        %v1842 = vpop.permute.xlu0 %1841
        %1845 = vset.pattern.permute.xlu0 0
        %1846 = vperm.xlu0 %1845, %v1312
        %v1847 = vpop.permute.xlu0 %1846
        %1850 = vset.pattern.permute.xlu0 0
        %1851 = vperm.xlu0 %1850, %v1313
        %v1852 = vpop.permute.xlu0 %1851
        %1855 = vset.pattern.permute.xlu0 0
        %1856 = vperm.xlu0 %1855, %v1314
        %v1857 = vpop.permute.xlu0 %1856
        %1860 = vset.pattern.permute.xlu0 0
        %1861 = vperm.xlu0 %1860, %v1315
        %v1862 = vpop.permute.xlu0 %1861
        %1865 = vset.pattern.permute.xlu0 0
        %1866 = vperm.xlu0 %1865, %v1316
        %v1867 = vpop.permute.xlu0 %1866
        %1870 = vset.pattern.permute.xlu0 0
        %1871 = vperm.xlu0 %1870, %v1317
        %v1872 = vpop.permute.xlu0 %1871
        %1875 = vset.pattern.permute.xlu0 0
        %1876 = vperm.xlu0 %1875, %v1318
        %v1877 = vpop.permute.xlu0 %1876
        %1880 = vset.pattern.permute.xlu0 0
        %1881 = vperm.xlu0 %1880, %v1319
        %v1882 = vpop.permute.xlu0 %1881
        %1885 = vset.pattern.permute.xlu0 0
        %1886 = vperm.xlu0 %1885, %v1320
        %v1887 = vpop.permute.xlu0 %1886
        %1890 = vset.pattern.permute.xlu0 0
        %1891 = vperm.xlu0 %1890, %v1321
        %v1892 = vpop.permute.xlu0 %1891
        %1895 = vset.pattern.permute.xlu0 0
        %1896 = vperm.xlu0 %1895, %v1322
        %v1897 = vpop.permute.xlu0 %1896
        %1900 = vset.pattern.permute.xlu0 0
        %1901 = vperm.xlu0 %1900, %v1323
        %v1902 = vpop.permute.xlu0 %1901
        %1905 = vset.pattern.permute.xlu0 0
        %1906 = vperm.xlu0 %1905, %v1324
        %v1907 = vpop.permute.xlu0 %1906
        %1910 = vset.pattern.permute.xlu0 0
        %1911 = vperm.xlu0 %1910, %v1325
        %v1912 = vpop.permute.xlu0 %1911
        %1915 = vset.pattern.permute.xlu0 0
        %1916 = vperm.xlu0 %1915, %v1326
        %v1917 = vpop.permute.xlu0 %1916
        %1920 = vset.pattern.permute.xlu0 0
        %1921 = vperm.xlu0 %1920, %v1327
        %v1922 = vpop.permute.xlu0 %1921
        %1925 = vset.pattern.permute.xlu0 0
        %1926 = vperm.xlu0 %1925, %v1328
        %v1927 = vpop.permute.xlu0 %1926
        %1930 = vset.pattern.permute.xlu0 0
        %1931 = vperm.xlu0 %1930, %v1329
        %v1932 = vpop.permute.xlu0 %1931
        %1935 = vset.pattern.permute.xlu0 0
        %1936 = vperm.xlu0 %1935, %v1330
        %v1937 = vpop.permute.xlu0 %1936
        %1940 = vset.pattern.permute.xlu0 0
        %1941 = vperm.xlu0 %1940, %v1331
        %v1942 = vpop.permute.xlu0 %1941
        %1945 = vset.pattern.permute.xlu0 0
        %1946 = vperm.xlu0 %1945, %v1332
        %v1947 = vpop.permute.xlu0 %1946
        %1950 = vset.pattern.permute.xlu0 0
        %1951 = vperm.xlu0 %1950, %v1333
        %v1952 = vpop.permute.xlu0 %1951
        %1955 = vset.pattern.permute.xlu0 0
        %1956 = vperm.xlu0 %1955, %v1334
        %v1957 = vpop.permute.xlu0 %1956
        %1960 = vset.pattern.permute.xlu0 0
        %1961 = vperm.xlu0 %1960, %v1335
        %v1962 = vpop.permute.xlu0 %1961
        %1965 = vset.pattern.permute.xlu0 0
        %1966 = vperm.xlu0 %1965, %v1336
        %v1967 = vpop.permute.xlu0 %1966
        %1970 = vset.pattern.permute.xlu0 0
        %1971 = vperm.xlu0 %1970, %v1337
        %v1972 = vpop.permute.xlu0 %1971
        %1975 = vset.pattern.permute.xlu0 0
        %1976 = vperm.xlu0 %1975, %v1338
        %v1977 = vpop.permute.xlu0 %1976
        %v1979 = vmul.f32 %v314, %v1342
        %v1980 = vmul.f32 %v315, %v1342
        %v1981 = vmul.f32 %v316, %v1347
        %v1982 = vmul.f32 %v317, %v1347
        %v1983 = vmul.f32 %v318, %v1352
        %v1984 = vmul.f32 %v319, %v1352
        %v1985 = vmul.f32 %v320, %v1357
        %v1986 = vmul.f32 %v321, %v1357
        %v1987 = vmul.f32 %v322, %v1362
        %v1988 = vmul.f32 %v323, %v1362
        %v1989 = vmul.f32 %v324, %v1367
        %v1990 = vmul.f32 %v325, %v1367
        %v1991 = vmul.f32 %v326, %v1372
        %v1992 = vmul.f32 %v327, %v1372
        %v1993 = vmul.f32 %v328, %v1377
        %v1994 = vmul.f32 %v329, %v1377
        %v1995 = vmul.f32 %v330, %v1382
        %v1996 = vmul.f32 %v331, %v1382
        %v1997 = vmul.f32 %v332, %v1387
        %v1998 = vmul.f32 %v333, %v1387
        %v1999 = vmul.f32 %v334, %v1392
        %v2000 = vmul.f32 %v335, %v1392
        %v2001 = vmul.f32 %v336, %v1397
        %v2002 = vmul.f32 %v337, %v1397
        %v2003 = vmul.f32 %v338, %v1402
        %v2004 = vmul.f32 %v339, %v1402
        %v2005 = vmul.f32 %v340, %v1407
        %v2006 = vmul.f32 %v341, %v1407
        %v2007 = vmul.f32 %v342, %v1412
        %v2008 = vmul.f32 %v343, %v1412
        %v2009 = vmul.f32 %v344, %v1417
        %v2010 = vmul.f32 %v345, %v1417
        %v2011 = vmul.f32 %v346, %v1422
        %v2012 = vmul.f32 %v347, %v1422
        %v2013 = vmul.f32 %v348, %v1427
        %v2014 = vmul.f32 %v349, %v1427
        %v2015 = vmul.f32 %v350, %v1432
        %v2016 = vmul.f32 %v351, %v1432
        %v2017 = vmul.f32 %v352, %v1437
        %v2018 = vmul.f32 %v353, %v1437
        %v2019 = vmul.f32 %v354, %v1442
        %v2020 = vmul.f32 %v355, %v1442
        %v2021 = vmul.f32 %v356, %v1447
        %v2022 = vmul.f32 %v357, %v1447
        %v2023 = vmul.f32 %v358, %v1452
        %v2024 = vmul.f32 %v359, %v1452
        %v2025 = vmul.f32 %v360, %v1457
        %v2026 = vmul.f32 %v361, %v1457
        %v2027 = vmul.f32 %v362, %v1462
        %v2028 = vmul.f32 %v363, %v1462
        %v2029 = vmul.f32 %v364, %v1467
        %v2030 = vmul.f32 %v365, %v1467
        %v2031 = vmul.f32 %v366, %v1472
        %v2032 = vmul.f32 %v367, %v1472
        %v2033 = vmul.f32 %v368, %v1477
        %v2034 = vmul.f32 %v369, %v1477
        %v2035 = vmul.f32 %v370, %v1482
        %v2036 = vmul.f32 %v371, %v1482
        %v2037 = vmul.f32 %v372, %v1487
        %v2038 = vmul.f32 %v373, %v1487
        %v2039 = vmul.f32 %v374, %v1492
        %v2040 = vmul.f32 %v375, %v1492
        %v2041 = vmul.f32 %v376, %v1497
        %v2042 = vmul.f32 %v377, %v1497
        %v2043 = vmul.f32 %v378, %v1502
        %v2044 = vmul.f32 %v379, %v1502
        %v2045 = vmul.f32 %v380, %v1507
        %v2046 = vmul.f32 %v381, %v1507
        %v2047 = vmul.f32 %v382, %v1512
        %v2048 = vmul.f32 %v383, %v1512
        %v2049 = vmul.f32 %v384, %v1517
        %v2050 = vmul.f32 %v385, %v1517
        %v2051 = vmul.f32 %v386, %v1522
        %v2052 = vmul.f32 %v387, %v1522
        %v2053 = vmul.f32 %v388, %v1527
        %v2054 = vmul.f32 %v389, %v1527
        %v2055 = vmul.f32 %v390, %v1532
        %v2056 = vmul.f32 %v391, %v1532
        %v2057 = vmul.f32 %v392, %v1537
        %v2058 = vmul.f32 %v393, %v1537
        %v2059 = vmul.f32 %v394, %v1542
        %v2060 = vmul.f32 %v395, %v1542
        %v2061 = vmul.f32 %v396, %v1547
        %v2062 = vmul.f32 %v397, %v1547
        %v2063 = vmul.f32 %v398, %v1552
        %v2064 = vmul.f32 %v399, %v1552
        %v2065 = vmul.f32 %v400, %v1557
        %v2066 = vmul.f32 %v401, %v1557
        %v2067 = vmul.f32 %v402, %v1562
        %v2068 = vmul.f32 %v403, %v1562
        %v2069 = vmul.f32 %v404, %v1567
        %v2070 = vmul.f32 %v405, %v1567
        %v2071 = vmul.f32 %v406, %v1572
        %v2072 = vmul.f32 %v407, %v1572
        %v2073 = vmul.f32 %v408, %v1577
        %v2074 = vmul.f32 %v409, %v1577
        %v2075 = vmul.f32 %v410, %v1582
        %v2076 = vmul.f32 %v411, %v1582
        %v2077 = vmul.f32 %v412, %v1587
        %v2078 = vmul.f32 %v413, %v1587
        %v2079 = vmul.f32 %v414, %v1592
        %v2080 = vmul.f32 %v415, %v1592
        %v2081 = vmul.f32 %v416, %v1597
        %v2082 = vmul.f32 %v417, %v1597
        %v2083 = vmul.f32 %v418, %v1602
        %v2084 = vmul.f32 %v419, %v1602
        %v2085 = vmul.f32 %v420, %v1607
        %v2086 = vmul.f32 %v421, %v1607
        %v2087 = vmul.f32 %v422, %v1612
        %v2088 = vmul.f32 %v423, %v1612
        %v2089 = vmul.f32 %v424, %v1617
        %v2090 = vmul.f32 %v425, %v1617
        %v2091 = vmul.f32 %v426, %v1622
        %v2092 = vmul.f32 %v427, %v1622
        %v2093 = vmul.f32 %v428, %v1627
        %v2094 = vmul.f32 %v429, %v1627
        %v2095 = vmul.f32 %v430, %v1632
        %v2096 = vmul.f32 %v431, %v1632
        %v2097 = vmul.f32 %v432, %v1637
        %v2098 = vmul.f32 %v433, %v1637
        %v2099 = vmul.f32 %v434, %v1642
        %v2100 = vmul.f32 %v435, %v1642
        %v2101 = vmul.f32 %v436, %v1647
        %v2102 = vmul.f32 %v437, %v1647
        %v2103 = vmul.f32 %v438, %v1652
        %v2104 = vmul.f32 %v439, %v1652
        %v2105 = vmul.f32 %v440, %v1657
        %v2106 = vmul.f32 %v441, %v1657
        %v2107 = vmul.f32 %v442, %v1662
        %v2108 = vmul.f32 %v443, %v1662
        %v2109 = vmul.f32 %v444, %v1667
        %v2110 = vmul.f32 %v445, %v1667
        %v2111 = vmul.f32 %v446, %v1672
        %v2112 = vmul.f32 %v447, %v1672
        %v2113 = vmul.f32 %v448, %v1677
        %v2114 = vmul.f32 %v449, %v1677
        %v2115 = vmul.f32 %v450, %v1682
        %v2116 = vmul.f32 %v451, %v1682
        %v2117 = vmul.f32 %v452, %v1687
        %v2118 = vmul.f32 %v453, %v1687
        %v2119 = vmul.f32 %v454, %v1692
        %v2120 = vmul.f32 %v455, %v1692
        %v2121 = vmul.f32 %v456, %v1697
        %v2122 = vmul.f32 %v457, %v1697
        %v2123 = vmul.f32 %v458, %v1702
        %v2124 = vmul.f32 %v459, %v1702
        %v2125 = vmul.f32 %v460, %v1707
        %v2126 = vmul.f32 %v461, %v1707
        %v2127 = vmul.f32 %v462, %v1712
        %v2128 = vmul.f32 %v463, %v1712
        %v2129 = vmul.f32 %v464, %v1717
        %v2130 = vmul.f32 %v465, %v1717
        %v2131 = vmul.f32 %v466, %v1722
        %v2132 = vmul.f32 %v467, %v1722
        %v2133 = vmul.f32 %v468, %v1727
        %v2134 = vmul.f32 %v469, %v1727
        %v2135 = vmul.f32 %v470, %v1732
        %v2136 = vmul.f32 %v471, %v1732
        %v2137 = vmul.f32 %v472, %v1737
        %v2138 = vmul.f32 %v473, %v1737
        %v2139 = vmul.f32 %v474, %v1742
        %v2140 = vmul.f32 %v475, %v1742
        %v2141 = vmul.f32 %v476, %v1747
        %v2142 = vmul.f32 %v477, %v1747
        %v2143 = vmul.f32 %v478, %v1752
        %v2144 = vmul.f32 %v479, %v1752
        %v2145 = vmul.f32 %v480, %v1757
        %v2146 = vmul.f32 %v481, %v1757
        %v2147 = vmul.f32 %v482, %v1762
        %v2148 = vmul.f32 %v483, %v1762
        %v2149 = vmul.f32 %v484, %v1767
        %v2150 = vmul.f32 %v485, %v1767
        %v2151 = vmul.f32 %v486, %v1772
        %v2152 = vmul.f32 %v487, %v1772
        %v2153 = vmul.f32 %v488, %v1777
        %v2154 = vmul.f32 %v489, %v1777
        %v2155 = vmul.f32 %v490, %v1782
        %v2156 = vmul.f32 %v491, %v1782
        %v2157 = vmul.f32 %v492, %v1787
        %v2158 = vmul.f32 %v493, %v1787
        %v2159 = vmul.f32 %v494, %v1792
        %v2160 = vmul.f32 %v495, %v1792
        %v2161 = vmul.f32 %v496, %v1797
        %v2162 = vmul.f32 %v497, %v1797
        %v2163 = vmul.f32 %v498, %v1802
        %v2164 = vmul.f32 %v499, %v1802
        %v2165 = vmul.f32 %v500, %v1807
        %v2166 = vmul.f32 %v501, %v1807
        %v2167 = vmul.f32 %v502, %v1812
        %v2168 = vmul.f32 %v503, %v1812
        %v2169 = vmul.f32 %v504, %v1817
        %v2170 = vmul.f32 %v505, %v1817
        %v2171 = vmul.f32 %v506, %v1822
        %v2172 = vmul.f32 %v507, %v1822
        %v2173 = vmul.f32 %v508, %v1827
        %v2174 = vmul.f32 %v509, %v1827
        %v2175 = vmul.f32 %v510, %v1832
        %v2176 = vmul.f32 %v511, %v1832
        %v2177 = vmul.f32 %v512, %v1837
        %v2178 = vmul.f32 %v513, %v1837
        %v2179 = vmul.f32 %v514, %v1842
        %v2180 = vmul.f32 %v515, %v1842
        %v2181 = vmul.f32 %v516, %v1847
        %v2182 = vmul.f32 %v517, %v1847
        %v2183 = vmul.f32 %v518, %v1852
        %v2184 = vmul.f32 %v519, %v1852
        %v2185 = vmul.f32 %v520, %v1857
        %v2186 = vmul.f32 %v521, %v1857
        %v2187 = vmul.f32 %v522, %v1862
        %v2188 = vmul.f32 %v523, %v1862
        %v2189 = vmul.f32 %v524, %v1867
        %v2190 = vmul.f32 %v525, %v1867
        %v2191 = vmul.f32 %v526, %v1872
        %v2192 = vmul.f32 %v527, %v1872
        %v2193 = vmul.f32 %v528, %v1877
        %v2194 = vmul.f32 %v529, %v1877
        %v2195 = vmul.f32 %v530, %v1882
        %v2196 = vmul.f32 %v531, %v1882
        %v2197 = vmul.f32 %v532, %v1887
        %v2198 = vmul.f32 %v533, %v1887
        %v2199 = vmul.f32 %v534, %v1892
        %v2200 = vmul.f32 %v535, %v1892
        %v2201 = vmul.f32 %v536, %v1897
        %v2202 = vmul.f32 %v537, %v1897
        %v2203 = vmul.f32 %v538, %v1902
        %v2204 = vmul.f32 %v539, %v1902
        %v2205 = vmul.f32 %v540, %v1907
        %v2206 = vmul.f32 %v541, %v1907
        %v2207 = vmul.f32 %v542, %v1912
        %v2208 = vmul.f32 %v543, %v1912
        %v2209 = vmul.f32 %v544, %v1917
        %v2210 = vmul.f32 %v545, %v1917
        %v2211 = vmul.f32 %v546, %v1922
        %v2212 = vmul.f32 %v547, %v1922
        %v2213 = vmul.f32 %v548, %v1927
        %v2214 = vmul.f32 %v549, %v1927
        %v2215 = vmul.f32 %v550, %v1932
        %v2216 = vmul.f32 %v551, %v1932
        %v2217 = vmul.f32 %v552, %v1937
        %v2218 = vmul.f32 %v553, %v1937
        %v2219 = vmul.f32 %v554, %v1942
        %v2220 = vmul.f32 %v555, %v1942
        %v2221 = vmul.f32 %v556, %v1947
        %v2222 = vmul.f32 %v557, %v1947
        %v2223 = vmul.f32 %v558, %v1952
        %v2224 = vmul.f32 %v559, %v1952
        %v2225 = vmul.f32 %v560, %v1957
        %v2226 = vmul.f32 %v561, %v1957
        %v2227 = vmul.f32 %v562, %v1962
        %v2228 = vmul.f32 %v563, %v1962
        %v2229 = vmul.f32 %v564, %v1967
        %v2230 = vmul.f32 %v565, %v1967
        %v2231 = vmul.f32 %v566, %v1972
        %v2232 = vmul.f32 %v567, %v1972
        %v2233 = vmul.f32 %v568, %v1977
        %v2234 = vmul.f32 %v569, %v1977
        %v2235 = vadd.f32 %v1979, %v1981
        %v2236 = vadd.f32 %v2235, %v1983
        %v2237 = vadd.f32 %v2236, %v1985
        %v2238 = vrot.slane %v2237, 4
        %v2239 = vadd.f32 %v2237, %v2238
        %v2240 = vrot.slane %v2239, 2
        %v2241 = vadd.f32 %v2239, %v2240
        %v2242 = vrot.slane %v2241, 1
        %v2243 = vadd.f32 %v2241, %v2242
        %v2244 = vadd.f32 %v1980, %v1982
        %v2245 = vadd.f32 %v2244, %v1984
        %v2246 = vadd.f32 %v2245, %v1986
        %v2247 = vrot.slane %v2246, 4
        %v2248 = vadd.f32 %v2246, %v2247
        %v2249 = vrot.slane %v2248, 2
        %v2250 = vadd.f32 %v2248, %v2249
        %v2251 = vrot.slane %v2250, 1
        %v2252 = vadd.f32 %v2250, %v2251
        %v2253 = vadd.f32 %v1987, %v1989
        %v2254 = vadd.f32 %v2253, %v1991
        %v2255 = vadd.f32 %v2254, %v1993
        %v2256 = vrot.slane %v2255, 4
        %v2257 = vadd.f32 %v2255, %v2256
        %v2258 = vrot.slane %v2257, 2
        %v2259 = vadd.f32 %v2257, %v2258
        %v2260 = vrot.slane %v2259, 1
        %v2261 = vadd.f32 %v2259, %v2260
        %v2262 = vadd.f32 %v1988, %v1990
        %v2263 = vadd.f32 %v2262, %v1992
        %v2264 = vadd.f32 %v2263, %v1994
        %v2265 = vrot.slane %v2264, 4
        %v2266 = vadd.f32 %v2264, %v2265
        %v2267 = vrot.slane %v2266, 2
        %v2268 = vadd.f32 %v2266, %v2267
        %v2269 = vrot.slane %v2268, 1
        %v2270 = vadd.f32 %v2268, %v2269
        %v2271 = vadd.f32 %v1995, %v1997
        %v2272 = vadd.f32 %v2271, %v1999
        %v2273 = vadd.f32 %v2272, %v2001
        %v2274 = vrot.slane %v2273, 4
        %v2275 = vadd.f32 %v2273, %v2274
        %v2276 = vrot.slane %v2275, 2
        %v2277 = vadd.f32 %v2275, %v2276
        %v2278 = vrot.slane %v2277, 1
        %v2279 = vadd.f32 %v2277, %v2278
        %v2280 = vadd.f32 %v1996, %v1998
        %v2281 = vadd.f32 %v2280, %v2000
        %v2282 = vadd.f32 %v2281, %v2002
        %v2283 = vrot.slane %v2282, 4
        %v2284 = vadd.f32 %v2282, %v2283
        %v2285 = vrot.slane %v2284, 2
        %v2286 = vadd.f32 %v2284, %v2285
        %v2287 = vrot.slane %v2286, 1
        %v2288 = vadd.f32 %v2286, %v2287
        %v2289 = vadd.f32 %v2003, %v2005
        %v2290 = vadd.f32 %v2289, %v2007
        %v2291 = vadd.f32 %v2290, %v2009
        %v2292 = vrot.slane %v2291, 4
        %v2293 = vadd.f32 %v2291, %v2292
        %v2294 = vrot.slane %v2293, 2
        %v2295 = vadd.f32 %v2293, %v2294
        %v2296 = vrot.slane %v2295, 1
        %v2297 = vadd.f32 %v2295, %v2296
        %v2298 = vadd.f32 %v2004, %v2006
        %v2299 = vadd.f32 %v2298, %v2008
        %v2300 = vadd.f32 %v2299, %v2010
        %v2301 = vrot.slane %v2300, 4
        %v2302 = vadd.f32 %v2300, %v2301
        %v2303 = vrot.slane %v2302, 2
        %v2304 = vadd.f32 %v2302, %v2303
        %v2305 = vrot.slane %v2304, 1
        %v2306 = vadd.f32 %v2304, %v2305
        %v2307 = vadd.f32 %v2011, %v2013
        %v2308 = vadd.f32 %v2307, %v2015
        %v2309 = vadd.f32 %v2308, %v2017
        %v2310 = vrot.slane %v2309, 4
        %v2311 = vadd.f32 %v2309, %v2310
        %v2312 = vrot.slane %v2311, 2
        %v2313 = vadd.f32 %v2311, %v2312
        %v2314 = vrot.slane %v2313, 1
        %v2315 = vadd.f32 %v2313, %v2314
        %v2316 = vadd.f32 %v2012, %v2014
        %v2317 = vadd.f32 %v2316, %v2016
        %v2318 = vadd.f32 %v2317, %v2018
        %v2319 = vrot.slane %v2318, 4
        %v2320 = vadd.f32 %v2318, %v2319
        %v2321 = vrot.slane %v2320, 2
        %v2322 = vadd.f32 %v2320, %v2321
        %v2323 = vrot.slane %v2322, 1
        %v2324 = vadd.f32 %v2322, %v2323
        %v2325 = vadd.f32 %v2019, %v2021
        %v2326 = vadd.f32 %v2325, %v2023
        %v2327 = vadd.f32 %v2326, %v2025
        %v2328 = vrot.slane %v2327, 4
        %v2329 = vadd.f32 %v2327, %v2328
        %v2330 = vrot.slane %v2329, 2
        %v2331 = vadd.f32 %v2329, %v2330
        %v2332 = vrot.slane %v2331, 1
        %v2333 = vadd.f32 %v2331, %v2332
        %v2334 = vadd.f32 %v2020, %v2022
        %v2335 = vadd.f32 %v2334, %v2024
        %v2336 = vadd.f32 %v2335, %v2026
        %v2337 = vrot.slane %v2336, 4
        %v2338 = vadd.f32 %v2336, %v2337
        %v2339 = vrot.slane %v2338, 2
        %v2340 = vadd.f32 %v2338, %v2339
        %v2341 = vrot.slane %v2340, 1
        %v2342 = vadd.f32 %v2340, %v2341
        %v2343 = vadd.f32 %v2027, %v2029
        %v2344 = vadd.f32 %v2343, %v2031
        %v2345 = vadd.f32 %v2344, %v2033
        %v2346 = vrot.slane %v2345, 4
        %v2347 = vadd.f32 %v2345, %v2346
        %v2348 = vrot.slane %v2347, 2
        %v2349 = vadd.f32 %v2347, %v2348
        %v2350 = vrot.slane %v2349, 1
        %v2351 = vadd.f32 %v2349, %v2350
        %v2352 = vadd.f32 %v2028, %v2030
        %v2353 = vadd.f32 %v2352, %v2032
        %v2354 = vadd.f32 %v2353, %v2034
        %v2355 = vrot.slane %v2354, 4
        %v2356 = vadd.f32 %v2354, %v2355
        %v2357 = vrot.slane %v2356, 2
        %v2358 = vadd.f32 %v2356, %v2357
        %v2359 = vrot.slane %v2358, 1
        %v2360 = vadd.f32 %v2358, %v2359
        %v2361 = vadd.f32 %v2035, %v2037
        %v2362 = vadd.f32 %v2361, %v2039
        %v2363 = vadd.f32 %v2362, %v2041
        %v2364 = vrot.slane %v2363, 4
        %v2365 = vadd.f32 %v2363, %v2364
        %v2366 = vrot.slane %v2365, 2
        %v2367 = vadd.f32 %v2365, %v2366
        %v2368 = vrot.slane %v2367, 1
        %v2369 = vadd.f32 %v2367, %v2368
        %v2370 = vadd.f32 %v2036, %v2038
        %v2371 = vadd.f32 %v2370, %v2040
        %v2372 = vadd.f32 %v2371, %v2042
        %v2373 = vrot.slane %v2372, 4
        %v2374 = vadd.f32 %v2372, %v2373
        %v2375 = vrot.slane %v2374, 2
        %v2376 = vadd.f32 %v2374, %v2375
        %v2377 = vrot.slane %v2376, 1
        %v2378 = vadd.f32 %v2376, %v2377
        %v2379 = vadd.f32 %v2043, %v2045
        %v2380 = vadd.f32 %v2379, %v2047
        %v2381 = vadd.f32 %v2380, %v2049
        %v2382 = vrot.slane %v2381, 4
        %v2383 = vadd.f32 %v2381, %v2382
        %v2384 = vrot.slane %v2383, 2
        %v2385 = vadd.f32 %v2383, %v2384
        %v2386 = vrot.slane %v2385, 1
        %v2387 = vadd.f32 %v2385, %v2386
        %v2388 = vadd.f32 %v2044, %v2046
        %v2389 = vadd.f32 %v2388, %v2048
        %v2390 = vadd.f32 %v2389, %v2050
        %v2391 = vrot.slane %v2390, 4
        %v2392 = vadd.f32 %v2390, %v2391
        %v2393 = vrot.slane %v2392, 2
        %v2394 = vadd.f32 %v2392, %v2393
        %v2395 = vrot.slane %v2394, 1
        %v2396 = vadd.f32 %v2394, %v2395
        %v2397 = vadd.f32 %v2051, %v2053
        %v2398 = vadd.f32 %v2397, %v2055
        %v2399 = vadd.f32 %v2398, %v2057
        %v2400 = vrot.slane %v2399, 4
        %v2401 = vadd.f32 %v2399, %v2400
        %v2402 = vrot.slane %v2401, 2
        %v2403 = vadd.f32 %v2401, %v2402
        %v2404 = vrot.slane %v2403, 1
        %v2405 = vadd.f32 %v2403, %v2404
        %v2406 = vadd.f32 %v2052, %v2054
        %v2407 = vadd.f32 %v2406, %v2056
        %v2408 = vadd.f32 %v2407, %v2058
        %v2409 = vrot.slane %v2408, 4
        %v2410 = vadd.f32 %v2408, %v2409
        %v2411 = vrot.slane %v2410, 2
        %v2412 = vadd.f32 %v2410, %v2411
        %v2413 = vrot.slane %v2412, 1
        %v2414 = vadd.f32 %v2412, %v2413
        %v2415 = vadd.f32 %v2059, %v2061
        %v2416 = vadd.f32 %v2415, %v2063
        %v2417 = vadd.f32 %v2416, %v2065
        %v2418 = vrot.slane %v2417, 4
        %v2419 = vadd.f32 %v2417, %v2418
        %v2420 = vrot.slane %v2419, 2
        %v2421 = vadd.f32 %v2419, %v2420
        %v2422 = vrot.slane %v2421, 1
        %v2423 = vadd.f32 %v2421, %v2422
        %v2424 = vadd.f32 %v2060, %v2062
        %v2425 = vadd.f32 %v2424, %v2064
        %v2426 = vadd.f32 %v2425, %v2066
        %v2427 = vrot.slane %v2426, 4
        %v2428 = vadd.f32 %v2426, %v2427
        %v2429 = vrot.slane %v2428, 2
        %v2430 = vadd.f32 %v2428, %v2429
        %v2431 = vrot.slane %v2430, 1
        %v2432 = vadd.f32 %v2430, %v2431
        %v2433 = vadd.f32 %v2067, %v2069
        %v2434 = vadd.f32 %v2433, %v2071
        %v2435 = vadd.f32 %v2434, %v2073
        %v2436 = vrot.slane %v2435, 4
        %v2437 = vadd.f32 %v2435, %v2436
        %v2438 = vrot.slane %v2437, 2
        %v2439 = vadd.f32 %v2437, %v2438
        %v2440 = vrot.slane %v2439, 1
        %v2441 = vadd.f32 %v2439, %v2440
        %v2442 = vadd.f32 %v2068, %v2070
        %v2443 = vadd.f32 %v2442, %v2072
        %v2444 = vadd.f32 %v2443, %v2074
        %v2445 = vrot.slane %v2444, 4
        %v2446 = vadd.f32 %v2444, %v2445
        %v2447 = vrot.slane %v2446, 2
        %v2448 = vadd.f32 %v2446, %v2447
        %v2449 = vrot.slane %v2448, 1
        %v2450 = vadd.f32 %v2448, %v2449
        %v2451 = vadd.f32 %v2075, %v2077
        %v2452 = vadd.f32 %v2451, %v2079
        %v2453 = vadd.f32 %v2452, %v2081
        %v2454 = vrot.slane %v2453, 4
        %v2455 = vadd.f32 %v2453, %v2454
        %v2456 = vrot.slane %v2455, 2
        %v2457 = vadd.f32 %v2455, %v2456
        %v2458 = vrot.slane %v2457, 1
        %v2459 = vadd.f32 %v2457, %v2458
        %v2460 = vadd.f32 %v2076, %v2078
        %v2461 = vadd.f32 %v2460, %v2080
        %v2462 = vadd.f32 %v2461, %v2082
        %v2463 = vrot.slane %v2462, 4
        %v2464 = vadd.f32 %v2462, %v2463
        %v2465 = vrot.slane %v2464, 2
        %v2466 = vadd.f32 %v2464, %v2465
        %v2467 = vrot.slane %v2466, 1
        %v2468 = vadd.f32 %v2466, %v2467
        %v2469 = vadd.f32 %v2083, %v2085
        %v2470 = vadd.f32 %v2469, %v2087
        %v2471 = vadd.f32 %v2470, %v2089
        %v2472 = vrot.slane %v2471, 4
        %v2473 = vadd.f32 %v2471, %v2472
        %v2474 = vrot.slane %v2473, 2
        %v2475 = vadd.f32 %v2473, %v2474
        %v2476 = vrot.slane %v2475, 1
        %v2477 = vadd.f32 %v2475, %v2476
        %v2478 = vadd.f32 %v2084, %v2086
        %v2479 = vadd.f32 %v2478, %v2088
        %v2480 = vadd.f32 %v2479, %v2090
        %v2481 = vrot.slane %v2480, 4
        %v2482 = vadd.f32 %v2480, %v2481
        %v2483 = vrot.slane %v2482, 2
        %v2484 = vadd.f32 %v2482, %v2483
        %v2485 = vrot.slane %v2484, 1
        %v2486 = vadd.f32 %v2484, %v2485
        %v2487 = vadd.f32 %v2091, %v2093
        %v2488 = vadd.f32 %v2487, %v2095
        %v2489 = vadd.f32 %v2488, %v2097
        %v2490 = vrot.slane %v2489, 4
        %v2491 = vadd.f32 %v2489, %v2490
        %v2492 = vrot.slane %v2491, 2
        %v2493 = vadd.f32 %v2491, %v2492
        %v2494 = vrot.slane %v2493, 1
        %v2495 = vadd.f32 %v2493, %v2494
        %v2496 = vadd.f32 %v2092, %v2094
        %v2497 = vadd.f32 %v2496, %v2096
        %v2498 = vadd.f32 %v2497, %v2098
        %v2499 = vrot.slane %v2498, 4
        %v2500 = vadd.f32 %v2498, %v2499
        %v2501 = vrot.slane %v2500, 2
        %v2502 = vadd.f32 %v2500, %v2501
        %v2503 = vrot.slane %v2502, 1
        %v2504 = vadd.f32 %v2502, %v2503
        %v2505 = vadd.f32 %v2099, %v2101
        %v2506 = vadd.f32 %v2505, %v2103
        %v2507 = vadd.f32 %v2506, %v2105
        %v2508 = vrot.slane %v2507, 4
        %v2509 = vadd.f32 %v2507, %v2508
        %v2510 = vrot.slane %v2509, 2
        %v2511 = vadd.f32 %v2509, %v2510
        %v2512 = vrot.slane %v2511, 1
        %v2513 = vadd.f32 %v2511, %v2512
        %v2514 = vadd.f32 %v2100, %v2102
        %v2515 = vadd.f32 %v2514, %v2104
        %v2516 = vadd.f32 %v2515, %v2106
        %v2517 = vrot.slane %v2516, 4
        %v2518 = vadd.f32 %v2516, %v2517
        %v2519 = vrot.slane %v2518, 2
        %v2520 = vadd.f32 %v2518, %v2519
        %v2521 = vrot.slane %v2520, 1
        %v2522 = vadd.f32 %v2520, %v2521
        %v2523 = vadd.f32 %v2107, %v2109
        %v2524 = vadd.f32 %v2523, %v2111
        %v2525 = vadd.f32 %v2524, %v2113
        %v2526 = vrot.slane %v2525, 4
        %v2527 = vadd.f32 %v2525, %v2526
        %v2528 = vrot.slane %v2527, 2
        %v2529 = vadd.f32 %v2527, %v2528
        %v2530 = vrot.slane %v2529, 1
        %v2531 = vadd.f32 %v2529, %v2530
        %v2532 = vadd.f32 %v2108, %v2110
        %v2533 = vadd.f32 %v2532, %v2112
        %v2534 = vadd.f32 %v2533, %v2114
        %v2535 = vrot.slane %v2534, 4
        %v2536 = vadd.f32 %v2534, %v2535
        %v2537 = vrot.slane %v2536, 2
        %v2538 = vadd.f32 %v2536, %v2537
        %v2539 = vrot.slane %v2538, 1
        %v2540 = vadd.f32 %v2538, %v2539
        %v2541 = vadd.f32 %v2115, %v2117
        %v2542 = vadd.f32 %v2541, %v2119
        %v2543 = vadd.f32 %v2542, %v2121
        %v2544 = vrot.slane %v2543, 4
        %v2545 = vadd.f32 %v2543, %v2544
        %v2546 = vrot.slane %v2545, 2
        %v2547 = vadd.f32 %v2545, %v2546
        %v2548 = vrot.slane %v2547, 1
        %v2549 = vadd.f32 %v2547, %v2548
        %v2550 = vadd.f32 %v2116, %v2118
        %v2551 = vadd.f32 %v2550, %v2120
        %v2552 = vadd.f32 %v2551, %v2122
        %v2553 = vrot.slane %v2552, 4
        %v2554 = vadd.f32 %v2552, %v2553
        %v2555 = vrot.slane %v2554, 2
        %v2556 = vadd.f32 %v2554, %v2555
        %v2557 = vrot.slane %v2556, 1
        %v2558 = vadd.f32 %v2556, %v2557
        %v2559 = vadd.f32 %v2123, %v2125
        %v2560 = vadd.f32 %v2559, %v2127
        %v2561 = vadd.f32 %v2560, %v2129
        %v2562 = vrot.slane %v2561, 4
        %v2563 = vadd.f32 %v2561, %v2562
        %v2564 = vrot.slane %v2563, 2
        %v2565 = vadd.f32 %v2563, %v2564
        %v2566 = vrot.slane %v2565, 1
        %v2567 = vadd.f32 %v2565, %v2566
        %v2568 = vadd.f32 %v2124, %v2126
        %v2569 = vadd.f32 %v2568, %v2128
        %v2570 = vadd.f32 %v2569, %v2130
        %v2571 = vrot.slane %v2570, 4
        %v2572 = vadd.f32 %v2570, %v2571
        %v2573 = vrot.slane %v2572, 2
        %v2574 = vadd.f32 %v2572, %v2573
        %v2575 = vrot.slane %v2574, 1
        %v2576 = vadd.f32 %v2574, %v2575
        %v2577 = vadd.f32 %v2131, %v2133
        %v2578 = vadd.f32 %v2577, %v2135
        %v2579 = vadd.f32 %v2578, %v2137
        %v2580 = vrot.slane %v2579, 4
        %v2581 = vadd.f32 %v2579, %v2580
        %v2582 = vrot.slane %v2581, 2
        %v2583 = vadd.f32 %v2581, %v2582
        %v2584 = vrot.slane %v2583, 1
        %v2585 = vadd.f32 %v2583, %v2584
        %v2586 = vadd.f32 %v2132, %v2134
        %v2587 = vadd.f32 %v2586, %v2136
        %v2588 = vadd.f32 %v2587, %v2138
        %v2589 = vrot.slane %v2588, 4
        %v2590 = vadd.f32 %v2588, %v2589
        %v2591 = vrot.slane %v2590, 2
        %v2592 = vadd.f32 %v2590, %v2591
        %v2593 = vrot.slane %v2592, 1
        %v2594 = vadd.f32 %v2592, %v2593
        %v2595 = vadd.f32 %v2139, %v2141
        %v2596 = vadd.f32 %v2595, %v2143
        %v2597 = vadd.f32 %v2596, %v2145
        %v2598 = vrot.slane %v2597, 4
        %v2599 = vadd.f32 %v2597, %v2598
        %v2600 = vrot.slane %v2599, 2
        %v2601 = vadd.f32 %v2599, %v2600
        %v2602 = vrot.slane %v2601, 1
        %v2603 = vadd.f32 %v2601, %v2602
        %v2604 = vadd.f32 %v2140, %v2142
        %v2605 = vadd.f32 %v2604, %v2144
        %v2606 = vadd.f32 %v2605, %v2146
        %v2607 = vrot.slane %v2606, 4
        %v2608 = vadd.f32 %v2606, %v2607
        %v2609 = vrot.slane %v2608, 2
        %v2610 = vadd.f32 %v2608, %v2609
        %v2611 = vrot.slane %v2610, 1
        %v2612 = vadd.f32 %v2610, %v2611
        %v2613 = vadd.f32 %v2147, %v2149
        %v2614 = vadd.f32 %v2613, %v2151
        %v2615 = vadd.f32 %v2614, %v2153
        %v2616 = vrot.slane %v2615, 4
        %v2617 = vadd.f32 %v2615, %v2616
        %v2618 = vrot.slane %v2617, 2
        %v2619 = vadd.f32 %v2617, %v2618
        %v2620 = vrot.slane %v2619, 1
        %v2621 = vadd.f32 %v2619, %v2620
        %v2622 = vadd.f32 %v2148, %v2150
        %v2623 = vadd.f32 %v2622, %v2152
        %v2624 = vadd.f32 %v2623, %v2154
        %v2625 = vrot.slane %v2624, 4
        %v2626 = vadd.f32 %v2624, %v2625
        %v2627 = vrot.slane %v2626, 2
        %v2628 = vadd.f32 %v2626, %v2627
        %v2629 = vrot.slane %v2628, 1
        %v2630 = vadd.f32 %v2628, %v2629
        %v2631 = vadd.f32 %v2155, %v2157
        %v2632 = vadd.f32 %v2631, %v2159
        %v2633 = vadd.f32 %v2632, %v2161
        %v2634 = vrot.slane %v2633, 4
        %v2635 = vadd.f32 %v2633, %v2634
        %v2636 = vrot.slane %v2635, 2
        %v2637 = vadd.f32 %v2635, %v2636
        %v2638 = vrot.slane %v2637, 1
        %v2639 = vadd.f32 %v2637, %v2638
        %v2640 = vadd.f32 %v2156, %v2158
        %v2641 = vadd.f32 %v2640, %v2160
        %v2642 = vadd.f32 %v2641, %v2162
        %v2643 = vrot.slane %v2642, 4
        %v2644 = vadd.f32 %v2642, %v2643
        %v2645 = vrot.slane %v2644, 2
        %v2646 = vadd.f32 %v2644, %v2645
        %v2647 = vrot.slane %v2646, 1
        %v2648 = vadd.f32 %v2646, %v2647
        %v2649 = vadd.f32 %v2163, %v2165
        %v2650 = vadd.f32 %v2649, %v2167
        %v2651 = vadd.f32 %v2650, %v2169
        %v2652 = vrot.slane %v2651, 4
        %v2653 = vadd.f32 %v2651, %v2652
        %v2654 = vrot.slane %v2653, 2
        %v2655 = vadd.f32 %v2653, %v2654
        %v2656 = vrot.slane %v2655, 1
        %v2657 = vadd.f32 %v2655, %v2656
        %v2658 = vadd.f32 %v2164, %v2166
        %v2659 = vadd.f32 %v2658, %v2168
        %v2660 = vadd.f32 %v2659, %v2170
        %v2661 = vrot.slane %v2660, 4
        %v2662 = vadd.f32 %v2660, %v2661
        %v2663 = vrot.slane %v2662, 2
        %v2664 = vadd.f32 %v2662, %v2663
        %v2665 = vrot.slane %v2664, 1
        %v2666 = vadd.f32 %v2664, %v2665
        %v2667 = vadd.f32 %v2171, %v2173
        %v2668 = vadd.f32 %v2667, %v2175
        %v2669 = vadd.f32 %v2668, %v2177
        %v2670 = vrot.slane %v2669, 4
        %v2671 = vadd.f32 %v2669, %v2670
        %v2672 = vrot.slane %v2671, 2
        %v2673 = vadd.f32 %v2671, %v2672
        %v2674 = vrot.slane %v2673, 1
        %v2675 = vadd.f32 %v2673, %v2674
        %v2676 = vadd.f32 %v2172, %v2174
        %v2677 = vadd.f32 %v2676, %v2176
        %v2678 = vadd.f32 %v2677, %v2178
        %v2679 = vrot.slane %v2678, 4
        %v2680 = vadd.f32 %v2678, %v2679
        %v2681 = vrot.slane %v2680, 2
        %v2682 = vadd.f32 %v2680, %v2681
        %v2683 = vrot.slane %v2682, 1
        %v2684 = vadd.f32 %v2682, %v2683
        %v2685 = vadd.f32 %v2179, %v2181
        %v2686 = vadd.f32 %v2685, %v2183
        %v2687 = vadd.f32 %v2686, %v2185
        %v2688 = vrot.slane %v2687, 4
        %v2689 = vadd.f32 %v2687, %v2688
        %v2690 = vrot.slane %v2689, 2
        %v2691 = vadd.f32 %v2689, %v2690
        %v2692 = vrot.slane %v2691, 1
        %v2693 = vadd.f32 %v2691, %v2692
        %v2694 = vadd.f32 %v2180, %v2182
        %v2695 = vadd.f32 %v2694, %v2184
        %v2696 = vadd.f32 %v2695, %v2186
        %v2697 = vrot.slane %v2696, 4
        %v2698 = vadd.f32 %v2696, %v2697
        %v2699 = vrot.slane %v2698, 2
        %v2700 = vadd.f32 %v2698, %v2699
        %v2701 = vrot.slane %v2700, 1
        %v2702 = vadd.f32 %v2700, %v2701
        %v2703 = vadd.f32 %v2187, %v2189
        %v2704 = vadd.f32 %v2703, %v2191
        %v2705 = vadd.f32 %v2704, %v2193
        %v2706 = vrot.slane %v2705, 4
        %v2707 = vadd.f32 %v2705, %v2706
        %v2708 = vrot.slane %v2707, 2
        %v2709 = vadd.f32 %v2707, %v2708
        %v2710 = vrot.slane %v2709, 1
        %v2711 = vadd.f32 %v2709, %v2710
        %v2712 = vadd.f32 %v2188, %v2190
        %v2713 = vadd.f32 %v2712, %v2192
        %v2714 = vadd.f32 %v2713, %v2194
        %v2715 = vrot.slane %v2714, 4
        %v2716 = vadd.f32 %v2714, %v2715
        %v2717 = vrot.slane %v2716, 2
        %v2718 = vadd.f32 %v2716, %v2717
        %v2719 = vrot.slane %v2718, 1
        %v2720 = vadd.f32 %v2718, %v2719
        %v2721 = vadd.f32 %v2195, %v2197
        %v2722 = vadd.f32 %v2721, %v2199
        %v2723 = vadd.f32 %v2722, %v2201
        %v2724 = vrot.slane %v2723, 4
        %v2725 = vadd.f32 %v2723, %v2724
        %v2726 = vrot.slane %v2725, 2
        %v2727 = vadd.f32 %v2725, %v2726
        %v2728 = vrot.slane %v2727, 1
        %v2729 = vadd.f32 %v2727, %v2728
        %v2730 = vadd.f32 %v2196, %v2198
        %v2731 = vadd.f32 %v2730, %v2200
        %v2732 = vadd.f32 %v2731, %v2202
        %v2733 = vrot.slane %v2732, 4
        %v2734 = vadd.f32 %v2732, %v2733
        %v2735 = vrot.slane %v2734, 2
        %v2736 = vadd.f32 %v2734, %v2735
        %v2737 = vrot.slane %v2736, 1
        %v2738 = vadd.f32 %v2736, %v2737
        %v2739 = vadd.f32 %v2203, %v2205
        %v2740 = vadd.f32 %v2739, %v2207
        %v2741 = vadd.f32 %v2740, %v2209
        %v2742 = vrot.slane %v2741, 4
        %v2743 = vadd.f32 %v2741, %v2742
        %v2744 = vrot.slane %v2743, 2
        %v2745 = vadd.f32 %v2743, %v2744
        %v2746 = vrot.slane %v2745, 1
        %v2747 = vadd.f32 %v2745, %v2746
        %v2748 = vadd.f32 %v2204, %v2206
        %v2749 = vadd.f32 %v2748, %v2208
        %v2750 = vadd.f32 %v2749, %v2210
        %v2751 = vrot.slane %v2750, 4
        %v2752 = vadd.f32 %v2750, %v2751
        %v2753 = vrot.slane %v2752, 2
        %v2754 = vadd.f32 %v2752, %v2753
        %v2755 = vrot.slane %v2754, 1
        %v2756 = vadd.f32 %v2754, %v2755
        %v2757 = vadd.f32 %v2211, %v2213
        %v2758 = vadd.f32 %v2757, %v2215
        %v2759 = vadd.f32 %v2758, %v2217
        %v2760 = vrot.slane %v2759, 4
        %v2761 = vadd.f32 %v2759, %v2760
        %v2762 = vrot.slane %v2761, 2
        %v2763 = vadd.f32 %v2761, %v2762
        %v2764 = vrot.slane %v2763, 1
        %v2765 = vadd.f32 %v2763, %v2764
        %v2766 = vadd.f32 %v2212, %v2214
        %v2767 = vadd.f32 %v2766, %v2216
        %v2768 = vadd.f32 %v2767, %v2218
        %v2769 = vrot.slane %v2768, 4
        %v2770 = vadd.f32 %v2768, %v2769
        %v2771 = vrot.slane %v2770, 2
        %v2772 = vadd.f32 %v2770, %v2771
        %v2773 = vrot.slane %v2772, 1
        %v2774 = vadd.f32 %v2772, %v2773
        %v2775 = vadd.f32 %v2219, %v2221
        %v2776 = vadd.f32 %v2775, %v2223
        %v2777 = vadd.f32 %v2776, %v2225
        %v2778 = vrot.slane %v2777, 4
        %v2779 = vadd.f32 %v2777, %v2778
        %v2780 = vrot.slane %v2779, 2
        %v2781 = vadd.f32 %v2779, %v2780
        %v2782 = vrot.slane %v2781, 1
        %v2783 = vadd.f32 %v2781, %v2782
        %v2784 = vadd.f32 %v2220, %v2222
        %v2785 = vadd.f32 %v2784, %v2224
        %v2786 = vadd.f32 %v2785, %v2226
        %v2787 = vrot.slane %v2786, 4
        %v2788 = vadd.f32 %v2786, %v2787
        %v2789 = vrot.slane %v2788, 2
        %v2790 = vadd.f32 %v2788, %v2789
        %v2791 = vrot.slane %v2790, 1
        %v2792 = vadd.f32 %v2790, %v2791
        %v2793 = vadd.f32 %v2227, %v2229
        %v2794 = vadd.f32 %v2793, %v2231
        %v2795 = vadd.f32 %v2794, %v2233
        %v2796 = vrot.slane %v2795, 4
        %v2797 = vadd.f32 %v2795, %v2796
        %v2798 = vrot.slane %v2797, 2
        %v2799 = vadd.f32 %v2797, %v2798
        %v2800 = vrot.slane %v2799, 1
        %v2801 = vadd.f32 %v2799, %v2800
        %v2802 = vadd.f32 %v2228, %v2230
        %v2803 = vadd.f32 %v2802, %v2232
        %v2804 = vadd.f32 %v2803, %v2234
        %v2805 = vrot.slane %v2804, 4
        %v2806 = vadd.f32 %v2804, %v2805
        %v2807 = vrot.slane %v2806, 2
        %v2808 = vadd.f32 %v2806, %v2807
        %v2809 = vrot.slane %v2808, 1
        %v2810 = vadd.f32 %v2808, %v2809
        %v2811 = vadd.f32 %v2243, %v2252
        %2812 = vadd.xlane.f32.xlu0 %v2811
        %v2813 = vpop.xlane.xlu0 %2812
        %v2814 = vadd.f32 %v2261, %v2270
        %2815 = vadd.xlane.f32.xlu0 %v2814
        %v2816 = vpop.xlane.xlu0 %2815
        %v2817 = vadd.f32 %v2279, %v2288
        %2818 = vadd.xlane.f32.xlu0 %v2817
        %v2819 = vpop.xlane.xlu0 %2818
        %v2820 = vadd.f32 %v2297, %v2306
        %2821 = vadd.xlane.f32.xlu0 %v2820
        %v2822 = vpop.xlane.xlu0 %2821
        %v2823 = vadd.f32 %v2315, %v2324
        %2824 = vadd.xlane.f32.xlu0 %v2823
        %v2825 = vpop.xlane.xlu0 %2824
        %v2826 = vadd.f32 %v2333, %v2342
        %2827 = vadd.xlane.f32.xlu0 %v2826
        %v2828 = vpop.xlane.xlu0 %2827
        %v2829 = vadd.f32 %v2351, %v2360
        %2830 = vadd.xlane.f32.xlu0 %v2829
        %v2831 = vpop.xlane.xlu0 %2830
        %v2832 = vadd.f32 %v2369, %v2378
        %2833 = vadd.xlane.f32.xlu0 %v2832
        %v2834 = vpop.xlane.xlu0 %2833
        %v2835 = vadd.f32 %v2387, %v2396
        %2836 = vadd.xlane.f32.xlu0 %v2835
        %v2837 = vpop.xlane.xlu0 %2836
        %v2838 = vadd.f32 %v2405, %v2414
        %2839 = vadd.xlane.f32.xlu0 %v2838
        %v2840 = vpop.xlane.xlu0 %2839
        %v2841 = vadd.f32 %v2423, %v2432
        %2842 = vadd.xlane.f32.xlu0 %v2841
        %v2843 = vpop.xlane.xlu0 %2842
        %v2844 = vadd.f32 %v2441, %v2450
        %2845 = vadd.xlane.f32.xlu0 %v2844
        %v2846 = vpop.xlane.xlu0 %2845
        %v2847 = vadd.f32 %v2459, %v2468
        %2848 = vadd.xlane.f32.xlu0 %v2847
        %v2849 = vpop.xlane.xlu0 %2848
        %v2850 = vadd.f32 %v2477, %v2486
        %2851 = vadd.xlane.f32.xlu0 %v2850
        %v2852 = vpop.xlane.xlu0 %2851
        %v2853 = vadd.f32 %v2495, %v2504
        %2854 = vadd.xlane.f32.xlu0 %v2853
        %v2855 = vpop.xlane.xlu0 %2854
        %v2856 = vadd.f32 %v2513, %v2522
        %2857 = vadd.xlane.f32.xlu0 %v2856
        %v2858 = vpop.xlane.xlu0 %2857
        %v2859 = vadd.f32 %v2531, %v2540
        %2860 = vadd.xlane.f32.xlu0 %v2859
        %v2861 = vpop.xlane.xlu0 %2860
        %v2862 = vadd.f32 %v2549, %v2558
        %2863 = vadd.xlane.f32.xlu0 %v2862
        %v2864 = vpop.xlane.xlu0 %2863
        %v2865 = vadd.f32 %v2567, %v2576
        %2866 = vadd.xlane.f32.xlu0 %v2865
        %v2867 = vpop.xlane.xlu0 %2866
        %v2868 = vadd.f32 %v2585, %v2594
        %2869 = vadd.xlane.f32.xlu0 %v2868
        %v2870 = vpop.xlane.xlu0 %2869
        %v2871 = vadd.f32 %v2603, %v2612
        %2872 = vadd.xlane.f32.xlu0 %v2871
        %v2873 = vpop.xlane.xlu0 %2872
        %v2874 = vadd.f32 %v2621, %v2630
        %2875 = vadd.xlane.f32.xlu0 %v2874
        %v2876 = vpop.xlane.xlu0 %2875
        %v2877 = vadd.f32 %v2639, %v2648
        %2878 = vadd.xlane.f32.xlu0 %v2877
        %v2879 = vpop.xlane.xlu0 %2878
        %v2880 = vadd.f32 %v2657, %v2666
        %2881 = vadd.xlane.f32.xlu0 %v2880
        %v2882 = vpop.xlane.xlu0 %2881
        %v2883 = vadd.f32 %v2675, %v2684
        %2884 = vadd.xlane.f32.xlu0 %v2883
        %v2885 = vpop.xlane.xlu0 %2884
        %v2886 = vadd.f32 %v2693, %v2702
        %2887 = vadd.xlane.f32.xlu0 %v2886
        %v2888 = vpop.xlane.xlu0 %2887
        %v2889 = vadd.f32 %v2711, %v2720
        %2890 = vadd.xlane.f32.xlu0 %v2889
        %v2891 = vpop.xlane.xlu0 %2890
        %v2892 = vadd.f32 %v2729, %v2738
        %2893 = vadd.xlane.f32.xlu0 %v2892
        %v2894 = vpop.xlane.xlu0 %2893
        %v2895 = vadd.f32 %v2747, %v2756
        %2896 = vadd.xlane.f32.xlu0 %v2895
        %v2897 = vpop.xlane.xlu0 %2896
        %v2898 = vadd.f32 %v2765, %v2774
        %2899 = vadd.xlane.f32.xlu0 %v2898
        %v2900 = vpop.xlane.xlu0 %2899
        %v2901 = vadd.f32 %v2783, %v2792
        %2902 = vadd.xlane.f32.xlu0 %v2901
        %v2903 = vpop.xlane.xlu0 %2902
        %v2904 = vadd.f32 %v2801, %v2810
        %2905 = vadd.xlane.f32.xlu0 %v2904
        %v2906 = vpop.xlane.xlu0 %2905
        %v2907 = vmul.f32 %v2813, %v1082
        %v2908 = vmul.f32 %v2816, %v1082
        %v2909 = vmul.f32 %v2819, %v1082
        %v2910 = vmul.f32 %v2822, %v1082
        %v2911 = vmul.f32 %v2825, %v1082
        %v2912 = vmul.f32 %v2828, %v1082
        %v2913 = vmul.f32 %v2831, %v1082
        %v2914 = vmul.f32 %v2834, %v1082
        %v2915 = vmul.f32 %v2837, %v1082
        %v2916 = vmul.f32 %v2840, %v1082
        %v2917 = vmul.f32 %v2843, %v1082
        %v2918 = vmul.f32 %v2846, %v1082
        %v2919 = vmul.f32 %v2849, %v1082
        %v2920 = vmul.f32 %v2852, %v1082
        %v2921 = vmul.f32 %v2855, %v1082
        %v2922 = vmul.f32 %v2858, %v1082
        %v2923 = vmul.f32 %v2861, %v1082
        %v2924 = vmul.f32 %v2864, %v1082
        %v2925 = vmul.f32 %v2867, %v1082
        %v2926 = vmul.f32 %v2870, %v1082
        %v2927 = vmul.f32 %v2873, %v1082
        %v2928 = vmul.f32 %v2876, %v1082
        %v2929 = vmul.f32 %v2879, %v1082
        %v2930 = vmul.f32 %v2882, %v1082
        %v2931 = vmul.f32 %v2885, %v1082
        %v2932 = vmul.f32 %v2888, %v1082
        %v2933 = vmul.f32 %v2891, %v1082
        %v2934 = vmul.f32 %v2894, %v1082
        %v2935 = vmul.f32 %v2897, %v1082
        %v2936 = vmul.f32 %v2900, %v1082
        %v2937 = vmul.f32 %v2903, %v1082
        %v2938 = vmul.f32 %v2906, %v1082
        %v2939 = vsub.f32 %v2243, %v2907
        %v2940 = vsub.f32 %v2252, %v2907
        %v2941 = vsub.f32 %v2261, %v2908
        %v2942 = vsub.f32 %v2270, %v2908
        %v2943 = vsub.f32 %v2279, %v2909
        %v2944 = vsub.f32 %v2288, %v2909
        %v2945 = vsub.f32 %v2297, %v2910
        %v2946 = vsub.f32 %v2306, %v2910
        %v2947 = vsub.f32 %v2315, %v2911
        %v2948 = vsub.f32 %v2324, %v2911
        %v2949 = vsub.f32 %v2333, %v2912
        %v2950 = vsub.f32 %v2342, %v2912
        %v2951 = vsub.f32 %v2351, %v2913
        %v2952 = vsub.f32 %v2360, %v2913
        %v2953 = vsub.f32 %v2369, %v2914
        %v2954 = vsub.f32 %v2378, %v2914
        %v2955 = vsub.f32 %v2387, %v2915
        %v2956 = vsub.f32 %v2396, %v2915
        %v2957 = vsub.f32 %v2405, %v2916
        %v2958 = vsub.f32 %v2414, %v2916
        %v2959 = vsub.f32 %v2423, %v2917
        %v2960 = vsub.f32 %v2432, %v2917
        %v2961 = vsub.f32 %v2441, %v2918
        %v2962 = vsub.f32 %v2450, %v2918
        %v2963 = vsub.f32 %v2459, %v2919
        %v2964 = vsub.f32 %v2468, %v2919
        %v2965 = vsub.f32 %v2477, %v2920
        %v2966 = vsub.f32 %v2486, %v2920
        %v2967 = vsub.f32 %v2495, %v2921
        %v2968 = vsub.f32 %v2504, %v2921
        %v2969 = vsub.f32 %v2513, %v2922
        %v2970 = vsub.f32 %v2522, %v2922
        %v2971 = vsub.f32 %v2531, %v2923
        %v2972 = vsub.f32 %v2540, %v2923
        %v2973 = vsub.f32 %v2549, %v2924
        %v2974 = vsub.f32 %v2558, %v2924
        %v2975 = vsub.f32 %v2567, %v2925
        %v2976 = vsub.f32 %v2576, %v2925
        %v2977 = vsub.f32 %v2585, %v2926
        %v2978 = vsub.f32 %v2594, %v2926
        %v2979 = vsub.f32 %v2603, %v2927
        %v2980 = vsub.f32 %v2612, %v2927
        %v2981 = vsub.f32 %v2621, %v2928
        %v2982 = vsub.f32 %v2630, %v2928
        %v2983 = vsub.f32 %v2639, %v2929
        %v2984 = vsub.f32 %v2648, %v2929
        %v2985 = vsub.f32 %v2657, %v2930
        %v2986 = vsub.f32 %v2666, %v2930
        %v2987 = vsub.f32 %v2675, %v2931
        %v2988 = vsub.f32 %v2684, %v2931
        %v2989 = vsub.f32 %v2693, %v2932
        %v2990 = vsub.f32 %v2702, %v2932
        %v2991 = vsub.f32 %v2711, %v2933
        %v2992 = vsub.f32 %v2720, %v2933
        %v2993 = vsub.f32 %v2729, %v2934
        %v2994 = vsub.f32 %v2738, %v2934
        %v2995 = vsub.f32 %v2747, %v2935
        %v2996 = vsub.f32 %v2756, %v2935
        %v2997 = vsub.f32 %v2765, %v2936
        %v2998 = vsub.f32 %v2774, %v2936
        %v2999 = vsub.f32 %v2783, %v2937
        %v3000 = vsub.f32 %v2792, %v2937
        %v3001 = vsub.f32 %v2801, %v2938
        %v3002 = vsub.f32 %v2810, %v2938
        %v3003 = vmul.f32 %v2939, %v2939
        %v3004 = vmul.f32 %v2940, %v2940
        %v3005 = vmul.f32 %v2941, %v2941
        %v3006 = vmul.f32 %v2942, %v2942
        %v3007 = vmul.f32 %v2943, %v2943
        %v3008 = vmul.f32 %v2944, %v2944
        %v3009 = vmul.f32 %v2945, %v2945
        %v3010 = vmul.f32 %v2946, %v2946
        %v3011 = vmul.f32 %v2947, %v2947
        %v3012 = vmul.f32 %v2948, %v2948
        %v3013 = vmul.f32 %v2949, %v2949
        %v3014 = vmul.f32 %v2950, %v2950
        %v3015 = vmul.f32 %v2951, %v2951
        %v3016 = vmul.f32 %v2952, %v2952
        %v3017 = vmul.f32 %v2953, %v2953
        %v3018 = vmul.f32 %v2954, %v2954
        %v3019 = vmul.f32 %v2955, %v2955
        %v3020 = vmul.f32 %v2956, %v2956
        %v3021 = vmul.f32 %v2957, %v2957
        %v3022 = vmul.f32 %v2958, %v2958
        %v3023 = vmul.f32 %v2959, %v2959
        %v3024 = vmul.f32 %v2960, %v2960
        %v3025 = vmul.f32 %v2961, %v2961
        %v3026 = vmul.f32 %v2962, %v2962
        %v3027 = vmul.f32 %v2963, %v2963
        %v3028 = vmul.f32 %v2964, %v2964
        %v3029 = vmul.f32 %v2965, %v2965
        %v3030 = vmul.f32 %v2966, %v2966
        %v3031 = vmul.f32 %v2967, %v2967
        %v3032 = vmul.f32 %v2968, %v2968
        %v3033 = vmul.f32 %v2969, %v2969
        %v3034 = vmul.f32 %v2970, %v2970
        %v3035 = vmul.f32 %v2971, %v2971
        %v3036 = vmul.f32 %v2972, %v2972
        %v3037 = vmul.f32 %v2973, %v2973
        %v3038 = vmul.f32 %v2974, %v2974
        %v3039 = vmul.f32 %v2975, %v2975
        %v3040 = vmul.f32 %v2976, %v2976
        %v3041 = vmul.f32 %v2977, %v2977
        %v3042 = vmul.f32 %v2978, %v2978
        %v3043 = vmul.f32 %v2979, %v2979
        %v3044 = vmul.f32 %v2980, %v2980
        %v3045 = vmul.f32 %v2981, %v2981
        %v3046 = vmul.f32 %v2982, %v2982
        %v3047 = vmul.f32 %v2983, %v2983
        %v3048 = vmul.f32 %v2984, %v2984
        %v3049 = vmul.f32 %v2985, %v2985
        %v3050 = vmul.f32 %v2986, %v2986
        %v3051 = vmul.f32 %v2987, %v2987
        %v3052 = vmul.f32 %v2988, %v2988
        %v3053 = vmul.f32 %v2989, %v2989
        %v3054 = vmul.f32 %v2990, %v2990
        %v3055 = vmul.f32 %v2991, %v2991
        %v3056 = vmul.f32 %v2992, %v2992
        %v3057 = vmul.f32 %v2993, %v2993
        %v3058 = vmul.f32 %v2994, %v2994
        %v3059 = vmul.f32 %v2995, %v2995
        %v3060 = vmul.f32 %v2996, %v2996
        %v3061 = vmul.f32 %v2997, %v2997
        %v3062 = vmul.f32 %v2998, %v2998
        %v3063 = vmul.f32 %v2999, %v2999
        %v3064 = vmul.f32 %v3000, %v3000
        %v3065 = vmul.f32 %v3001, %v3001
        %v3066 = vmul.f32 %v3002, %v3002
        %v3067 = vadd.f32 %v3003, %v3004
        %3068 = vadd.xlane.f32.xlu0 %v3067
        %v3069 = vpop.xlane.xlu0 %3068
        %v3070 = vadd.f32 %v3005, %v3006
        %3071 = vadd.xlane.f32.xlu0 %v3070
        %v3072 = vpop.xlane.xlu0 %3071
        %v3073 = vadd.f32 %v3007, %v3008
        %3074 = vadd.xlane.f32.xlu0 %v3073
        %v3075 = vpop.xlane.xlu0 %3074
        %v3076 = vadd.f32 %v3009, %v3010
        %3077 = vadd.xlane.f32.xlu0 %v3076
        %v3078 = vpop.xlane.xlu0 %3077
        %v3079 = vadd.f32 %v3011, %v3012
        %3080 = vadd.xlane.f32.xlu0 %v3079
        %v3081 = vpop.xlane.xlu0 %3080
        %v3082 = vadd.f32 %v3013, %v3014
        %3083 = vadd.xlane.f32.xlu0 %v3082
        %v3084 = vpop.xlane.xlu0 %3083
        %v3085 = vadd.f32 %v3015, %v3016
        %3086 = vadd.xlane.f32.xlu0 %v3085
        %v3087 = vpop.xlane.xlu0 %3086
        %v3088 = vadd.f32 %v3017, %v3018
        %3089 = vadd.xlane.f32.xlu0 %v3088
        %v3090 = vpop.xlane.xlu0 %3089
        %v3091 = vadd.f32 %v3019, %v3020
        %3092 = vadd.xlane.f32.xlu0 %v3091
        %v3093 = vpop.xlane.xlu0 %3092
        %v3094 = vadd.f32 %v3021, %v3022
        %3095 = vadd.xlane.f32.xlu0 %v3094
        %v3096 = vpop.xlane.xlu0 %3095
        %v3097 = vadd.f32 %v3023, %v3024
        %3098 = vadd.xlane.f32.xlu0 %v3097
        %v3099 = vpop.xlane.xlu0 %3098
        %v3100 = vadd.f32 %v3025, %v3026
        %3101 = vadd.xlane.f32.xlu0 %v3100
        %v3102 = vpop.xlane.xlu0 %3101
        %v3103 = vadd.f32 %v3027, %v3028
        %3104 = vadd.xlane.f32.xlu0 %v3103
        %v3105 = vpop.xlane.xlu0 %3104
        %v3106 = vadd.f32 %v3029, %v3030
        %3107 = vadd.xlane.f32.xlu0 %v3106
        %v3108 = vpop.xlane.xlu0 %3107
        %v3109 = vadd.f32 %v3031, %v3032
        %3110 = vadd.xlane.f32.xlu0 %v3109
        %v3111 = vpop.xlane.xlu0 %3110
        %v3112 = vadd.f32 %v3033, %v3034
        %3113 = vadd.xlane.f32.xlu0 %v3112
        %v3114 = vpop.xlane.xlu0 %3113
        %v3115 = vadd.f32 %v3035, %v3036
        %3116 = vadd.xlane.f32.xlu0 %v3115
        %v3117 = vpop.xlane.xlu0 %3116
        %v3118 = vadd.f32 %v3037, %v3038
        %3119 = vadd.xlane.f32.xlu0 %v3118
        %v3120 = vpop.xlane.xlu0 %3119
        %v3121 = vadd.f32 %v3039, %v3040
        %3122 = vadd.xlane.f32.xlu0 %v3121
        %v3123 = vpop.xlane.xlu0 %3122
        %v3124 = vadd.f32 %v3041, %v3042
        %3125 = vadd.xlane.f32.xlu0 %v3124
        %v3126 = vpop.xlane.xlu0 %3125
        %v3127 = vadd.f32 %v3043, %v3044
        %3128 = vadd.xlane.f32.xlu0 %v3127
        %v3129 = vpop.xlane.xlu0 %3128
        %v3130 = vadd.f32 %v3045, %v3046
        %3131 = vadd.xlane.f32.xlu0 %v3130
        %v3132 = vpop.xlane.xlu0 %3131
        %v3133 = vadd.f32 %v3047, %v3048
        %3134 = vadd.xlane.f32.xlu0 %v3133
        %v3135 = vpop.xlane.xlu0 %3134
        %v3136 = vadd.f32 %v3049, %v3050
        %3137 = vadd.xlane.f32.xlu0 %v3136
        %v3138 = vpop.xlane.xlu0 %3137
        %v3139 = vadd.f32 %v3051, %v3052
        %3140 = vadd.xlane.f32.xlu0 %v3139
        %v3141 = vpop.xlane.xlu0 %3140
        %v3142 = vadd.f32 %v3053, %v3054
        %3143 = vadd.xlane.f32.xlu0 %v3142
        %v3144 = vpop.xlane.xlu0 %3143
        %v3145 = vadd.f32 %v3055, %v3056
        %3146 = vadd.xlane.f32.xlu0 %v3145
        %v3147 = vpop.xlane.xlu0 %3146
        %v3148 = vadd.f32 %v3057, %v3058
        %3149 = vadd.xlane.f32.xlu0 %v3148
        %v3150 = vpop.xlane.xlu0 %3149
        %v3151 = vadd.f32 %v3059, %v3060
        %3152 = vadd.xlane.f32.xlu0 %v3151
        %v3153 = vpop.xlane.xlu0 %3152
        %v3154 = vadd.f32 %v3061, %v3062
        %3155 = vadd.xlane.f32.xlu0 %v3154
        %v3156 = vpop.xlane.xlu0 %3155
        %v3157 = vadd.f32 %v3063, %v3064
        %3158 = vadd.xlane.f32.xlu0 %v3157
        %v3159 = vpop.xlane.xlu0 %3158
        %v3160 = vadd.f32 %v3065, %v3066
        %3161 = vadd.xlane.f32.xlu0 %v3160
        %v3162 = vpop.xlane.xlu0 %3161
        %v3163 = vmul.f32 %v3069, 0.003921569
        %v3164 = vmul.f32 %v3072, 0.003921569
        %v3165 = vmul.f32 %v3075, 0.003921569
        %v3166 = vmul.f32 %v3078, 0.003921569
        %v3167 = vmul.f32 %v3081, 0.003921569
        %v3168 = vmul.f32 %v3084, 0.003921569
        %v3169 = vmul.f32 %v3087, 0.003921569
        %v3170 = vmul.f32 %v3090, 0.003921569
        %v3171 = vmul.f32 %v3093, 0.003921569
        %v3172 = vmul.f32 %v3096, 0.003921569
        %v3173 = vmul.f32 %v3099, 0.003921569
        %v3174 = vmul.f32 %v3102, 0.003921569
        %v3175 = vmul.f32 %v3105, 0.003921569
        %v3176 = vmul.f32 %v3108, 0.003921569
        %v3177 = vmul.f32 %v3111, 0.003921569
        %v3178 = vmul.f32 %v3114, 0.003921569
        %v3179 = vmul.f32 %v3117, 0.003921569
        %v3180 = vmul.f32 %v3120, 0.003921569
        %v3181 = vmul.f32 %v3123, 0.003921569
        %v3182 = vmul.f32 %v3126, 0.003921569
        %v3183 = vmul.f32 %v3129, 0.003921569
        %v3184 = vmul.f32 %v3132, 0.003921569
        %v3185 = vmul.f32 %v3135, 0.003921569
        %v3186 = vmul.f32 %v3138, 0.003921569
        %v3187 = vmul.f32 %v3141, 0.003921569
        %v3188 = vmul.f32 %v3144, 0.003921569
        %v3189 = vmul.f32 %v3147, 0.003921569
        %v3190 = vmul.f32 %v3150, 0.003921569
        %v3191 = vmul.f32 %v3153, 0.003921569
        %v3192 = vmul.f32 %v3156, 0.003921569
        %v3193 = vmul.f32 %v3159, 0.003921569
        %v3194 = vmul.f32 %v3162, 0.003921569
        %v3195 = vrsqrt.pop %v3163
        %v3196 = vmul.f32 %v3163, %v3195
        %vm3197 = vcmp.eq.f32.partialorder %v3163, inf
        %v3198 = vsel %vm3197, %v3163, %v3196
        %vm3199 = vcmp.eq.f32.partialorder %v3163, 0.0
        %v3200 = vand.u32 %v3163, 2147483648
        %v3201 = vsel %vm3199, %v3200, %v3198
        %v3202 = vrsqrt.pop %v3164
        %v3203 = vmul.f32 %v3164, %v3202
        %vm3204 = vcmp.eq.f32.partialorder %v3164, inf
        %v3205 = vsel %vm3204, %v3164, %v3203
        %vm3206 = vcmp.eq.f32.partialorder %v3164, 0.0
        %v3207 = vand.u32 %v3164, 2147483648
        %v3208 = vsel %vm3206, %v3207, %v3205
        %v3209 = vrsqrt.pop %v3165
        %v3210 = vmul.f32 %v3165, %v3209
        %vm3211 = vcmp.eq.f32.partialorder %v3165, inf
        %v3212 = vsel %vm3211, %v3165, %v3210
        %vm3213 = vcmp.eq.f32.partialorder %v3165, 0.0
        %v3214 = vand.u32 %v3165, 2147483648
        %v3215 = vsel %vm3213, %v3214, %v3212
        %v3216 = vrsqrt.pop %v3166
        %v3217 = vmul.f32 %v3166, %v3216
        %vm3218 = vcmp.eq.f32.partialorder %v3166, inf
        %v3219 = vsel %vm3218, %v3166, %v3217
        %vm3220 = vcmp.eq.f32.partialorder %v3166, 0.0
        %v3221 = vand.u32 %v3166, 2147483648
        %v3222 = vsel %vm3220, %v3221, %v3219
        %v3223 = vrsqrt.pop %v3167
        %v3224 = vmul.f32 %v3167, %v3223
        %vm3225 = vcmp.eq.f32.partialorder %v3167, inf
        %v3226 = vsel %vm3225, %v3167, %v3224
        %vm3227 = vcmp.eq.f32.partialorder %v3167, 0.0
        %v3228 = vand.u32 %v3167, 2147483648
        %v3229 = vsel %vm3227, %v3228, %v3226
        %v3230 = vrsqrt.pop %v3168
        %v3231 = vmul.f32 %v3168, %v3230
        %vm3232 = vcmp.eq.f32.partialorder %v3168, inf
        %v3233 = vsel %vm3232, %v3168, %v3231
        %vm3234 = vcmp.eq.f32.partialorder %v3168, 0.0
        %v3235 = vand.u32 %v3168, 2147483648
        %v3236 = vsel %vm3234, %v3235, %v3233
        %v3237 = vrsqrt.pop %v3169
        %v3238 = vmul.f32 %v3169, %v3237
        %vm3239 = vcmp.eq.f32.partialorder %v3169, inf
        %v3240 = vsel %vm3239, %v3169, %v3238
        %vm3241 = vcmp.eq.f32.partialorder %v3169, 0.0
        %v3242 = vand.u32 %v3169, 2147483648
        %v3243 = vsel %vm3241, %v3242, %v3240
        %v3244 = vrsqrt.pop %v3170
        %v3245 = vmul.f32 %v3170, %v3244
        %vm3246 = vcmp.eq.f32.partialorder %v3170, inf
        %v3247 = vsel %vm3246, %v3170, %v3245
        %vm3248 = vcmp.eq.f32.partialorder %v3170, 0.0
        %v3249 = vand.u32 %v3170, 2147483648
        %v3250 = vsel %vm3248, %v3249, %v3247
        %v3251 = vrsqrt.pop %v3171
        %v3252 = vmul.f32 %v3171, %v3251
        %vm3253 = vcmp.eq.f32.partialorder %v3171, inf
        %v3254 = vsel %vm3253, %v3171, %v3252
        %vm3255 = vcmp.eq.f32.partialorder %v3171, 0.0
        %v3256 = vand.u32 %v3171, 2147483648
        %v3257 = vsel %vm3255, %v3256, %v3254
        %v3258 = vrsqrt.pop %v3172
        %v3259 = vmul.f32 %v3172, %v3258
        %vm3260 = vcmp.eq.f32.partialorder %v3172, inf
        %v3261 = vsel %vm3260, %v3172, %v3259
        %vm3262 = vcmp.eq.f32.partialorder %v3172, 0.0
        %v3263 = vand.u32 %v3172, 2147483648
        %v3264 = vsel %vm3262, %v3263, %v3261
        %v3265 = vrsqrt.pop %v3173
        %v3266 = vmul.f32 %v3173, %v3265
        %vm3267 = vcmp.eq.f32.partialorder %v3173, inf
        %v3268 = vsel %vm3267, %v3173, %v3266
        %vm3269 = vcmp.eq.f32.partialorder %v3173, 0.0
        %v3270 = vand.u32 %v3173, 2147483648
        %v3271 = vsel %vm3269, %v3270, %v3268
        %v3272 = vrsqrt.pop %v3174
        %v3273 = vmul.f32 %v3174, %v3272
        %vm3274 = vcmp.eq.f32.partialorder %v3174, inf
        %v3275 = vsel %vm3274, %v3174, %v3273
        %vm3276 = vcmp.eq.f32.partialorder %v3174, 0.0
        %v3277 = vand.u32 %v3174, 2147483648
        %v3278 = vsel %vm3276, %v3277, %v3275
        %v3279 = vrsqrt.pop %v3175
        %v3280 = vmul.f32 %v3175, %v3279
        %vm3281 = vcmp.eq.f32.partialorder %v3175, inf
        %v3282 = vsel %vm3281, %v3175, %v3280
        %vm3283 = vcmp.eq.f32.partialorder %v3175, 0.0
        %v3284 = vand.u32 %v3175, 2147483648
        %v3285 = vsel %vm3283, %v3284, %v3282
        %v3286 = vrsqrt.pop %v3176
        %v3287 = vmul.f32 %v3176, %v3286
        %vm3288 = vcmp.eq.f32.partialorder %v3176, inf
        %v3289 = vsel %vm3288, %v3176, %v3287
        %vm3290 = vcmp.eq.f32.partialorder %v3176, 0.0
        %v3291 = vand.u32 %v3176, 2147483648
        %v3292 = vsel %vm3290, %v3291, %v3289
        %v3293 = vrsqrt.pop %v3177
        %v3294 = vmul.f32 %v3177, %v3293
        %vm3295 = vcmp.eq.f32.partialorder %v3177, inf
        %v3296 = vsel %vm3295, %v3177, %v3294
        %vm3297 = vcmp.eq.f32.partialorder %v3177, 0.0
        %v3298 = vand.u32 %v3177, 2147483648
        %v3299 = vsel %vm3297, %v3298, %v3296
        %v3300 = vrsqrt.pop %v3178
        %v3301 = vmul.f32 %v3178, %v3300
        %vm3302 = vcmp.eq.f32.partialorder %v3178, inf
        %v3303 = vsel %vm3302, %v3178, %v3301
        %vm3304 = vcmp.eq.f32.partialorder %v3178, 0.0
        %v3305 = vand.u32 %v3178, 2147483648
        %v3306 = vsel %vm3304, %v3305, %v3303
        %v3307 = vrsqrt.pop %v3179
        %v3308 = vmul.f32 %v3179, %v3307
        %vm3309 = vcmp.eq.f32.partialorder %v3179, inf
        %v3310 = vsel %vm3309, %v3179, %v3308
        %vm3311 = vcmp.eq.f32.partialorder %v3179, 0.0
        %v3312 = vand.u32 %v3179, 2147483648
        %v3313 = vsel %vm3311, %v3312, %v3310
        %v3314 = vrsqrt.pop %v3180
        %v3315 = vmul.f32 %v3180, %v3314
        %vm3316 = vcmp.eq.f32.partialorder %v3180, inf
        %v3317 = vsel %vm3316, %v3180, %v3315
        %vm3318 = vcmp.eq.f32.partialorder %v3180, 0.0
        %v3319 = vand.u32 %v3180, 2147483648
        %v3320 = vsel %vm3318, %v3319, %v3317
        %v3321 = vrsqrt.pop %v3181
        %v3322 = vmul.f32 %v3181, %v3321
        %vm3323 = vcmp.eq.f32.partialorder %v3181, inf
        %v3324 = vsel %vm3323, %v3181, %v3322
        %vm3325 = vcmp.eq.f32.partialorder %v3181, 0.0
        %v3326 = vand.u32 %v3181, 2147483648
        %v3327 = vsel %vm3325, %v3326, %v3324
        %v3328 = vrsqrt.pop %v3182
        %v3329 = vmul.f32 %v3182, %v3328
        %vm3330 = vcmp.eq.f32.partialorder %v3182, inf
        %v3331 = vsel %vm3330, %v3182, %v3329
        %vm3332 = vcmp.eq.f32.partialorder %v3182, 0.0
        %v3333 = vand.u32 %v3182, 2147483648
        %v3334 = vsel %vm3332, %v3333, %v3331
        %v3335 = vrsqrt.pop %v3183
        %v3336 = vmul.f32 %v3183, %v3335
        %vm3337 = vcmp.eq.f32.partialorder %v3183, inf
        %v3338 = vsel %vm3337, %v3183, %v3336
        %vm3339 = vcmp.eq.f32.partialorder %v3183, 0.0
        %v3340 = vand.u32 %v3183, 2147483648
        %v3341 = vsel %vm3339, %v3340, %v3338
        %v3342 = vrsqrt.pop %v3184
        %v3343 = vmul.f32 %v3184, %v3342
        %vm3344 = vcmp.eq.f32.partialorder %v3184, inf
        %v3345 = vsel %vm3344, %v3184, %v3343
        %vm3346 = vcmp.eq.f32.partialorder %v3184, 0.0
        %v3347 = vand.u32 %v3184, 2147483648
        %v3348 = vsel %vm3346, %v3347, %v3345
        %v3349 = vrsqrt.pop %v3185
        %v3350 = vmul.f32 %v3185, %v3349
        %vm3351 = vcmp.eq.f32.partialorder %v3185, inf
        %v3352 = vsel %vm3351, %v3185, %v3350
        %vm3353 = vcmp.eq.f32.partialorder %v3185, 0.0
        %v3354 = vand.u32 %v3185, 2147483648
        %v3355 = vsel %vm3353, %v3354, %v3352
        %v3356 = vrsqrt.pop %v3186
        %v3357 = vmul.f32 %v3186, %v3356
        %vm3358 = vcmp.eq.f32.partialorder %v3186, inf
        %v3359 = vsel %vm3358, %v3186, %v3357
        %vm3360 = vcmp.eq.f32.partialorder %v3186, 0.0
        %v3361 = vand.u32 %v3186, 2147483648
        %v3362 = vsel %vm3360, %v3361, %v3359
        %v3363 = vrsqrt.pop %v3187
        %v3364 = vmul.f32 %v3187, %v3363
        %vm3365 = vcmp.eq.f32.partialorder %v3187, inf
        %v3366 = vsel %vm3365, %v3187, %v3364
        %vm3367 = vcmp.eq.f32.partialorder %v3187, 0.0
        %v3368 = vand.u32 %v3187, 2147483648
        %v3369 = vsel %vm3367, %v3368, %v3366
        %v3370 = vrsqrt.pop %v3188
        %v3371 = vmul.f32 %v3188, %v3370
        %vm3372 = vcmp.eq.f32.partialorder %v3188, inf
        %v3373 = vsel %vm3372, %v3188, %v3371
        %vm3374 = vcmp.eq.f32.partialorder %v3188, 0.0
        %v3375 = vand.u32 %v3188, 2147483648
        %v3376 = vsel %vm3374, %v3375, %v3373
        %v3377 = vrsqrt.pop %v3189
        %v3378 = vmul.f32 %v3189, %v3377
        %vm3379 = vcmp.eq.f32.partialorder %v3189, inf
        %v3380 = vsel %vm3379, %v3189, %v3378
        %vm3381 = vcmp.eq.f32.partialorder %v3189, 0.0
        %v3382 = vand.u32 %v3189, 2147483648
        %v3383 = vsel %vm3381, %v3382, %v3380
        %v3384 = vrsqrt.pop %v3190
        %v3385 = vmul.f32 %v3190, %v3384
        %vm3386 = vcmp.eq.f32.partialorder %v3190, inf
        %v3387 = vsel %vm3386, %v3190, %v3385
        %vm3388 = vcmp.eq.f32.partialorder %v3190, 0.0
        %v3389 = vand.u32 %v3190, 2147483648
        %v3390 = vsel %vm3388, %v3389, %v3387
        %v3391 = vrsqrt.pop %v3191
        %v3392 = vmul.f32 %v3191, %v3391
        %vm3393 = vcmp.eq.f32.partialorder %v3191, inf
        %v3394 = vsel %vm3393, %v3191, %v3392
        %vm3395 = vcmp.eq.f32.partialorder %v3191, 0.0
        %v3396 = vand.u32 %v3191, 2147483648
        %v3397 = vsel %vm3395, %v3396, %v3394
        %v3398 = vrsqrt.pop %v3192
        %v3399 = vmul.f32 %v3192, %v3398
        %vm3400 = vcmp.eq.f32.partialorder %v3192, inf
        %v3401 = vsel %vm3400, %v3192, %v3399
        %vm3402 = vcmp.eq.f32.partialorder %v3192, 0.0
        %v3403 = vand.u32 %v3192, 2147483648
        %v3404 = vsel %vm3402, %v3403, %v3401
        %v3405 = vrsqrt.pop %v3193
        %v3406 = vmul.f32 %v3193, %v3405
        %vm3407 = vcmp.eq.f32.partialorder %v3193, inf
        %v3408 = vsel %vm3407, %v3193, %v3406
        %vm3409 = vcmp.eq.f32.partialorder %v3193, 0.0
        %v3410 = vand.u32 %v3193, 2147483648
        %v3411 = vsel %vm3409, %v3410, %v3408
        %v3412 = vrsqrt.pop %v3194
        %v3413 = vmul.f32 %v3194, %v3412
        %vm3414 = vcmp.eq.f32.partialorder %v3194, inf
        %v3415 = vsel %vm3414, %v3194, %v3413
        %vm3416 = vcmp.eq.f32.partialorder %v3194, 0.0
        %v3417 = vand.u32 %v3194, 2147483648
        %v3418 = vsel %vm3416, %v3417, %v3415
        %v3419 = vadd.f32 %v3201, 1e-05
        %v3420 = vadd.f32 %v3208, 1e-05
        %v3421 = vadd.f32 %v3215, 1e-05
        %v3422 = vadd.f32 %v3222, 1e-05
        %v3423 = vadd.f32 %v3229, 1e-05
        %v3424 = vadd.f32 %v3236, 1e-05
        %v3425 = vadd.f32 %v3243, 1e-05
        %v3426 = vadd.f32 %v3250, 1e-05
        %v3427 = vadd.f32 %v3257, 1e-05
        %v3428 = vadd.f32 %v3264, 1e-05
        %v3429 = vadd.f32 %v3271, 1e-05
        %v3430 = vadd.f32 %v3278, 1e-05
        %v3431 = vadd.f32 %v3285, 1e-05
        %v3432 = vadd.f32 %v3292, 1e-05
        %v3433 = vadd.f32 %v3299, 1e-05
        %v3434 = vadd.f32 %v3306, 1e-05
        %v3435 = vadd.f32 %v3313, 1e-05
        %v3436 = vadd.f32 %v3320, 1e-05
        %v3437 = vadd.f32 %v3327, 1e-05
        %v3438 = vadd.f32 %v3334, 1e-05
        %v3439 = vadd.f32 %v3341, 1e-05
        %v3440 = vadd.f32 %v3348, 1e-05
        %v3441 = vadd.f32 %v3355, 1e-05
        %v3442 = vadd.f32 %v3362, 1e-05
        %v3443 = vadd.f32 %v3369, 1e-05
        %v3444 = vadd.f32 %v3376, 1e-05
        %v3445 = vadd.f32 %v3383, 1e-05
        %v3446 = vadd.f32 %v3390, 1e-05
        %v3447 = vadd.f32 %v3397, 1e-05
        %v3448 = vadd.f32 %v3404, 1e-05
        %v3449 = vadd.f32 %v3411, 1e-05
        %v3450 = vadd.f32 %v3418, 1e-05
        %v3451 = vrcp.pop %v3419
        %v3452 = vmul.f32 1.0, %v3451
        %v3453 = vrcp.pop %v3420
        %v3454 = vmul.f32 1.0, %v3453
        %v3455 = vrcp.pop %v3421
        %v3456 = vmul.f32 1.0, %v3455
        %v3457 = vrcp.pop %v3422
        %v3458 = vmul.f32 1.0, %v3457
        %v3459 = vrcp.pop %v3423
        %v3460 = vmul.f32 1.0, %v3459
        %v3461 = vrcp.pop %v3424
        %v3462 = vmul.f32 1.0, %v3461
        %v3463 = vrcp.pop %v3425
        %v3464 = vmul.f32 1.0, %v3463
        %v3465 = vrcp.pop %v3426
        %v3466 = vmul.f32 1.0, %v3465
        %v3467 = vrcp.pop %v3427
        %v3468 = vmul.f32 1.0, %v3467
        %v3469 = vrcp.pop %v3428
        %v3470 = vmul.f32 1.0, %v3469
        %v3471 = vrcp.pop %v3429
        %v3472 = vmul.f32 1.0, %v3471
        %v3473 = vrcp.pop %v3430
        %v3474 = vmul.f32 1.0, %v3473
        %v3475 = vrcp.pop %v3431
        %v3476 = vmul.f32 1.0, %v3475
        %v3477 = vrcp.pop %v3432
        %v3478 = vmul.f32 1.0, %v3477
        %v3479 = vrcp.pop %v3433
        %v3480 = vmul.f32 1.0, %v3479
        %v3481 = vrcp.pop %v3434
        %v3482 = vmul.f32 1.0, %v3481
        %v3483 = vrcp.pop %v3435
        %v3484 = vmul.f32 1.0, %v3483
        %v3485 = vrcp.pop %v3436
        %v3486 = vmul.f32 1.0, %v3485
        %v3487 = vrcp.pop %v3437
        %v3488 = vmul.f32 1.0, %v3487
        %v3489 = vrcp.pop %v3438
        %v3490 = vmul.f32 1.0, %v3489
        %v3491 = vrcp.pop %v3439
        %v3492 = vmul.f32 1.0, %v3491
        %v3493 = vrcp.pop %v3440
        %v3494 = vmul.f32 1.0, %v3493
        %v3495 = vrcp.pop %v3441
        %v3496 = vmul.f32 1.0, %v3495
        %v3497 = vrcp.pop %v3442
        %v3498 = vmul.f32 1.0, %v3497
        %v3499 = vrcp.pop %v3443
        %v3500 = vmul.f32 1.0, %v3499
        %v3501 = vrcp.pop %v3444
        %v3502 = vmul.f32 1.0, %v3501
        %v3503 = vrcp.pop %v3445
        %v3504 = vmul.f32 1.0, %v3503
        %v3505 = vrcp.pop %v3446
        %v3506 = vmul.f32 1.0, %v3505
        %v3507 = vrcp.pop %v3447
        %v3508 = vmul.f32 1.0, %v3507
        %v3509 = vrcp.pop %v3448
        %v3510 = vmul.f32 1.0, %v3509
        %v3511 = vrcp.pop %v3449
        %v3512 = vmul.f32 1.0, %v3511
        %v3513 = vrcp.pop %v3450
        %v3514 = vmul.f32 1.0, %v3513
        %v3515 = vld [vmem:[%s306] sm:$0x1]
        %v3516 = vld [vmem:[%s306 + $0x1] sm:$0x1]
        %v3517 = vld [vmem:[%s306 + $0x2] sm:$0x1]
        %v3518 = vld [vmem:[%s306 + $0x3] sm:$0x1]
        %v3519 = vld [vmem:[%s306 + $0x4] sm:$0x1]
        %v3520 = vld [vmem:[%s306 + $0x5] sm:$0x1]
        %v3521 = vld [vmem:[%s306 + $0x6] sm:$0x1]
        %v3522 = vld [vmem:[%s306 + $0x7] sm:$0x1]
        %v3523 = vld [vmem:[%s306 + $0x8] sm:$0x1]
        %v3524 = vld [vmem:[%s306 + $0x9] sm:$0x1]
        %v3525 = vld [vmem:[%s306 + $0xa] sm:$0x1]
        %v3526 = vld [vmem:[%s306 + $0xb] sm:$0x1]
        %v3527 = vld [vmem:[%s306 + $0xc] sm:$0x1]
        %v3528 = vld [vmem:[%s306 + $0xd] sm:$0x1]
        %v3529 = vld [vmem:[%s306 + $0xe] sm:$0x1]
        %v3530 = vld [vmem:[%s306 + $0xf] sm:$0x1]
        %v3531 = vld [vmem:[%s306 + $0x10] sm:$0x1]
        %v3532 = vld [vmem:[%s306 + $0x11] sm:$0x1]
        %v3533 = vld [vmem:[%s306 + $0x12] sm:$0x1]
        %v3534 = vld [vmem:[%s306 + $0x13] sm:$0x1]
        %v3535 = vld [vmem:[%s306 + $0x14] sm:$0x1]
        %v3536 = vld [vmem:[%s306 + $0x15] sm:$0x1]
        %v3537 = vld [vmem:[%s306 + $0x16] sm:$0x1]
        %v3538 = vld [vmem:[%s306 + $0x17] sm:$0x1]
        %v3539 = vld [vmem:[%s306 + $0x18] sm:$0x1]
        %v3540 = vld [vmem:[%s306 + $0x19] sm:$0x1]
        %v3541 = vld [vmem:[%s306 + $0x1a] sm:$0x1]
        %v3542 = vld [vmem:[%s306 + $0x1b] sm:$0x1]
        %v3543 = vld [vmem:[%s306 + $0x1c] sm:$0x1]
        %v3544 = vld [vmem:[%s306 + $0x1d] sm:$0x1]
        %v3545 = vld [vmem:[%s306 + $0x1e] sm:$0x1]
        %v3546 = vld [vmem:[%s306 + $0x1f] sm:$0x1]
        %v3547 = vmul.f32 %v3452, %v3515
        %v3548 = vmul.f32 %v3454, %v3516
        %v3549 = vmul.f32 %v3456, %v3517
        %v3550 = vmul.f32 %v3458, %v3518
        %v3551 = vmul.f32 %v3460, %v3519
        %v3552 = vmul.f32 %v3462, %v3520
        %v3553 = vmul.f32 %v3464, %v3521
        %v3554 = vmul.f32 %v3466, %v3522
        %v3555 = vmul.f32 %v3468, %v3523
        %v3556 = vmul.f32 %v3470, %v3524
        %v3557 = vmul.f32 %v3472, %v3525
        %v3558 = vmul.f32 %v3474, %v3526
        %v3559 = vmul.f32 %v3476, %v3527
        %v3560 = vmul.f32 %v3478, %v3528
        %v3561 = vmul.f32 %v3480, %v3529
        %v3562 = vmul.f32 %v3482, %v3530
        %v3563 = vmul.f32 %v3484, %v3531
        %v3564 = vmul.f32 %v3486, %v3532
        %v3565 = vmul.f32 %v3488, %v3533
        %v3566 = vmul.f32 %v3490, %v3534
        %v3567 = vmul.f32 %v3492, %v3535
        %v3568 = vmul.f32 %v3494, %v3536
        %v3569 = vmul.f32 %v3496, %v3537
        %v3570 = vmul.f32 %v3498, %v3538
        %v3571 = vmul.f32 %v3500, %v3539
        %v3572 = vmul.f32 %v3502, %v3540
        %v3573 = vmul.f32 %v3504, %v3541
        %v3574 = vmul.f32 %v3506, %v3542
        %v3575 = vmul.f32 %v3508, %v3543
        %v3576 = vmul.f32 %v3510, %v3544
        %v3577 = vmul.f32 %v3512, %v3545
        %v3578 = vmul.f32 %v3514, %v3546
        %3580 = vset.pattern.permute.xlu0 0
        %3581 = vperm.xlu0 %3580, %v3547
        %v3582 = vpop.permute.xlu0 %3581
        %v3584 = vlaneseq
        %v3585 = vshrl.u32 %v3584, 7
        %v3586 = vsub.s32 0, %v3585
        %v3587 = vrot.slane %v3582, %v3586
        %3589 = vset.pattern.permute.xlu0 0
        %3590 = vperm.xlu0 %3589, %v3548
        %v3591 = vpop.permute.xlu0 %3590
        %v3593 = vlaneseq
        %v3594 = vshrl.u32 %v3593, 7
        %v3595 = vsub.s32 0, %v3594
        %v3596 = vrot.slane %v3591, %v3595
        %3598 = vset.pattern.permute.xlu0 0
        %3599 = vperm.xlu0 %3598, %v3549
        %v3600 = vpop.permute.xlu0 %3599
        %v3602 = vlaneseq
        %v3603 = vshrl.u32 %v3602, 7
        %v3604 = vsub.s32 0, %v3603
        %v3605 = vrot.slane %v3600, %v3604
        %3607 = vset.pattern.permute.xlu0 0
        %3608 = vperm.xlu0 %3607, %v3550
        %v3609 = vpop.permute.xlu0 %3608
        %v3611 = vlaneseq
        %v3612 = vshrl.u32 %v3611, 7
        %v3613 = vsub.s32 0, %v3612
        %v3614 = vrot.slane %v3609, %v3613
        %3616 = vset.pattern.permute.xlu0 0
        %3617 = vperm.xlu0 %3616, %v3551
        %v3618 = vpop.permute.xlu0 %3617
        %v3620 = vlaneseq
        %v3621 = vshrl.u32 %v3620, 7
        %v3622 = vsub.s32 0, %v3621
        %v3623 = vrot.slane %v3618, %v3622
        %3625 = vset.pattern.permute.xlu0 0
        %3626 = vperm.xlu0 %3625, %v3552
        %v3627 = vpop.permute.xlu0 %3626
        %v3629 = vlaneseq
        %v3630 = vshrl.u32 %v3629, 7
        %v3631 = vsub.s32 0, %v3630
        %v3632 = vrot.slane %v3627, %v3631
        %3634 = vset.pattern.permute.xlu0 0
        %3635 = vperm.xlu0 %3634, %v3553
        %v3636 = vpop.permute.xlu0 %3635
        %v3638 = vlaneseq
        %v3639 = vshrl.u32 %v3638, 7
        %v3640 = vsub.s32 0, %v3639
        %v3641 = vrot.slane %v3636, %v3640
        %3643 = vset.pattern.permute.xlu0 0
        %3644 = vperm.xlu0 %3643, %v3554
        %v3645 = vpop.permute.xlu0 %3644
        %v3647 = vlaneseq
        %v3648 = vshrl.u32 %v3647, 7
        %v3649 = vsub.s32 0, %v3648
        %v3650 = vrot.slane %v3645, %v3649
        %3652 = vset.pattern.permute.xlu0 0
        %3653 = vperm.xlu0 %3652, %v3555
        %v3654 = vpop.permute.xlu0 %3653
        %v3656 = vlaneseq
        %v3657 = vshrl.u32 %v3656, 7
        %v3658 = vsub.s32 0, %v3657
        %v3659 = vrot.slane %v3654, %v3658
        %3661 = vset.pattern.permute.xlu0 0
        %3662 = vperm.xlu0 %3661, %v3556
        %v3663 = vpop.permute.xlu0 %3662
        %v3665 = vlaneseq
        %v3666 = vshrl.u32 %v3665, 7
        %v3667 = vsub.s32 0, %v3666
        %v3668 = vrot.slane %v3663, %v3667
        %3670 = vset.pattern.permute.xlu0 0
        %3671 = vperm.xlu0 %3670, %v3557
        %v3672 = vpop.permute.xlu0 %3671
        %v3674 = vlaneseq
        %v3675 = vshrl.u32 %v3674, 7
        %v3676 = vsub.s32 0, %v3675
        %v3677 = vrot.slane %v3672, %v3676
        %3679 = vset.pattern.permute.xlu0 0
        %3680 = vperm.xlu0 %3679, %v3558
        %v3681 = vpop.permute.xlu0 %3680
        %v3683 = vlaneseq
        %v3684 = vshrl.u32 %v3683, 7
        %v3685 = vsub.s32 0, %v3684
        %v3686 = vrot.slane %v3681, %v3685
        %3688 = vset.pattern.permute.xlu0 0
        %3689 = vperm.xlu0 %3688, %v3559
        %v3690 = vpop.permute.xlu0 %3689
        %v3692 = vlaneseq
        %v3693 = vshrl.u32 %v3692, 7
        %v3694 = vsub.s32 0, %v3693
        %v3695 = vrot.slane %v3690, %v3694
        %3697 = vset.pattern.permute.xlu0 0
        %3698 = vperm.xlu0 %3697, %v3560
        %v3699 = vpop.permute.xlu0 %3698
        %v3701 = vlaneseq
        %v3702 = vshrl.u32 %v3701, 7
        %v3703 = vsub.s32 0, %v3702
        %v3704 = vrot.slane %v3699, %v3703
        %3706 = vset.pattern.permute.xlu0 0
        %3707 = vperm.xlu0 %3706, %v3561
        %v3708 = vpop.permute.xlu0 %3707
        %v3710 = vlaneseq
        %v3711 = vshrl.u32 %v3710, 7
        %v3712 = vsub.s32 0, %v3711
        %v3713 = vrot.slane %v3708, %v3712
        %3715 = vset.pattern.permute.xlu0 0
        %3716 = vperm.xlu0 %3715, %v3562
        %v3717 = vpop.permute.xlu0 %3716
        %v3719 = vlaneseq
        %v3720 = vshrl.u32 %v3719, 7
        %v3721 = vsub.s32 0, %v3720
        %v3722 = vrot.slane %v3717, %v3721
        %3724 = vset.pattern.permute.xlu0 0
        %3725 = vperm.xlu0 %3724, %v3563
        %v3726 = vpop.permute.xlu0 %3725
        %v3728 = vlaneseq
        %v3729 = vshrl.u32 %v3728, 7
        %v3730 = vsub.s32 0, %v3729
        %v3731 = vrot.slane %v3726, %v3730
        %3733 = vset.pattern.permute.xlu0 0
        %3734 = vperm.xlu0 %3733, %v3564
        %v3735 = vpop.permute.xlu0 %3734
        %v3737 = vlaneseq
        %v3738 = vshrl.u32 %v3737, 7
        %v3739 = vsub.s32 0, %v3738
        %v3740 = vrot.slane %v3735, %v3739
        %3742 = vset.pattern.permute.xlu0 0
        %3743 = vperm.xlu0 %3742, %v3565
        %v3744 = vpop.permute.xlu0 %3743
        %v3746 = vlaneseq
        %v3747 = vshrl.u32 %v3746, 7
        %v3748 = vsub.s32 0, %v3747
        %v3749 = vrot.slane %v3744, %v3748
        %3751 = vset.pattern.permute.xlu0 0
        %3752 = vperm.xlu0 %3751, %v3566
        %v3753 = vpop.permute.xlu0 %3752
        %v3755 = vlaneseq
        %v3756 = vshrl.u32 %v3755, 7
        %v3757 = vsub.s32 0, %v3756
        %v3758 = vrot.slane %v3753, %v3757
        %3760 = vset.pattern.permute.xlu0 0
        %3761 = vperm.xlu0 %3760, %v3567
        %v3762 = vpop.permute.xlu0 %3761
        %v3764 = vlaneseq
        %v3765 = vshrl.u32 %v3764, 7
        %v3766 = vsub.s32 0, %v3765
        %v3767 = vrot.slane %v3762, %v3766
        %3769 = vset.pattern.permute.xlu0 0
        %3770 = vperm.xlu0 %3769, %v3568
        %v3771 = vpop.permute.xlu0 %3770
        %v3773 = vlaneseq
        %v3774 = vshrl.u32 %v3773, 7
        %v3775 = vsub.s32 0, %v3774
        %v3776 = vrot.slane %v3771, %v3775
        %3778 = vset.pattern.permute.xlu0 0
        %3779 = vperm.xlu0 %3778, %v3569
        %v3780 = vpop.permute.xlu0 %3779
        %v3782 = vlaneseq
        %v3783 = vshrl.u32 %v3782, 7
        %v3784 = vsub.s32 0, %v3783
        %v3785 = vrot.slane %v3780, %v3784
        %3787 = vset.pattern.permute.xlu0 0
        %3788 = vperm.xlu0 %3787, %v3570
        %v3789 = vpop.permute.xlu0 %3788
        %v3791 = vlaneseq
        %v3792 = vshrl.u32 %v3791, 7
        %v3793 = vsub.s32 0, %v3792
        %v3794 = vrot.slane %v3789, %v3793
        %3796 = vset.pattern.permute.xlu0 0
        %3797 = vperm.xlu0 %3796, %v3571
        %v3798 = vpop.permute.xlu0 %3797
        %v3800 = vlaneseq
        %v3801 = vshrl.u32 %v3800, 7
        %v3802 = vsub.s32 0, %v3801
        %v3803 = vrot.slane %v3798, %v3802
        %3805 = vset.pattern.permute.xlu0 0
        %3806 = vperm.xlu0 %3805, %v3572
        %v3807 = vpop.permute.xlu0 %3806
        %v3809 = vlaneseq
        %v3810 = vshrl.u32 %v3809, 7
        %v3811 = vsub.s32 0, %v3810
        %v3812 = vrot.slane %v3807, %v3811
        %3814 = vset.pattern.permute.xlu0 0
        %3815 = vperm.xlu0 %3814, %v3573
        %v3816 = vpop.permute.xlu0 %3815
        %v3818 = vlaneseq
        %v3819 = vshrl.u32 %v3818, 7
        %v3820 = vsub.s32 0, %v3819
        %v3821 = vrot.slane %v3816, %v3820
        %3823 = vset.pattern.permute.xlu0 0
        %3824 = vperm.xlu0 %3823, %v3574
        %v3825 = vpop.permute.xlu0 %3824
        %v3827 = vlaneseq
        %v3828 = vshrl.u32 %v3827, 7
        %v3829 = vsub.s32 0, %v3828
        %v3830 = vrot.slane %v3825, %v3829
        %3832 = vset.pattern.permute.xlu0 0
        %3833 = vperm.xlu0 %3832, %v3575
        %v3834 = vpop.permute.xlu0 %3833
        %v3836 = vlaneseq
        %v3837 = vshrl.u32 %v3836, 7
        %v3838 = vsub.s32 0, %v3837
        %v3839 = vrot.slane %v3834, %v3838
        %3841 = vset.pattern.permute.xlu0 0
        %3842 = vperm.xlu0 %3841, %v3576
        %v3843 = vpop.permute.xlu0 %3842
        %v3845 = vlaneseq
        %v3846 = vshrl.u32 %v3845, 7
        %v3847 = vsub.s32 0, %v3846
        %v3848 = vrot.slane %v3843, %v3847
        %3850 = vset.pattern.permute.xlu0 0
        %3851 = vperm.xlu0 %3850, %v3577
        %v3852 = vpop.permute.xlu0 %3851
        %v3854 = vlaneseq
        %v3855 = vshrl.u32 %v3854, 7
        %v3856 = vsub.s32 0, %v3855
        %v3857 = vrot.slane %v3852, %v3856
        %3859 = vset.pattern.permute.xlu0 0
        %3860 = vperm.xlu0 %3859, %v3578
        %v3861 = vpop.permute.xlu0 %3860
        %v3863 = vlaneseq
        %v3864 = vshrl.u32 %v3863, 7
        %v3865 = vsub.s32 0, %v3864
        %v3866 = vrot.slane %v3861, %v3865
        %v3867 = vmul.f32 %v2939, %v3587
        %v3868 = vmul.f32 %v2940, %v3587
        %v3869 = vmul.f32 %v2941, %v3596
        %v3870 = vmul.f32 %v2942, %v3596
        %v3871 = vmul.f32 %v2943, %v3605
        %v3872 = vmul.f32 %v2944, %v3605
        %v3873 = vmul.f32 %v2945, %v3614
        %v3874 = vmul.f32 %v2946, %v3614
        %v3875 = vmul.f32 %v2947, %v3623
        %v3876 = vmul.f32 %v2948, %v3623
        %v3877 = vmul.f32 %v2949, %v3632
        %v3878 = vmul.f32 %v2950, %v3632
        %v3879 = vmul.f32 %v2951, %v3641
        %v3880 = vmul.f32 %v2952, %v3641
        %v3881 = vmul.f32 %v2953, %v3650
        %v3882 = vmul.f32 %v2954, %v3650
        %v3883 = vmul.f32 %v2955, %v3659
        %v3884 = vmul.f32 %v2956, %v3659
        %v3885 = vmul.f32 %v2957, %v3668
        %v3886 = vmul.f32 %v2958, %v3668
        %v3887 = vmul.f32 %v2959, %v3677
        %v3888 = vmul.f32 %v2960, %v3677
        %v3889 = vmul.f32 %v2961, %v3686
        %v3890 = vmul.f32 %v2962, %v3686
        %v3891 = vmul.f32 %v2963, %v3695
        %v3892 = vmul.f32 %v2964, %v3695
        %v3893 = vmul.f32 %v2965, %v3704
        %v3894 = vmul.f32 %v2966, %v3704
        %v3895 = vmul.f32 %v2967, %v3713
        %v3896 = vmul.f32 %v2968, %v3713
        %v3897 = vmul.f32 %v2969, %v3722
        %v3898 = vmul.f32 %v2970, %v3722
        %v3899 = vmul.f32 %v2971, %v3731
        %v3900 = vmul.f32 %v2972, %v3731
        %v3901 = vmul.f32 %v2973, %v3740
        %v3902 = vmul.f32 %v2974, %v3740
        %v3903 = vmul.f32 %v2975, %v3749
        %v3904 = vmul.f32 %v2976, %v3749
        %v3905 = vmul.f32 %v2977, %v3758
        %v3906 = vmul.f32 %v2978, %v3758
        %v3907 = vmul.f32 %v2979, %v3767
        %v3908 = vmul.f32 %v2980, %v3767
        %v3909 = vmul.f32 %v2981, %v3776
        %v3910 = vmul.f32 %v2982, %v3776
        %v3911 = vmul.f32 %v2983, %v3785
        %v3912 = vmul.f32 %v2984, %v3785
        %v3913 = vmul.f32 %v2985, %v3794
        %v3914 = vmul.f32 %v2986, %v3794
        %v3915 = vmul.f32 %v2987, %v3803
        %v3916 = vmul.f32 %v2988, %v3803
        %v3917 = vmul.f32 %v2989, %v3812
        %v3918 = vmul.f32 %v2990, %v3812
        %v3919 = vmul.f32 %v2991, %v3821
        %v3920 = vmul.f32 %v2992, %v3821
        %v3921 = vmul.f32 %v2993, %v3830
        %v3922 = vmul.f32 %v2994, %v3830
        %v3923 = vmul.f32 %v2995, %v3839
        %v3924 = vmul.f32 %v2996, %v3839
        %v3925 = vmul.f32 %v2997, %v3848
        %v3926 = vmul.f32 %v2998, %v3848
        %v3927 = vmul.f32 %v2999, %v3857
        %v3928 = vmul.f32 %v3000, %v3857
        %v3929 = vmul.f32 %v3001, %v3866
        %v3930 = vmul.f32 %v3002, %v3866
        %v3931 = vld [vmem:[%s311] sm:$0x1]
        %v3932 = vld [vmem:[%s311 + $0x1] sm:$0x1]
        %v3933 = vld [vmem:[%s311 + $0x2] sm:$0x1]
        %v3934 = vld [vmem:[%s311 + $0x3] sm:$0x1]
        %v3935 = vld [vmem:[%s311 + $0x4] sm:$0x1]
        %v3936 = vld [vmem:[%s311 + $0x5] sm:$0x1]
        %v3937 = vld [vmem:[%s311 + $0x6] sm:$0x1]
        %v3938 = vld [vmem:[%s311 + $0x7] sm:$0x1]
        %v3939 = vld [vmem:[%s311 + $0x8] sm:$0x1]
        %v3940 = vld [vmem:[%s311 + $0x9] sm:$0x1]
        %v3941 = vld [vmem:[%s311 + $0xa] sm:$0x1]
        %v3942 = vld [vmem:[%s311 + $0xb] sm:$0x1]
        %v3943 = vld [vmem:[%s311 + $0xc] sm:$0x1]
        %v3944 = vld [vmem:[%s311 + $0xd] sm:$0x1]
        %v3945 = vld [vmem:[%s311 + $0xe] sm:$0x1]
        %v3946 = vld [vmem:[%s311 + $0xf] sm:$0x1]
        %v3947 = vld [vmem:[%s311 + $0x10] sm:$0x1]
        %v3948 = vld [vmem:[%s311 + $0x11] sm:$0x1]
        %v3949 = vld [vmem:[%s311 + $0x12] sm:$0x1]
        %v3950 = vld [vmem:[%s311 + $0x13] sm:$0x1]
        %v3951 = vld [vmem:[%s311 + $0x14] sm:$0x1]
        %v3952 = vld [vmem:[%s311 + $0x15] sm:$0x1]
        %v3953 = vld [vmem:[%s311 + $0x16] sm:$0x1]
        %v3954 = vld [vmem:[%s311 + $0x17] sm:$0x1]
        %v3955 = vld [vmem:[%s311 + $0x18] sm:$0x1]
        %v3956 = vld [vmem:[%s311 + $0x19] sm:$0x1]
        %v3957 = vld [vmem:[%s311 + $0x1a] sm:$0x1]
        %v3958 = vld [vmem:[%s311 + $0x1b] sm:$0x1]
        %v3959 = vld [vmem:[%s311 + $0x1c] sm:$0x1]
        %v3960 = vld [vmem:[%s311 + $0x1d] sm:$0x1]
        %v3961 = vld [vmem:[%s311 + $0x1e] sm:$0x1]
        %v3962 = vld [vmem:[%s311 + $0x1f] sm:$0x1]
        %3964 = vset.pattern.permute.xlu0 0
        %3965 = vperm.xlu0 %3964, %v3931
        %v3966 = vpop.permute.xlu0 %3965
        %v3968 = vlaneseq
        %v3969 = vshrl.u32 %v3968, 7
        %v3970 = vsub.s32 0, %v3969
        %v3971 = vrot.slane %v3966, %v3970
        %3973 = vset.pattern.permute.xlu0 0
        %3974 = vperm.xlu0 %3973, %v3932
        %v3975 = vpop.permute.xlu0 %3974
        %v3977 = vlaneseq
        %v3978 = vshrl.u32 %v3977, 7
        %v3979 = vsub.s32 0, %v3978
        %v3980 = vrot.slane %v3975, %v3979
        %3982 = vset.pattern.permute.xlu0 0
        %3983 = vperm.xlu0 %3982, %v3933
        %v3984 = vpop.permute.xlu0 %3983
        %v3986 = vlaneseq
        %v3987 = vshrl.u32 %v3986, 7
        %v3988 = vsub.s32 0, %v3987
        %v3989 = vrot.slane %v3984, %v3988
        %3991 = vset.pattern.permute.xlu0 0
        %3992 = vperm.xlu0 %3991, %v3934
        %v3993 = vpop.permute.xlu0 %3992
        %v3995 = vlaneseq
        %v3996 = vshrl.u32 %v3995, 7
        %v3997 = vsub.s32 0, %v3996
        %v3998 = vrot.slane %v3993, %v3997
        %4000 = vset.pattern.permute.xlu0 0
        %4001 = vperm.xlu0 %4000, %v3935
        %v4002 = vpop.permute.xlu0 %4001
        %v4004 = vlaneseq
        %v4005 = vshrl.u32 %v4004, 7
        %v4006 = vsub.s32 0, %v4005
        %v4007 = vrot.slane %v4002, %v4006
        %4009 = vset.pattern.permute.xlu0 0
        %4010 = vperm.xlu0 %4009, %v3936
        %v4011 = vpop.permute.xlu0 %4010
        %v4013 = vlaneseq
        %v4014 = vshrl.u32 %v4013, 7
        %v4015 = vsub.s32 0, %v4014
        %v4016 = vrot.slane %v4011, %v4015
        %4018 = vset.pattern.permute.xlu0 0
        %4019 = vperm.xlu0 %4018, %v3937
        %v4020 = vpop.permute.xlu0 %4019
        %v4022 = vlaneseq
        %v4023 = vshrl.u32 %v4022, 7
        %v4024 = vsub.s32 0, %v4023
        %v4025 = vrot.slane %v4020, %v4024
        %4027 = vset.pattern.permute.xlu0 0
        %4028 = vperm.xlu0 %4027, %v3938
        %v4029 = vpop.permute.xlu0 %4028
        %v4031 = vlaneseq
        %v4032 = vshrl.u32 %v4031, 7
        %v4033 = vsub.s32 0, %v4032
        %v4034 = vrot.slane %v4029, %v4033
        %4036 = vset.pattern.permute.xlu0 0
        %4037 = vperm.xlu0 %4036, %v3939
        %v4038 = vpop.permute.xlu0 %4037
        %v4040 = vlaneseq
        %v4041 = vshrl.u32 %v4040, 7
        %v4042 = vsub.s32 0, %v4041
        %v4043 = vrot.slane %v4038, %v4042
        %4045 = vset.pattern.permute.xlu0 0
        %4046 = vperm.xlu0 %4045, %v3940
        %v4047 = vpop.permute.xlu0 %4046
        %v4049 = vlaneseq
        %v4050 = vshrl.u32 %v4049, 7
        %v4051 = vsub.s32 0, %v4050
        %v4052 = vrot.slane %v4047, %v4051
        %4054 = vset.pattern.permute.xlu0 0
        %4055 = vperm.xlu0 %4054, %v3941
        %v4056 = vpop.permute.xlu0 %4055
        %v4058 = vlaneseq
        %v4059 = vshrl.u32 %v4058, 7
        %v4060 = vsub.s32 0, %v4059
        %v4061 = vrot.slane %v4056, %v4060
        %4063 = vset.pattern.permute.xlu0 0
        %4064 = vperm.xlu0 %4063, %v3942
        %v4065 = vpop.permute.xlu0 %4064
        %v4067 = vlaneseq
        %v4068 = vshrl.u32 %v4067, 7
        %v4069 = vsub.s32 0, %v4068
        %v4070 = vrot.slane %v4065, %v4069
        %4072 = vset.pattern.permute.xlu0 0
        %4073 = vperm.xlu0 %4072, %v3943
        %v4074 = vpop.permute.xlu0 %4073
        %v4076 = vlaneseq
        %v4077 = vshrl.u32 %v4076, 7
        %v4078 = vsub.s32 0, %v4077
        %v4079 = vrot.slane %v4074, %v4078
        %4081 = vset.pattern.permute.xlu0 0
        %4082 = vperm.xlu0 %4081, %v3944
        %v4083 = vpop.permute.xlu0 %4082
        %v4085 = vlaneseq
        %v4086 = vshrl.u32 %v4085, 7
        %v4087 = vsub.s32 0, %v4086
        %v4088 = vrot.slane %v4083, %v4087
        %4090 = vset.pattern.permute.xlu0 0
        %4091 = vperm.xlu0 %4090, %v3945
        %v4092 = vpop.permute.xlu0 %4091
        %v4094 = vlaneseq
        %v4095 = vshrl.u32 %v4094, 7
        %v4096 = vsub.s32 0, %v4095
        %v4097 = vrot.slane %v4092, %v4096
        %4099 = vset.pattern.permute.xlu0 0
        %4100 = vperm.xlu0 %4099, %v3946
        %v4101 = vpop.permute.xlu0 %4100
        %v4103 = vlaneseq
        %v4104 = vshrl.u32 %v4103, 7
        %v4105 = vsub.s32 0, %v4104
        %v4106 = vrot.slane %v4101, %v4105
        %4108 = vset.pattern.permute.xlu0 0
        %4109 = vperm.xlu0 %4108, %v3947
        %v4110 = vpop.permute.xlu0 %4109
        %v4112 = vlaneseq
        %v4113 = vshrl.u32 %v4112, 7
        %v4114 = vsub.s32 0, %v4113
        %v4115 = vrot.slane %v4110, %v4114
        %4117 = vset.pattern.permute.xlu0 0
        %4118 = vperm.xlu0 %4117, %v3948
        %v4119 = vpop.permute.xlu0 %4118
        %v4121 = vlaneseq
        %v4122 = vshrl.u32 %v4121, 7
        %v4123 = vsub.s32 0, %v4122
        %v4124 = vrot.slane %v4119, %v4123
        %4126 = vset.pattern.permute.xlu0 0
        %4127 = vperm.xlu0 %4126, %v3949
        %v4128 = vpop.permute.xlu0 %4127
        %v4130 = vlaneseq
        %v4131 = vshrl.u32 %v4130, 7
        %v4132 = vsub.s32 0, %v4131
        %v4133 = vrot.slane %v4128, %v4132
        %4135 = vset.pattern.permute.xlu0 0
        %4136 = vperm.xlu0 %4135, %v3950
        %v4137 = vpop.permute.xlu0 %4136
        %v4139 = vlaneseq
        %v4140 = vshrl.u32 %v4139, 7
        %v4141 = vsub.s32 0, %v4140
        %v4142 = vrot.slane %v4137, %v4141
        %4144 = vset.pattern.permute.xlu0 0
        %4145 = vperm.xlu0 %4144, %v3951
        %v4146 = vpop.permute.xlu0 %4145
        %v4148 = vlaneseq
        %v4149 = vshrl.u32 %v4148, 7
        %v4150 = vsub.s32 0, %v4149
        %v4151 = vrot.slane %v4146, %v4150
        %4153 = vset.pattern.permute.xlu0 0
        %4154 = vperm.xlu0 %4153, %v3952
        %v4155 = vpop.permute.xlu0 %4154
        %v4157 = vlaneseq
        %v4158 = vshrl.u32 %v4157, 7
        %v4159 = vsub.s32 0, %v4158
        %v4160 = vrot.slane %v4155, %v4159
        %4162 = vset.pattern.permute.xlu0 0
        %4163 = vperm.xlu0 %4162, %v3953
        %v4164 = vpop.permute.xlu0 %4163
        %v4166 = vlaneseq
        %v4167 = vshrl.u32 %v4166, 7
        %v4168 = vsub.s32 0, %v4167
        %v4169 = vrot.slane %v4164, %v4168
        %4171 = vset.pattern.permute.xlu0 0
        %4172 = vperm.xlu0 %4171, %v3954
        %v4173 = vpop.permute.xlu0 %4172
        %v4175 = vlaneseq
        %v4176 = vshrl.u32 %v4175, 7
        %v4177 = vsub.s32 0, %v4176
        %v4178 = vrot.slane %v4173, %v4177
        %4180 = vset.pattern.permute.xlu0 0
        %4181 = vperm.xlu0 %4180, %v3955
        %v4182 = vpop.permute.xlu0 %4181
        %v4184 = vlaneseq
        %v4185 = vshrl.u32 %v4184, 7
        %v4186 = vsub.s32 0, %v4185
        %v4187 = vrot.slane %v4182, %v4186
        %4189 = vset.pattern.permute.xlu0 0
        %4190 = vperm.xlu0 %4189, %v3956
        %v4191 = vpop.permute.xlu0 %4190
        %v4193 = vlaneseq
        %v4194 = vshrl.u32 %v4193, 7
        %v4195 = vsub.s32 0, %v4194
        %v4196 = vrot.slane %v4191, %v4195
        %4198 = vset.pattern.permute.xlu0 0
        %4199 = vperm.xlu0 %4198, %v3957
        %v4200 = vpop.permute.xlu0 %4199
        %v4202 = vlaneseq
        %v4203 = vshrl.u32 %v4202, 7
        %v4204 = vsub.s32 0, %v4203
        %v4205 = vrot.slane %v4200, %v4204
        %4207 = vset.pattern.permute.xlu0 0
        %4208 = vperm.xlu0 %4207, %v3958
        %v4209 = vpop.permute.xlu0 %4208
        %v4211 = vlaneseq
        %v4212 = vshrl.u32 %v4211, 7
        %v4213 = vsub.s32 0, %v4212
        %v4214 = vrot.slane %v4209, %v4213
        %4216 = vset.pattern.permute.xlu0 0
        %4217 = vperm.xlu0 %4216, %v3959
        %v4218 = vpop.permute.xlu0 %4217
        %v4220 = vlaneseq
        %v4221 = vshrl.u32 %v4220, 7
        %v4222 = vsub.s32 0, %v4221
        %v4223 = vrot.slane %v4218, %v4222
        %4225 = vset.pattern.permute.xlu0 0
        %4226 = vperm.xlu0 %4225, %v3960
        %v4227 = vpop.permute.xlu0 %4226
        %v4229 = vlaneseq
        %v4230 = vshrl.u32 %v4229, 7
        %v4231 = vsub.s32 0, %v4230
        %v4232 = vrot.slane %v4227, %v4231
        %4234 = vset.pattern.permute.xlu0 0
        %4235 = vperm.xlu0 %4234, %v3961
        %v4236 = vpop.permute.xlu0 %4235
        %v4238 = vlaneseq
        %v4239 = vshrl.u32 %v4238, 7
        %v4240 = vsub.s32 0, %v4239
        %v4241 = vrot.slane %v4236, %v4240
        %4243 = vset.pattern.permute.xlu0 0
        %4244 = vperm.xlu0 %4243, %v3962
        %v4245 = vpop.permute.xlu0 %4244
        %v4247 = vlaneseq
        %v4248 = vshrl.u32 %v4247, 7
        %v4249 = vsub.s32 0, %v4248
        %v4250 = vrot.slane %v4245, %v4249
        %v4251 = vadd.f32 %v3867, %v3971
        %v4252 = vadd.f32 %v3868, %v3971
        %v4253 = vadd.f32 %v3869, %v3980
        %v4254 = vadd.f32 %v3870, %v3980
        %v4255 = vadd.f32 %v3871, %v3989
        %v4256 = vadd.f32 %v3872, %v3989
        %v4257 = vadd.f32 %v3873, %v3998
        %v4258 = vadd.f32 %v3874, %v3998
        %v4259 = vadd.f32 %v3875, %v4007
        %v4260 = vadd.f32 %v3876, %v4007
        %v4261 = vadd.f32 %v3877, %v4016
        %v4262 = vadd.f32 %v3878, %v4016
        %v4263 = vadd.f32 %v3879, %v4025
        %v4264 = vadd.f32 %v3880, %v4025
        %v4265 = vadd.f32 %v3881, %v4034
        %v4266 = vadd.f32 %v3882, %v4034
        %v4267 = vadd.f32 %v3883, %v4043
        %v4268 = vadd.f32 %v3884, %v4043
        %v4269 = vadd.f32 %v3885, %v4052
        %v4270 = vadd.f32 %v3886, %v4052
        %v4271 = vadd.f32 %v3887, %v4061
        %v4272 = vadd.f32 %v3888, %v4061
        %v4273 = vadd.f32 %v3889, %v4070
        %v4274 = vadd.f32 %v3890, %v4070
        %v4275 = vadd.f32 %v3891, %v4079
        %v4276 = vadd.f32 %v3892, %v4079
        %v4277 = vadd.f32 %v3893, %v4088
        %v4278 = vadd.f32 %v3894, %v4088
        %v4279 = vadd.f32 %v3895, %v4097
        %v4280 = vadd.f32 %v3896, %v4097
        %v4281 = vadd.f32 %v3897, %v4106
        %v4282 = vadd.f32 %v3898, %v4106
        %v4283 = vadd.f32 %v3899, %v4115
        %v4284 = vadd.f32 %v3900, %v4115
        %v4285 = vadd.f32 %v3901, %v4124
        %v4286 = vadd.f32 %v3902, %v4124
        %v4287 = vadd.f32 %v3903, %v4133
        %v4288 = vadd.f32 %v3904, %v4133
        %v4289 = vadd.f32 %v3905, %v4142
        %v4290 = vadd.f32 %v3906, %v4142
        %v4291 = vadd.f32 %v3907, %v4151
        %v4292 = vadd.f32 %v3908, %v4151
        %v4293 = vadd.f32 %v3909, %v4160
        %v4294 = vadd.f32 %v3910, %v4160
        %v4295 = vadd.f32 %v3911, %v4169
        %v4296 = vadd.f32 %v3912, %v4169
        %v4297 = vadd.f32 %v3913, %v4178
        %v4298 = vadd.f32 %v3914, %v4178
        %v4299 = vadd.f32 %v3915, %v4187
        %v4300 = vadd.f32 %v3916, %v4187
        %v4301 = vadd.f32 %v3917, %v4196
        %v4302 = vadd.f32 %v3918, %v4196
        %v4303 = vadd.f32 %v3919, %v4205
        %v4304 = vadd.f32 %v3920, %v4205
        %v4305 = vadd.f32 %v3921, %v4214
        %v4306 = vadd.f32 %v3922, %v4214
        %v4307 = vadd.f32 %v3923, %v4223
        %v4308 = vadd.f32 %v3924, %v4223
        %v4309 = vadd.f32 %v3925, %v4232
        %v4310 = vadd.f32 %v3926, %v4232
        %v4311 = vadd.f32 %v3927, %v4241
        %v4312 = vadd.f32 %v3928, %v4241
        %v4313 = vadd.f32 %v3929, %v4250
        %v4314 = vadd.f32 %v3930, %v4250
        %v4315 = vmul.f32 %v4251, 0.5
        %v4316 = vmul.f32 %v4252, 0.5
        %v4317 = vmul.f32 %v4253, 0.5
        %v4318 = vmul.f32 %v4254, 0.5
        %v4319 = vmul.f32 %v4255, 0.5
        %v4320 = vmul.f32 %v4256, 0.5
        %v4321 = vmul.f32 %v4257, 0.5
        %v4322 = vmul.f32 %v4258, 0.5
        %v4323 = vmul.f32 %v4259, 0.5
        %v4324 = vmul.f32 %v4260, 0.5
        %v4325 = vmul.f32 %v4261, 0.5
        %v4326 = vmul.f32 %v4262, 0.5
        %v4327 = vmul.f32 %v4263, 0.5
        %v4328 = vmul.f32 %v4264, 0.5
        %v4329 = vmul.f32 %v4265, 0.5
        %v4330 = vmul.f32 %v4266, 0.5
        %v4331 = vmul.f32 %v4267, 0.5
        %v4332 = vmul.f32 %v4268, 0.5
        %v4333 = vmul.f32 %v4269, 0.5
        %v4334 = vmul.f32 %v4270, 0.5
        %v4335 = vmul.f32 %v4271, 0.5
        %v4336 = vmul.f32 %v4272, 0.5
        %v4337 = vmul.f32 %v4273, 0.5
        %v4338 = vmul.f32 %v4274, 0.5
        %v4339 = vmul.f32 %v4275, 0.5
        %v4340 = vmul.f32 %v4276, 0.5
        %v4341 = vmul.f32 %v4277, 0.5
        %v4342 = vmul.f32 %v4278, 0.5
        %v4343 = vmul.f32 %v4279, 0.5
        %v4344 = vmul.f32 %v4280, 0.5
        %v4345 = vmul.f32 %v4281, 0.5
        %v4346 = vmul.f32 %v4282, 0.5
        %v4347 = vmul.f32 %v4283, 0.5
        %v4348 = vmul.f32 %v4284, 0.5
        %v4349 = vmul.f32 %v4285, 0.5
        %v4350 = vmul.f32 %v4286, 0.5
        %v4351 = vmul.f32 %v4287, 0.5
        %v4352 = vmul.f32 %v4288, 0.5
        %v4353 = vmul.f32 %v4289, 0.5
        %v4354 = vmul.f32 %v4290, 0.5
        %v4355 = vmul.f32 %v4291, 0.5
        %v4356 = vmul.f32 %v4292, 0.5
        %v4357 = vmul.f32 %v4293, 0.5
        %v4358 = vmul.f32 %v4294, 0.5
        %v4359 = vmul.f32 %v4295, 0.5
        %v4360 = vmul.f32 %v4296, 0.5
        %v4361 = vmul.f32 %v4297, 0.5
        %v4362 = vmul.f32 %v4298, 0.5
        %v4363 = vmul.f32 %v4299, 0.5
        %v4364 = vmul.f32 %v4300, 0.5
        %v4365 = vmul.f32 %v4301, 0.5
        %v4366 = vmul.f32 %v4302, 0.5
        %v4367 = vmul.f32 %v4303, 0.5
        %v4368 = vmul.f32 %v4304, 0.5
        %v4369 = vmul.f32 %v4305, 0.5
        %v4370 = vmul.f32 %v4306, 0.5
        %v4371 = vmul.f32 %v4307, 0.5
        %v4372 = vmul.f32 %v4308, 0.5
        %v4373 = vmul.f32 %v4309, 0.5
        %v4374 = vmul.f32 %v4310, 0.5
        %v4375 = vmul.f32 %v4311, 0.5
        %v4376 = vmul.f32 %v4312, 0.5
        %v4377 = vmul.f32 %v4313, 0.5
        %v4378 = vmul.f32 %v4314, 0.5
        %v4379 = vtanh.pop %v4315
        %v4380 = vtanh.pop %v4316
        %v4381 = vtanh.pop %v4317
        %v4382 = vtanh.pop %v4318
        %v4383 = vtanh.pop %v4319
        %v4384 = vtanh.pop %v4320
        %v4385 = vtanh.pop %v4321
        %v4386 = vtanh.pop %v4322
        %v4387 = vtanh.pop %v4323
        %v4388 = vtanh.pop %v4324
        %v4389 = vtanh.pop %v4325
        %v4390 = vtanh.pop %v4326
        %v4391 = vtanh.pop %v4327
        %v4392 = vtanh.pop %v4328
        %v4393 = vtanh.pop %v4329
        %v4394 = vtanh.pop %v4330
        %v4395 = vtanh.pop %v4331
        %v4396 = vtanh.pop %v4332
        %v4397 = vtanh.pop %v4333
        %v4398 = vtanh.pop %v4334
        %v4399 = vtanh.pop %v4335
        %v4400 = vtanh.pop %v4336
        %v4401 = vtanh.pop %v4337
        %v4402 = vtanh.pop %v4338
        %v4403 = vtanh.pop %v4339
        %v4404 = vtanh.pop %v4340
        %v4405 = vtanh.pop %v4341
        %v4406 = vtanh.pop %v4342
        %v4407 = vtanh.pop %v4343
        %v4408 = vtanh.pop %v4344
        %v4409 = vtanh.pop %v4345
        %v4410 = vtanh.pop %v4346
        %v4411 = vtanh.pop %v4347
        %v4412 = vtanh.pop %v4348
        %v4413 = vtanh.pop %v4349
        %v4414 = vtanh.pop %v4350
        %v4415 = vtanh.pop %v4351
        %v4416 = vtanh.pop %v4352
        %v4417 = vtanh.pop %v4353
        %v4418 = vtanh.pop %v4354
        %v4419 = vtanh.pop %v4355
        %v4420 = vtanh.pop %v4356
        %v4421 = vtanh.pop %v4357
        %v4422 = vtanh.pop %v4358
        %v4423 = vtanh.pop %v4359
        %v4424 = vtanh.pop %v4360
        %v4425 = vtanh.pop %v4361
        %v4426 = vtanh.pop %v4362
        %v4427 = vtanh.pop %v4363
        %v4428 = vtanh.pop %v4364
        %v4429 = vtanh.pop %v4365
        %v4430 = vtanh.pop %v4366
        %v4431 = vtanh.pop %v4367
        %v4432 = vtanh.pop %v4368
        %v4433 = vtanh.pop %v4369
        %v4434 = vtanh.pop %v4370
        %v4435 = vtanh.pop %v4371
        %v4436 = vtanh.pop %v4372
        %v4437 = vtanh.pop %v4373
        %v4438 = vtanh.pop %v4374
        %v4439 = vtanh.pop %v4375
        %v4440 = vtanh.pop %v4376
        %v4441 = vtanh.pop %v4377
        %v4442 = vtanh.pop %v4378
        %v4443 = vmul.f32 %v4379, 0.5
        %v4444 = vmul.f32 %v4380, 0.5
        %v4445 = vmul.f32 %v4381, 0.5
        %v4446 = vmul.f32 %v4382, 0.5
        %v4447 = vmul.f32 %v4383, 0.5
        %v4448 = vmul.f32 %v4384, 0.5
        %v4449 = vmul.f32 %v4385, 0.5
        %v4450 = vmul.f32 %v4386, 0.5
        %v4451 = vmul.f32 %v4387, 0.5
        %v4452 = vmul.f32 %v4388, 0.5
        %v4453 = vmul.f32 %v4389, 0.5
        %v4454 = vmul.f32 %v4390, 0.5
        %v4455 = vmul.f32 %v4391, 0.5
        %v4456 = vmul.f32 %v4392, 0.5
        %v4457 = vmul.f32 %v4393, 0.5
        %v4458 = vmul.f32 %v4394, 0.5
        %v4459 = vmul.f32 %v4395, 0.5
        %v4460 = vmul.f32 %v4396, 0.5
        %v4461 = vmul.f32 %v4397, 0.5
        %v4462 = vmul.f32 %v4398, 0.5
        %v4463 = vmul.f32 %v4399, 0.5
        %v4464 = vmul.f32 %v4400, 0.5
        %v4465 = vmul.f32 %v4401, 0.5
        %v4466 = vmul.f32 %v4402, 0.5
        %v4467 = vmul.f32 %v4403, 0.5
        %v4468 = vmul.f32 %v4404, 0.5
        %v4469 = vmul.f32 %v4405, 0.5
        %v4470 = vmul.f32 %v4406, 0.5
        %v4471 = vmul.f32 %v4407, 0.5
        %v4472 = vmul.f32 %v4408, 0.5
        %v4473 = vmul.f32 %v4409, 0.5
        %v4474 = vmul.f32 %v4410, 0.5
        %v4475 = vmul.f32 %v4411, 0.5
        %v4476 = vmul.f32 %v4412, 0.5
        %v4477 = vmul.f32 %v4413, 0.5
        %v4478 = vmul.f32 %v4414, 0.5
        %v4479 = vmul.f32 %v4415, 0.5
        %v4480 = vmul.f32 %v4416, 0.5
        %v4481 = vmul.f32 %v4417, 0.5
        %v4482 = vmul.f32 %v4418, 0.5
        %v4483 = vmul.f32 %v4419, 0.5
        %v4484 = vmul.f32 %v4420, 0.5
        %v4485 = vmul.f32 %v4421, 0.5
        %v4486 = vmul.f32 %v4422, 0.5
        %v4487 = vmul.f32 %v4423, 0.5
        %v4488 = vmul.f32 %v4424, 0.5
        %v4489 = vmul.f32 %v4425, 0.5
        %v4490 = vmul.f32 %v4426, 0.5
        %v4491 = vmul.f32 %v4427, 0.5
        %v4492 = vmul.f32 %v4428, 0.5
        %v4493 = vmul.f32 %v4429, 0.5
        %v4494 = vmul.f32 %v4430, 0.5
        %v4495 = vmul.f32 %v4431, 0.5
        %v4496 = vmul.f32 %v4432, 0.5
        %v4497 = vmul.f32 %v4433, 0.5
        %v4498 = vmul.f32 %v4434, 0.5
        %v4499 = vmul.f32 %v4435, 0.5
        %v4500 = vmul.f32 %v4436, 0.5
        %v4501 = vmul.f32 %v4437, 0.5
        %v4502 = vmul.f32 %v4438, 0.5
        %v4503 = vmul.f32 %v4439, 0.5
        %v4504 = vmul.f32 %v4440, 0.5
        %v4505 = vmul.f32 %v4441, 0.5
        %v4506 = vmul.f32 %v4442, 0.5
        %v4507 = vadd.f32 %v4443, 0.5
        %v4508 = vadd.f32 %v4444, 0.5
        %v4509 = vadd.f32 %v4445, 0.5
        %v4510 = vadd.f32 %v4446, 0.5
        %v4511 = vadd.f32 %v4447, 0.5
        %v4512 = vadd.f32 %v4448, 0.5
        %v4513 = vadd.f32 %v4449, 0.5
        %v4514 = vadd.f32 %v4450, 0.5
        %v4515 = vadd.f32 %v4451, 0.5
        %v4516 = vadd.f32 %v4452, 0.5
        %v4517 = vadd.f32 %v4453, 0.5
        %v4518 = vadd.f32 %v4454, 0.5
        %v4519 = vadd.f32 %v4455, 0.5
        %v4520 = vadd.f32 %v4456, 0.5
        %v4521 = vadd.f32 %v4457, 0.5
        %v4522 = vadd.f32 %v4458, 0.5
        %v4523 = vadd.f32 %v4459, 0.5
        %v4524 = vadd.f32 %v4460, 0.5
        %v4525 = vadd.f32 %v4461, 0.5
        %v4526 = vadd.f32 %v4462, 0.5
        %v4527 = vadd.f32 %v4463, 0.5
        %v4528 = vadd.f32 %v4464, 0.5
        %v4529 = vadd.f32 %v4465, 0.5
        %v4530 = vadd.f32 %v4466, 0.5
        %v4531 = vadd.f32 %v4467, 0.5
        %v4532 = vadd.f32 %v4468, 0.5
        %v4533 = vadd.f32 %v4469, 0.5
        %v4534 = vadd.f32 %v4470, 0.5
        %v4535 = vadd.f32 %v4471, 0.5
        %v4536 = vadd.f32 %v4472, 0.5
        %v4537 = vadd.f32 %v4473, 0.5
        %v4538 = vadd.f32 %v4474, 0.5
        %v4539 = vadd.f32 %v4475, 0.5
        %v4540 = vadd.f32 %v4476, 0.5
        %v4541 = vadd.f32 %v4477, 0.5
        %v4542 = vadd.f32 %v4478, 0.5
        %v4543 = vadd.f32 %v4479, 0.5
        %v4544 = vadd.f32 %v4480, 0.5
        %v4545 = vadd.f32 %v4481, 0.5
        %v4546 = vadd.f32 %v4482, 0.5
        %v4547 = vadd.f32 %v4483, 0.5
        %v4548 = vadd.f32 %v4484, 0.5
        %v4549 = vadd.f32 %v4485, 0.5
        %v4550 = vadd.f32 %v4486, 0.5
        %v4551 = vadd.f32 %v4487, 0.5
        %v4552 = vadd.f32 %v4488, 0.5
        %v4553 = vadd.f32 %v4489, 0.5
        %v4554 = vadd.f32 %v4490, 0.5
        %v4555 = vadd.f32 %v4491, 0.5
        %v4556 = vadd.f32 %v4492, 0.5
        %v4557 = vadd.f32 %v4493, 0.5
        %v4558 = vadd.f32 %v4494, 0.5
        %v4559 = vadd.f32 %v4495, 0.5
        %v4560 = vadd.f32 %v4496, 0.5
        %v4561 = vadd.f32 %v4497, 0.5
        %v4562 = vadd.f32 %v4498, 0.5
        %v4563 = vadd.f32 %v4499, 0.5
        %v4564 = vadd.f32 %v4500, 0.5
        %v4565 = vadd.f32 %v4501, 0.5
        %v4566 = vadd.f32 %v4502, 0.5
        %v4567 = vadd.f32 %v4503, 0.5
        %v4568 = vadd.f32 %v4504, 0.5
        %v4569 = vadd.f32 %v4505, 0.5
        %v4570 = vadd.f32 %v4506, 0.5
        %v4571 = vmul.f32 %v314, %v4507
        %v4572 = vmul.f32 %v315, %v4508
        %v4573 = vmul.f32 %v316, %v4507
        %v4574 = vmul.f32 %v317, %v4508
        %v4575 = vmul.f32 %v318, %v4507
        %v4576 = vmul.f32 %v319, %v4508
        %v4577 = vmul.f32 %v320, %v4507
        %v4578 = vmul.f32 %v321, %v4508
        %v4579 = vmul.f32 %v322, %v4509
        %v4580 = vmul.f32 %v323, %v4510
        %v4581 = vmul.f32 %v324, %v4509
        %v4582 = vmul.f32 %v325, %v4510
        %v4583 = vmul.f32 %v326, %v4509
        %v4584 = vmul.f32 %v327, %v4510
        %v4585 = vmul.f32 %v328, %v4509
        %v4586 = vmul.f32 %v329, %v4510
        %v4587 = vmul.f32 %v330, %v4511
        %v4588 = vmul.f32 %v331, %v4512
        %v4589 = vmul.f32 %v332, %v4511
        %v4590 = vmul.f32 %v333, %v4512
        %v4591 = vmul.f32 %v334, %v4511
        %v4592 = vmul.f32 %v335, %v4512
        %v4593 = vmul.f32 %v336, %v4511
        %v4594 = vmul.f32 %v337, %v4512
        %v4595 = vmul.f32 %v338, %v4513
        %v4596 = vmul.f32 %v339, %v4514
        %v4597 = vmul.f32 %v340, %v4513
        %v4598 = vmul.f32 %v341, %v4514
        %v4599 = vmul.f32 %v342, %v4513
        %v4600 = vmul.f32 %v343, %v4514
        %v4601 = vmul.f32 %v344, %v4513
        %v4602 = vmul.f32 %v345, %v4514
        %v4603 = vmul.f32 %v346, %v4515
        %v4604 = vmul.f32 %v347, %v4516
        %v4605 = vmul.f32 %v348, %v4515
        %v4606 = vmul.f32 %v349, %v4516
        %v4607 = vmul.f32 %v350, %v4515
        %v4608 = vmul.f32 %v351, %v4516
        %v4609 = vmul.f32 %v352, %v4515
        %v4610 = vmul.f32 %v353, %v4516
        %v4611 = vmul.f32 %v354, %v4517
        %v4612 = vmul.f32 %v355, %v4518
        %v4613 = vmul.f32 %v356, %v4517
        %v4614 = vmul.f32 %v357, %v4518
        %v4615 = vmul.f32 %v358, %v4517
        %v4616 = vmul.f32 %v359, %v4518
        %v4617 = vmul.f32 %v360, %v4517
        %v4618 = vmul.f32 %v361, %v4518
        %v4619 = vmul.f32 %v362, %v4519
        %v4620 = vmul.f32 %v363, %v4520
        %v4621 = vmul.f32 %v364, %v4519
        %v4622 = vmul.f32 %v365, %v4520
        %v4623 = vmul.f32 %v366, %v4519
        %v4624 = vmul.f32 %v367, %v4520
        %v4625 = vmul.f32 %v368, %v4519
        %v4626 = vmul.f32 %v369, %v4520
        %v4627 = vmul.f32 %v370, %v4521
        %v4628 = vmul.f32 %v371, %v4522
        %v4629 = vmul.f32 %v372, %v4521
        %v4630 = vmul.f32 %v373, %v4522
        %v4631 = vmul.f32 %v374, %v4521
        %v4632 = vmul.f32 %v375, %v4522
        %v4633 = vmul.f32 %v376, %v4521
        %v4634 = vmul.f32 %v377, %v4522
        %v4635 = vmul.f32 %v378, %v4523
        %v4636 = vmul.f32 %v379, %v4524
        %v4637 = vmul.f32 %v380, %v4523
        %v4638 = vmul.f32 %v381, %v4524
        %v4639 = vmul.f32 %v382, %v4523
        %v4640 = vmul.f32 %v383, %v4524
        %v4641 = vmul.f32 %v384, %v4523
        %v4642 = vmul.f32 %v385, %v4524
        %v4643 = vmul.f32 %v386, %v4525
        %v4644 = vmul.f32 %v387, %v4526
        %v4645 = vmul.f32 %v388, %v4525
        %v4646 = vmul.f32 %v389, %v4526
        %v4647 = vmul.f32 %v390, %v4525
        %v4648 = vmul.f32 %v391, %v4526
        %v4649 = vmul.f32 %v392, %v4525
        %v4650 = vmul.f32 %v393, %v4526
        %v4651 = vmul.f32 %v394, %v4527
        %v4652 = vmul.f32 %v395, %v4528
        %v4653 = vmul.f32 %v396, %v4527
        %v4654 = vmul.f32 %v397, %v4528
        %v4655 = vmul.f32 %v398, %v4527
        %v4656 = vmul.f32 %v399, %v4528
        %v4657 = vmul.f32 %v400, %v4527
        %v4658 = vmul.f32 %v401, %v4528
        %v4659 = vmul.f32 %v402, %v4529
        %v4660 = vmul.f32 %v403, %v4530
        %v4661 = vmul.f32 %v404, %v4529
        %v4662 = vmul.f32 %v405, %v4530
        %v4663 = vmul.f32 %v406, %v4529
        %v4664 = vmul.f32 %v407, %v4530
        %v4665 = vmul.f32 %v408, %v4529
        %v4666 = vmul.f32 %v409, %v4530
        %v4667 = vmul.f32 %v410, %v4531
        %v4668 = vmul.f32 %v411, %v4532
        %v4669 = vmul.f32 %v412, %v4531
        %v4670 = vmul.f32 %v413, %v4532
        %v4671 = vmul.f32 %v414, %v4531
        %v4672 = vmul.f32 %v415, %v4532
        %v4673 = vmul.f32 %v416, %v4531
        %v4674 = vmul.f32 %v417, %v4532
        %v4675 = vmul.f32 %v418, %v4533
        %v4676 = vmul.f32 %v419, %v4534
        %v4677 = vmul.f32 %v420, %v4533
        %v4678 = vmul.f32 %v421, %v4534
        %v4679 = vmul.f32 %v422, %v4533
        %v4680 = vmul.f32 %v423, %v4534
        %v4681 = vmul.f32 %v424, %v4533
        %v4682 = vmul.f32 %v425, %v4534
        %v4683 = vmul.f32 %v426, %v4535
        %v4684 = vmul.f32 %v427, %v4536
        %v4685 = vmul.f32 %v428, %v4535
        %v4686 = vmul.f32 %v429, %v4536
        %v4687 = vmul.f32 %v430, %v4535
        %v4688 = vmul.f32 %v431, %v4536
        %v4689 = vmul.f32 %v432, %v4535
        %v4690 = vmul.f32 %v433, %v4536
        %v4691 = vmul.f32 %v434, %v4537
        %v4692 = vmul.f32 %v435, %v4538
        %v4693 = vmul.f32 %v436, %v4537
        %v4694 = vmul.f32 %v437, %v4538
        %v4695 = vmul.f32 %v438, %v4537
        %v4696 = vmul.f32 %v439, %v4538
        %v4697 = vmul.f32 %v440, %v4537
        %v4698 = vmul.f32 %v441, %v4538
        %v4699 = vmul.f32 %v442, %v4539
        %v4700 = vmul.f32 %v443, %v4540
        %v4701 = vmul.f32 %v444, %v4539
        %v4702 = vmul.f32 %v445, %v4540
        %v4703 = vmul.f32 %v446, %v4539
        %v4704 = vmul.f32 %v447, %v4540
        %v4705 = vmul.f32 %v448, %v4539
        %v4706 = vmul.f32 %v449, %v4540
        %v4707 = vmul.f32 %v450, %v4541
        %v4708 = vmul.f32 %v451, %v4542
        %v4709 = vmul.f32 %v452, %v4541
        %v4710 = vmul.f32 %v453, %v4542
        %v4711 = vmul.f32 %v454, %v4541
        %v4712 = vmul.f32 %v455, %v4542
        %v4713 = vmul.f32 %v456, %v4541
        %v4714 = vmul.f32 %v457, %v4542
        %v4715 = vmul.f32 %v458, %v4543
        %v4716 = vmul.f32 %v459, %v4544
        %v4717 = vmul.f32 %v460, %v4543
        %v4718 = vmul.f32 %v461, %v4544
        %v4719 = vmul.f32 %v462, %v4543
        %v4720 = vmul.f32 %v463, %v4544
        %v4721 = vmul.f32 %v464, %v4543
        %v4722 = vmul.f32 %v465, %v4544
        %v4723 = vmul.f32 %v466, %v4545
        %v4724 = vmul.f32 %v467, %v4546
        %v4725 = vmul.f32 %v468, %v4545
        %v4726 = vmul.f32 %v469, %v4546
        %v4727 = vmul.f32 %v470, %v4545
        %v4728 = vmul.f32 %v471, %v4546
        %v4729 = vmul.f32 %v472, %v4545
        %v4730 = vmul.f32 %v473, %v4546
        %v4731 = vmul.f32 %v474, %v4547
        %v4732 = vmul.f32 %v475, %v4548
        %v4733 = vmul.f32 %v476, %v4547
        %v4734 = vmul.f32 %v477, %v4548
        %v4735 = vmul.f32 %v478, %v4547
        %v4736 = vmul.f32 %v479, %v4548
        %v4737 = vmul.f32 %v480, %v4547
        %v4738 = vmul.f32 %v481, %v4548
        %v4739 = vmul.f32 %v482, %v4549
        %v4740 = vmul.f32 %v483, %v4550
        %v4741 = vmul.f32 %v484, %v4549
        %v4742 = vmul.f32 %v485, %v4550
        %v4743 = vmul.f32 %v486, %v4549
        %v4744 = vmul.f32 %v487, %v4550
        %v4745 = vmul.f32 %v488, %v4549
        %v4746 = vmul.f32 %v489, %v4550
        %v4747 = vmul.f32 %v490, %v4551
        %v4748 = vmul.f32 %v491, %v4552
        %v4749 = vmul.f32 %v492, %v4551
        %v4750 = vmul.f32 %v493, %v4552
        %v4751 = vmul.f32 %v494, %v4551
        %v4752 = vmul.f32 %v495, %v4552
        %v4753 = vmul.f32 %v496, %v4551
        %v4754 = vmul.f32 %v497, %v4552
        %v4755 = vmul.f32 %v498, %v4553
        %v4756 = vmul.f32 %v499, %v4554
        %v4757 = vmul.f32 %v500, %v4553
        %v4758 = vmul.f32 %v501, %v4554
        %v4759 = vmul.f32 %v502, %v4553
        %v4760 = vmul.f32 %v503, %v4554
        %v4761 = vmul.f32 %v504, %v4553
        %v4762 = vmul.f32 %v505, %v4554
        %v4763 = vmul.f32 %v506, %v4555
        %v4764 = vmul.f32 %v507, %v4556
        %v4765 = vmul.f32 %v508, %v4555
        %v4766 = vmul.f32 %v509, %v4556
        %v4767 = vmul.f32 %v510, %v4555
        %v4768 = vmul.f32 %v511, %v4556
        %v4769 = vmul.f32 %v512, %v4555
        %v4770 = vmul.f32 %v513, %v4556
        %v4771 = vmul.f32 %v514, %v4557
        %v4772 = vmul.f32 %v515, %v4558
        %v4773 = vmul.f32 %v516, %v4557
        %v4774 = vmul.f32 %v517, %v4558
        %v4775 = vmul.f32 %v518, %v4557
        %v4776 = vmul.f32 %v519, %v4558
        %v4777 = vmul.f32 %v520, %v4557
        %v4778 = vmul.f32 %v521, %v4558
        %v4779 = vmul.f32 %v522, %v4559
        %v4780 = vmul.f32 %v523, %v4560
        %v4781 = vmul.f32 %v524, %v4559
        %v4782 = vmul.f32 %v525, %v4560
        %v4783 = vmul.f32 %v526, %v4559
        %v4784 = vmul.f32 %v527, %v4560
        %v4785 = vmul.f32 %v528, %v4559
        %v4786 = vmul.f32 %v529, %v4560
        %v4787 = vmul.f32 %v530, %v4561
        %v4788 = vmul.f32 %v531, %v4562
        %v4789 = vmul.f32 %v532, %v4561
        %v4790 = vmul.f32 %v533, %v4562
        %v4791 = vmul.f32 %v534, %v4561
        %v4792 = vmul.f32 %v535, %v4562
        %v4793 = vmul.f32 %v536, %v4561
        %v4794 = vmul.f32 %v537, %v4562
        %v4795 = vmul.f32 %v538, %v4563
        %v4796 = vmul.f32 %v539, %v4564
        %v4797 = vmul.f32 %v540, %v4563
        %v4798 = vmul.f32 %v541, %v4564
        %v4799 = vmul.f32 %v542, %v4563
        %v4800 = vmul.f32 %v543, %v4564
        %v4801 = vmul.f32 %v544, %v4563
        %v4802 = vmul.f32 %v545, %v4564
        %v4803 = vmul.f32 %v546, %v4565
        %v4804 = vmul.f32 %v547, %v4566
        %v4805 = vmul.f32 %v548, %v4565
        %v4806 = vmul.f32 %v549, %v4566
        %v4807 = vmul.f32 %v550, %v4565
        %v4808 = vmul.f32 %v551, %v4566
        %v4809 = vmul.f32 %v552, %v4565
        %v4810 = vmul.f32 %v553, %v4566
        %v4811 = vmul.f32 %v554, %v4567
        %v4812 = vmul.f32 %v555, %v4568
        %v4813 = vmul.f32 %v556, %v4567
        %v4814 = vmul.f32 %v557, %v4568
        %v4815 = vmul.f32 %v558, %v4567
        %v4816 = vmul.f32 %v559, %v4568
        %v4817 = vmul.f32 %v560, %v4567
        %v4818 = vmul.f32 %v561, %v4568
        %v4819 = vmul.f32 %v562, %v4569
        %v4820 = vmul.f32 %v563, %v4570
        %v4821 = vmul.f32 %v564, %v4569
        %v4822 = vmul.f32 %v565, %v4570
        %v4823 = vmul.f32 %v566, %v4569
        %v4824 = vmul.f32 %v567, %v4570
        %v4825 = vmul.f32 %v568, %v4569
        %v4826 = vmul.f32 %v569, %v4570
        %4827 = vst [vmem:[%s290] sm:$0xff] %v4571
        %4828 = vst [vmem:[%s290 + $0x8] sm:$0xff] %v4572
        %4829 = vst [vmem:[%s290 + $0x10] sm:$0xff] %v4573
        %4830 = vst [vmem:[%s290 + $0x18] sm:$0xff] %v4574
        %4831 = vst [vmem:[%s290 + $0x20] sm:$0xff] %v4575
        %4832 = vst [vmem:[%s290 + $0x28] sm:$0xff] %v4576
        %4833 = vst [vmem:[%s290 + $0x30] sm:$0xff] %v4577
        %4834 = vst [vmem:[%s290 + $0x38] sm:$0xff] %v4578
        %4835 = vst [vmem:[%s290 + $0x40] sm:$0xff] %v4579
        %4836 = vst [vmem:[%s290 + $0x48] sm:$0xff] %v4580
        %4837 = vst [vmem:[%s290 + $0x50] sm:$0xff] %v4581
        %4838 = vst [vmem:[%s290 + $0x58] sm:$0xff] %v4582
        %4839 = vst [vmem:[%s290 + $0x60] sm:$0xff] %v4583
        %4840 = vst [vmem:[%s290 + $0x68] sm:$0xff] %v4584
        %4841 = vst [vmem:[%s290 + $0x70] sm:$0xff] %v4585
        %4842 = vst [vmem:[%s290 + $0x78] sm:$0xff] %v4586
        %4843 = vst [vmem:[%s290 + $0x80] sm:$0xff] %v4587
        %4844 = vst [vmem:[%s290 + $0x88] sm:$0xff] %v4588
        %4845 = vst [vmem:[%s290 + $0x90] sm:$0xff] %v4589
        %4846 = vst [vmem:[%s290 + $0x98] sm:$0xff] %v4590
        %4847 = vst [vmem:[%s290 + $0xa0] sm:$0xff] %v4591
        %4848 = vst [vmem:[%s290 + $0xa8] sm:$0xff] %v4592
        %4849 = vst [vmem:[%s290 + $0xb0] sm:$0xff] %v4593
        %4850 = vst [vmem:[%s290 + $0xb8] sm:$0xff] %v4594
        %4851 = vst [vmem:[%s290 + $0xc0] sm:$0xff] %v4595
        %4852 = vst [vmem:[%s290 + $0xc8] sm:$0xff] %v4596
        %4853 = vst [vmem:[%s290 + $0xd0] sm:$0xff] %v4597
        %4854 = vst [vmem:[%s290 + $0xd8] sm:$0xff] %v4598
        %4855 = vst [vmem:[%s290 + $0xe0] sm:$0xff] %v4599
        %4856 = vst [vmem:[%s290 + $0xe8] sm:$0xff] %v4600
        %4857 = vst [vmem:[%s290 + $0xf0] sm:$0xff] %v4601
        %4858 = vst [vmem:[%s290 + $0xf8] sm:$0xff] %v4602
        %4859 = vst [vmem:[%s290 + $0x100] sm:$0xff] %v4603
        %4860 = vst [vmem:[%s290 + $0x108] sm:$0xff] %v4604
        %4861 = vst [vmem:[%s290 + $0x110] sm:$0xff] %v4605
        %4862 = vst [vmem:[%s290 + $0x118] sm:$0xff] %v4606
        %4863 = vst [vmem:[%s290 + $0x120] sm:$0xff] %v4607
        %4864 = vst [vmem:[%s290 + $0x128] sm:$0xff] %v4608
        %4865 = vst [vmem:[%s290 + $0x130] sm:$0xff] %v4609
        %4866 = vst [vmem:[%s290 + $0x138] sm:$0xff] %v4610
        %4867 = vst [vmem:[%s290 + $0x140] sm:$0xff] %v4611
        %4868 = vst [vmem:[%s290 + $0x148] sm:$0xff] %v4612
        %4869 = vst [vmem:[%s290 + $0x150] sm:$0xff] %v4613
        %4870 = vst [vmem:[%s290 + $0x158] sm:$0xff] %v4614
        %4871 = vst [vmem:[%s290 + $0x160] sm:$0xff] %v4615
        %4872 = vst [vmem:[%s290 + $0x168] sm:$0xff] %v4616
        %4873 = vst [vmem:[%s290 + $0x170] sm:$0xff] %v4617
        %4874 = vst [vmem:[%s290 + $0x178] sm:$0xff] %v4618
        %4875 = vst [vmem:[%s290 + $0x180] sm:$0xff] %v4619
        %4876 = vst [vmem:[%s290 + $0x188] sm:$0xff] %v4620
        %4877 = vst [vmem:[%s290 + $0x190] sm:$0xff] %v4621
        %4878 = vst [vmem:[%s290 + $0x198] sm:$0xff] %v4622
        %4879 = vst [vmem:[%s290 + $0x1a0] sm:$0xff] %v4623
        %4880 = vst [vmem:[%s290 + $0x1a8] sm:$0xff] %v4624
        %4881 = vst [vmem:[%s290 + $0x1b0] sm:$0xff] %v4625
        %4882 = vst [vmem:[%s290 + $0x1b8] sm:$0xff] %v4626
        %4883 = vst [vmem:[%s290 + $0x1c0] sm:$0xff] %v4627
        %4884 = vst [vmem:[%s290 + $0x1c8] sm:$0xff] %v4628
        %4885 = vst [vmem:[%s290 + $0x1d0] sm:$0xff] %v4629
        %4886 = vst [vmem:[%s290 + $0x1d8] sm:$0xff] %v4630
        %4887 = vst [vmem:[%s290 + $0x1e0] sm:$0xff] %v4631
        %4888 = vst [vmem:[%s290 + $0x1e8] sm:$0xff] %v4632
        %4889 = vst [vmem:[%s290 + $0x1f0] sm:$0xff] %v4633
        %4890 = vst [vmem:[%s290 + $0x1f8] sm:$0xff] %v4634
        %4891 = vst [vmem:[%s290 + $0x200] sm:$0xff] %v4635
        %4892 = vst [vmem:[%s290 + $0x208] sm:$0xff] %v4636
        %4893 = vst [vmem:[%s290 + $0x210] sm:$0xff] %v4637
        %4894 = vst [vmem:[%s290 + $0x218] sm:$0xff] %v4638
        %4895 = vst [vmem:[%s290 + $0x220] sm:$0xff] %v4639
        %4896 = vst [vmem:[%s290 + $0x228] sm:$0xff] %v4640
        %4897 = vst [vmem:[%s290 + $0x230] sm:$0xff] %v4641
        %4898 = vst [vmem:[%s290 + $0x238] sm:$0xff] %v4642
        %4899 = vst [vmem:[%s290 + $0x240] sm:$0xff] %v4643
        %4900 = vst [vmem:[%s290 + $0x248] sm:$0xff] %v4644
        %4901 = vst [vmem:[%s290 + $0x250] sm:$0xff] %v4645
        %4902 = vst [vmem:[%s290 + $0x258] sm:$0xff] %v4646
        %4903 = vst [vmem:[%s290 + $0x260] sm:$0xff] %v4647
        %4904 = vst [vmem:[%s290 + $0x268] sm:$0xff] %v4648
        %4905 = vst [vmem:[%s290 + $0x270] sm:$0xff] %v4649
        %4906 = vst [vmem:[%s290 + $0x278] sm:$0xff] %v4650
        %4907 = vst [vmem:[%s290 + $0x280] sm:$0xff] %v4651
        %4908 = vst [vmem:[%s290 + $0x288] sm:$0xff] %v4652
        %4909 = vst [vmem:[%s290 + $0x290] sm:$0xff] %v4653
        %4910 = vst [vmem:[%s290 + $0x298] sm:$0xff] %v4654
        %4911 = vst [vmem:[%s290 + $0x2a0] sm:$0xff] %v4655
        %4912 = vst [vmem:[%s290 + $0x2a8] sm:$0xff] %v4656
        %4913 = vst [vmem:[%s290 + $0x2b0] sm:$0xff] %v4657
        %4914 = vst [vmem:[%s290 + $0x2b8] sm:$0xff] %v4658
        %4915 = vst [vmem:[%s290 + $0x2c0] sm:$0xff] %v4659
        %4916 = vst [vmem:[%s290 + $0x2c8] sm:$0xff] %v4660
        %4917 = vst [vmem:[%s290 + $0x2d0] sm:$0xff] %v4661
        %4918 = vst [vmem:[%s290 + $0x2d8] sm:$0xff] %v4662
        %4919 = vst [vmem:[%s290 + $0x2e0] sm:$0xff] %v4663
        %4920 = vst [vmem:[%s290 + $0x2e8] sm:$0xff] %v4664
        %4921 = vst [vmem:[%s290 + $0x2f0] sm:$0xff] %v4665
        %4922 = vst [vmem:[%s290 + $0x2f8] sm:$0xff] %v4666
        %4923 = vst [vmem:[%s290 + $0x300] sm:$0xff] %v4667
        %4924 = vst [vmem:[%s290 + $0x308] sm:$0xff] %v4668
        %4925 = vst [vmem:[%s290 + $0x310] sm:$0xff] %v4669
        %4926 = vst [vmem:[%s290 + $0x318] sm:$0xff] %v4670
        %4927 = vst [vmem:[%s290 + $0x320] sm:$0xff] %v4671
        %4928 = vst [vmem:[%s290 + $0x328] sm:$0xff] %v4672
        %4929 = vst [vmem:[%s290 + $0x330] sm:$0xff] %v4673
        %4930 = vst [vmem:[%s290 + $0x338] sm:$0xff] %v4674
        %4931 = vst [vmem:[%s290 + $0x340] sm:$0xff] %v4675
        %4932 = vst [vmem:[%s290 + $0x348] sm:$0xff] %v4676
        %4933 = vst [vmem:[%s290 + $0x350] sm:$0xff] %v4677
        %4934 = vst [vmem:[%s290 + $0x358] sm:$0xff] %v4678
        %4935 = vst [vmem:[%s290 + $0x360] sm:$0xff] %v4679
        %4936 = vst [vmem:[%s290 + $0x368] sm:$0xff] %v4680
        %4937 = vst [vmem:[%s290 + $0x370] sm:$0xff] %v4681
        %4938 = vst [vmem:[%s290 + $0x378] sm:$0xff] %v4682
        %4939 = vst [vmem:[%s290 + $0x380] sm:$0xff] %v4683
        %4940 = vst [vmem:[%s290 + $0x388] sm:$0xff] %v4684
        %4941 = vst [vmem:[%s290 + $0x390] sm:$0xff] %v4685
        %4942 = vst [vmem:[%s290 + $0x398] sm:$0xff] %v4686
        %4943 = vst [vmem:[%s290 + $0x3a0] sm:$0xff] %v4687
        %4944 = vst [vmem:[%s290 + $0x3a8] sm:$0xff] %v4688
        %4945 = vst [vmem:[%s290 + $0x3b0] sm:$0xff] %v4689
        %4946 = vst [vmem:[%s290 + $0x3b8] sm:$0xff] %v4690
        %4947 = vst [vmem:[%s290 + $0x3c0] sm:$0xff] %v4691
        %4948 = vst [vmem:[%s290 + $0x3c8] sm:$0xff] %v4692
        %4949 = vst [vmem:[%s290 + $0x3d0] sm:$0xff] %v4693
        %4950 = vst [vmem:[%s290 + $0x3d8] sm:$0xff] %v4694
        %4951 = vst [vmem:[%s290 + $0x3e0] sm:$0xff] %v4695
        %4952 = vst [vmem:[%s290 + $0x3e8] sm:$0xff] %v4696
        %4953 = vst [vmem:[%s290 + $0x3f0] sm:$0xff] %v4697
        %4954 = vst [vmem:[%s290 + $0x3f8] sm:$0xff] %v4698
        %4955 = vst [vmem:[%s290 + $0x400] sm:$0xff] %v4699
        %4956 = vst [vmem:[%s290 + $0x408] sm:$0xff] %v4700
        %4957 = vst [vmem:[%s290 + $0x410] sm:$0xff] %v4701
        %4958 = vst [vmem:[%s290 + $0x418] sm:$0xff] %v4702
        %4959 = vst [vmem:[%s290 + $0x420] sm:$0xff] %v4703
        %4960 = vst [vmem:[%s290 + $0x428] sm:$0xff] %v4704
        %4961 = vst [vmem:[%s290 + $0x430] sm:$0xff] %v4705
        %4962 = vst [vmem:[%s290 + $0x438] sm:$0xff] %v4706
        %4963 = vst [vmem:[%s290 + $0x440] sm:$0xff] %v4707
        %4964 = vst [vmem:[%s290 + $0x448] sm:$0xff] %v4708
        %4965 = vst [vmem:[%s290 + $0x450] sm:$0xff] %v4709
        %4966 = vst [vmem:[%s290 + $0x458] sm:$0xff] %v4710
        %4967 = vst [vmem:[%s290 + $0x460] sm:$0xff] %v4711
        %4968 = vst [vmem:[%s290 + $0x468] sm:$0xff] %v4712
        %4969 = vst [vmem:[%s290 + $0x470] sm:$0xff] %v4713
        %4970 = vst [vmem:[%s290 + $0x478] sm:$0xff] %v4714
        %4971 = vst [vmem:[%s290 + $0x480] sm:$0xff] %v4715
        %4972 = vst [vmem:[%s290 + $0x488] sm:$0xff] %v4716
        %4973 = vst [vmem:[%s290 + $0x490] sm:$0xff] %v4717
        %4974 = vst [vmem:[%s290 + $0x498] sm:$0xff] %v4718
        %4975 = vst [vmem:[%s290 + $0x4a0] sm:$0xff] %v4719
        %4976 = vst [vmem:[%s290 + $0x4a8] sm:$0xff] %v4720
        %4977 = vst [vmem:[%s290 + $0x4b0] sm:$0xff] %v4721
        %4978 = vst [vmem:[%s290 + $0x4b8] sm:$0xff] %v4722
        %4979 = vst [vmem:[%s290 + $0x4c0] sm:$0xff] %v4723
        %4980 = vst [vmem:[%s290 + $0x4c8] sm:$0xff] %v4724
        %4981 = vst [vmem:[%s290 + $0x4d0] sm:$0xff] %v4725
        %4982 = vst [vmem:[%s290 + $0x4d8] sm:$0xff] %v4726
        %4983 = vst [vmem:[%s290 + $0x4e0] sm:$0xff] %v4727
        %4984 = vst [vmem:[%s290 + $0x4e8] sm:$0xff] %v4728
        %4985 = vst [vmem:[%s290 + $0x4f0] sm:$0xff] %v4729
        %4986 = vst [vmem:[%s290 + $0x4f8] sm:$0xff] %v4730
        %4987 = vst [vmem:[%s290 + $0x500] sm:$0xff] %v4731
        %4988 = vst [vmem:[%s290 + $0x508] sm:$0xff] %v4732
        %4989 = vst [vmem:[%s290 + $0x510] sm:$0xff] %v4733
        %4990 = vst [vmem:[%s290 + $0x518] sm:$0xff] %v4734
        %4991 = vst [vmem:[%s290 + $0x520] sm:$0xff] %v4735
        %4992 = vst [vmem:[%s290 + $0x528] sm:$0xff] %v4736
        %4993 = vst [vmem:[%s290 + $0x530] sm:$0xff] %v4737
        %4994 = vst [vmem:[%s290 + $0x538] sm:$0xff] %v4738
        %4995 = vst [vmem:[%s290 + $0x540] sm:$0xff] %v4739
        %4996 = vst [vmem:[%s290 + $0x548] sm:$0xff] %v4740
        %4997 = vst [vmem:[%s290 + $0x550] sm:$0xff] %v4741
        %4998 = vst [vmem:[%s290 + $0x558] sm:$0xff] %v4742
        %4999 = vst [vmem:[%s290 + $0x560] sm:$0xff] %v4743
        %5000 = vst [vmem:[%s290 + $0x568] sm:$0xff] %v4744
        %5001 = vst [vmem:[%s290 + $0x570] sm:$0xff] %v4745
        %5002 = vst [vmem:[%s290 + $0x578] sm:$0xff] %v4746
        %5003 = vst [vmem:[%s290 + $0x580] sm:$0xff] %v4747
        %5004 = vst [vmem:[%s290 + $0x588] sm:$0xff] %v4748
        %5005 = vst [vmem:[%s290 + $0x590] sm:$0xff] %v4749
        %5006 = vst [vmem:[%s290 + $0x598] sm:$0xff] %v4750
        %5007 = vst [vmem:[%s290 + $0x5a0] sm:$0xff] %v4751
        %5008 = vst [vmem:[%s290 + $0x5a8] sm:$0xff] %v4752
        %5009 = vst [vmem:[%s290 + $0x5b0] sm:$0xff] %v4753
        %5010 = vst [vmem:[%s290 + $0x5b8] sm:$0xff] %v4754
        %5011 = vst [vmem:[%s290 + $0x5c0] sm:$0xff] %v4755
        %5012 = vst [vmem:[%s290 + $0x5c8] sm:$0xff] %v4756
        %5013 = vst [vmem:[%s290 + $0x5d0] sm:$0xff] %v4757
        %5014 = vst [vmem:[%s290 + $0x5d8] sm:$0xff] %v4758
        %5015 = vst [vmem:[%s290 + $0x5e0] sm:$0xff] %v4759
        %5016 = vst [vmem:[%s290 + $0x5e8] sm:$0xff] %v4760
        %5017 = vst [vmem:[%s290 + $0x5f0] sm:$0xff] %v4761
        %5018 = vst [vmem:[%s290 + $0x5f8] sm:$0xff] %v4762
        %5019 = vst [vmem:[%s290 + $0x600] sm:$0xff] %v4763
        %5020 = vst [vmem:[%s290 + $0x608] sm:$0xff] %v4764
        %5021 = vst [vmem:[%s290 + $0x610] sm:$0xff] %v4765
        %5022 = vst [vmem:[%s290 + $0x618] sm:$0xff] %v4766
        %5023 = vst [vmem:[%s290 + $0x620] sm:$0xff] %v4767
        %5024 = vst [vmem:[%s290 + $0x628] sm:$0xff] %v4768
        %5025 = vst [vmem:[%s290 + $0x630] sm:$0xff] %v4769
        %5026 = vst [vmem:[%s290 + $0x638] sm:$0xff] %v4770
        %5027 = vst [vmem:[%s290 + $0x640] sm:$0xff] %v4771
        %5028 = vst [vmem:[%s290 + $0x648] sm:$0xff] %v4772
        %5029 = vst [vmem:[%s290 + $0x650] sm:$0xff] %v4773
        %5030 = vst [vmem:[%s290 + $0x658] sm:$0xff] %v4774
        %5031 = vst [vmem:[%s290 + $0x660] sm:$0xff] %v4775
        %5032 = vst [vmem:[%s290 + $0x668] sm:$0xff] %v4776
        %5033 = vst [vmem:[%s290 + $0x670] sm:$0xff] %v4777
        %5034 = vst [vmem:[%s290 + $0x678] sm:$0xff] %v4778
        %5035 = vst [vmem:[%s290 + $0x680] sm:$0xff] %v4779
        %5036 = vst [vmem:[%s290 + $0x688] sm:$0xff] %v4780
        %5037 = vst [vmem:[%s290 + $0x690] sm:$0xff] %v4781
        %5038 = vst [vmem:[%s290 + $0x698] sm:$0xff] %v4782
        %5039 = vst [vmem:[%s290 + $0x6a0] sm:$0xff] %v4783
        %5040 = vst [vmem:[%s290 + $0x6a8] sm:$0xff] %v4784
        %5041 = vst [vmem:[%s290 + $0x6b0] sm:$0xff] %v4785
        %5042 = vst [vmem:[%s290 + $0x6b8] sm:$0xff] %v4786
        %5043 = vst [vmem:[%s290 + $0x6c0] sm:$0xff] %v4787
        %5044 = vst [vmem:[%s290 + $0x6c8] sm:$0xff] %v4788
        %5045 = vst [vmem:[%s290 + $0x6d0] sm:$0xff] %v4789
        %5046 = vst [vmem:[%s290 + $0x6d8] sm:$0xff] %v4790
        %5047 = vst [vmem:[%s290 + $0x6e0] sm:$0xff] %v4791
        %5048 = vst [vmem:[%s290 + $0x6e8] sm:$0xff] %v4792
        %5049 = vst [vmem:[%s290 + $0x6f0] sm:$0xff] %v4793
        %5050 = vst [vmem:[%s290 + $0x6f8] sm:$0xff] %v4794
        %5051 = vst [vmem:[%s290 + $0x700] sm:$0xff] %v4795
        %5052 = vst [vmem:[%s290 + $0x708] sm:$0xff] %v4796
        %5053 = vst [vmem:[%s290 + $0x710] sm:$0xff] %v4797
        %5054 = vst [vmem:[%s290 + $0x718] sm:$0xff] %v4798
        %5055 = vst [vmem:[%s290 + $0x720] sm:$0xff] %v4799
        %5056 = vst [vmem:[%s290 + $0x728] sm:$0xff] %v4800
        %5057 = vst [vmem:[%s290 + $0x730] sm:$0xff] %v4801
        %5058 = vst [vmem:[%s290 + $0x738] sm:$0xff] %v4802
        %5059 = vst [vmem:[%s290 + $0x740] sm:$0xff] %v4803
        %5060 = vst [vmem:[%s290 + $0x748] sm:$0xff] %v4804
        %5061 = vst [vmem:[%s290 + $0x750] sm:$0xff] %v4805
        %5062 = vst [vmem:[%s290 + $0x758] sm:$0xff] %v4806
        %5063 = vst [vmem:[%s290 + $0x760] sm:$0xff] %v4807
        %5064 = vst [vmem:[%s290 + $0x768] sm:$0xff] %v4808
        %5065 = vst [vmem:[%s290 + $0x770] sm:$0xff] %v4809
        %5066 = vst [vmem:[%s290 + $0x778] sm:$0xff] %v4810
        %5067 = vst [vmem:[%s290 + $0x780] sm:$0xff] %v4811
        %5068 = vst [vmem:[%s290 + $0x788] sm:$0xff] %v4812
        %5069 = vst [vmem:[%s290 + $0x790] sm:$0xff] %v4813
        %5070 = vst [vmem:[%s290 + $0x798] sm:$0xff] %v4814
        %5071 = vst [vmem:[%s290 + $0x7a0] sm:$0xff] %v4815
        %5072 = vst [vmem:[%s290 + $0x7a8] sm:$0xff] %v4816
        %5073 = vst [vmem:[%s290 + $0x7b0] sm:$0xff] %v4817
        %5074 = vst [vmem:[%s290 + $0x7b8] sm:$0xff] %v4818
        %5075 = vst [vmem:[%s290 + $0x7c0] sm:$0xff] %v4819
        %5076 = vst [vmem:[%s290 + $0x7c8] sm:$0xff] %v4820
        %5077 = vst [vmem:[%s290 + $0x7d0] sm:$0xff] %v4821
        %5078 = vst [vmem:[%s290 + $0x7d8] sm:$0xff] %v4822
        %5079 = vst [vmem:[%s290 + $0x7e0] sm:$0xff] %v4823
        %5080 = vst [vmem:[%s290 + $0x7e8] sm:$0xff] %v4824
        %5081 = vst [vmem:[%s290 + $0x7f0] sm:$0xff] %v4825
        %5082 = vst [vmem:[%s290 + $0x7f8] sm:$0xff] %v4826
        %s5083 = sand.u32 %s151, 1
        %s5084 = scalar_lea.sflag [#allocation4], %s5083
        %s5085 = sand.u32 %s151, 1
        %s5086 = smul.addr %s5085, 2048
        %s5087 = scalar_lea.vmem [#allocation5], %s5086
        // Predicated region
        $region41: #{tpu_custom_call.1} parent=35 // pred_check
          %p5088 = pneg %p161
        $region42: #{tpu_custom_call.1} parent=35 // pred_check_branch
          %5090 = sbr.rel (%p5088) target = $region44
        $region43: #{tpu_custom_call.1} parent=35 // pred_region
          %s5091 = smul.u32 32, %s26
          %s5093 = ssub.s32 32768, 32768
          %5094 = vsyncadd %s5084, %s5093
          %s5095 = smul.addr %s5091, 8
          %s5096 = smul.addr %s25, 512
          %s5097 = sadd.s32 %s5095, %s5096
          %s5098 = smul.addr %s5097, 128
          %s5099 = scalar_lea.hbm %s4, %s5098
          %s5100 = sshll.u32 %s5087, 4
          %s5101 = int_to_ptr.vmem [resolvable:$true] %s5100
          %5106 = dma.vmem_to_hbm [thread:$0]  %s5101, 32768, %s5099, %s5084, 256, 256, 16
        $region44: #{tpu_custom_call.1} parent=35 // pred_fallthru
          _
      $region36: #{tpu_custom_call.1} parent=5 // pred_fallthru
        _
      %p5107 = scmp.le.s32.totalorder 2, %s16
      // Predicated region
      $region45: #{tpu_custom_call.1} parent=5 // pred_check
        %p5108 = pneg %p5107
      $region46: #{tpu_custom_call.1} parent=5 // pred_check_branch
        %5110 = sbr.rel (%p5108) target = $region48
      $region47: #{tpu_custom_call.1} parent=5 // pred_region
        %s5111 = ssub.s32 %s16, 2
        // Predicated region
        $region49: #{tpu_custom_call.1} parent=47 // pred_check
          %p5112 = pneg %p167
        $region50: #{tpu_custom_call.1} parent=47 // pred_check_branch
          %5114 = sbr.rel (%p5112) target = $region52
        $region51: #{tpu_custom_call.1} parent=47 // pred_region
          %s5115 = sand.u32 %s152, 1
          %s5116 = scalar_lea.sflag [#allocation4], %s5115
          %s5117 = sand.u32 %s152, 1
          %s5118 = smul.addr %s5117, 2048
          %s5119 = scalar_lea.vmem [#allocation5], %s5118
          %5120 = dma.done %s5116, 32768
        $region52: #{tpu_custom_call.1} parent=47 // pred_fallthru
          _
      $region48: #{tpu_custom_call.1} parent=5 // pred_fallthru
        _
    $region6: #{tpu_custom_call.1} parent=1 // loop_footer
      %s20 = sadd.s32 1, %s16
    $region7: #{tpu_custom_call.1} parent=1 // loop_footer_branch
      %15 = sbr.rel target = $region3
    $region8: #{tpu_custom_call.1} parent=1 // loop_exit
      _
    %5121 = vsyncpa [#allocation3], 1
    %s5122 = scalar_lea.sflag [#allocation3], 1
    %5123 = vsyncpa %s5122, 1
    %5124 = vsyncpa [#allocation4], 1
    %s5125 = scalar_lea.sflag [#allocation4], 1
    %5126 = vsyncpa %s5125, 1

</llo_original>
